<compile_context>
chip_gen: v5e
topology: v5e:2x2
jax: 0.10.0
libtpu: 0.0.40
codegen_flags: <defaults>
</compile_context>

<pallas_src>
import functools

import numpy as np
import jax
import jax.numpy as jnp
from jax import lax
from jax.experimental import pallas as pl
from jax.experimental.pallas import tpu as pltpu

EPS = 1e-5        # nn.InstanceNorm2d default eps
BRANCHES = 6      # Double_conv.branchs


# ----------------------------- trace-time constants -------------------------

def _conv_boundary_masks(h, w):
    """(4, h*w) masks: zero at w==0 / w==w-1 / h==0 / h==h-1 (zero padding)."""
    hh, ww = np.meshgrid(np.arange(h), np.arange(w), indexing="ij")
    m = np.stack([ww != 0, ww != w - 1, hh != 0, hh != h - 1])
    return m.reshape(4, h * w).astype(np.float32)


def _bilinear_blend_coefs(h2, w2):
    """(6, h2*w2) rows [w_self, w_minus, w_plus, h_self, h_minus, h_plus].

    Turns a nearest-neighbour 2x-upsampled map zn into the exact bilinear
    (align_corners=False) result via
        zw  = w_self*zn + w_minus*roll(zn,+1) + w_plus*roll(zn,-1)     (W dir)
        out = h_self*zw + h_minus*roll(zw,+W2) + h_plus*roll(zw,-W2)   (H dir)
    Border clamping is folded into the coefficients.
    """
    hh, ww = np.meshgrid(np.arange(h2), np.arange(w2), indexing="ij")

    def coefs(idx, n):
        m = ((idx % 2 == 0) & (idx > 0)).astype(np.float32)       # use left/up tap
        p = ((idx % 2 == 1) & (idx < n - 1)).astype(np.float32)   # use right/down tap
        return 1.0 - 0.25 * (m + p), 0.25 * m, 0.25 * p

    ws, wm, wp = coefs(ww, w2)
    hs, hm, hp = coefs(hh, h2)
    rows = [ws, wm, wp, hs, hm, hp]
    return np.stack([r.reshape(h2 * w2) for r in rows]).astype(np.float32)


# --------------------------------- kernel -----------------------------------

def _make_conv_up_kernel(S, W2, mid, out_ch):
    """Fused Conv_up forward; one grid step == one batch sample."""

    def dot(a, b):
        return jnp.dot(a, b, preferred_element_type=jnp.float32)

    def in_relu(y):
        # InstanceNorm2d (no affine, biased var, eps=1e-5) + ReLU; single-pass
        # stats so the two cross-lane reductions are independent (2 XLUs).
        m1 = jnp.mean(y, axis=1, keepdims=True)
        m2 = jnp.mean(y * y, axis=1, keepdims=True)
        var = jnp.maximum(m2 - m1 * m1, 0.0)
        return jnp.maximum((y - m1) * lax.rsqrt(var + EPS), 0.0)

    def kernel(zn_ref, x2_ref, cmask_ref, bcoef_ref,
               msw1_ref, msw2_ref, msb_ref,
               c3w_ref, c3b_ref,
               a1w_ref, a1b_ref, a2w_ref, a2b_ref,
               fcw_ref, fcb_ref, fcsw_ref, fcsb_ref,
               o_ref, short_ref):
        zn = zn_ref[0]          # (Cout, S)   NN-repeated up-conv output
        x2 = x2_ref[0]          # (Cin-Cout, S) skip connection
        cm = cmask_ref[...]     # (4, S)
        bc = bcoef_ref[...]     # (6, S)

        m_w0, m_wl, m_h0, m_hl = cm[0:1], cm[1:2], cm[2:3], cm[3:4]

        # ---- bilinear 2x (align_corners=False) via roll + blend (VPU/XLU) ----
        zw = (bc[0:1] * zn
              + bc[1:2] * pltpu.roll(zn, shift=1, axis=1)
              + bc[2:3] * pltpu.roll(zn, shift=S - 1, axis=1))
        x1u = (bc[3:4] * zw
               + bc[4:5] * pltpu.roll(zw, shift=W2, axis=1)
               + bc[5:6] * pltpu.roll(zw, shift=S - W2, axis=1))   # (Cout, S)

        # ---- conv1x1_mid + short_connect: one stacked matmul, K split at the
        # x1u / x2 channel boundary (cat(x1u, x2) never materialised) ----
        sm = dot(msw1_ref[...], x1u) + dot(msw2_ref[...], x2) + msb_ref[...]
        xxx = in_relu(sm[:out_ch])          # conv1x1_mid + IN + ReLU
        short_ref[...] = sm[out_ch:]        # park `short` in VMEM until the end

        def conv3(y, idx, along_w):
            # 3-tap zero-padded conv (+IN+ReLU) along W or H; taps via
            # pltpu.roll + boundary masks; per-tap (mid,mid) weight blocks so
            # no sublane-misaligned concat is built.
            if along_w:
                xm = pltpu.roll(y, shift=1, axis=1) * m_w0       # x[.., w-1]
                xp = pltpu.roll(y, shift=S - 1, axis=1) * m_wl   # x[.., w+1]
            else:
                xm = pltpu.roll(y, shift=W2, axis=1) * m_h0      # x[.., h-1, .]
                xp = pltpu.roll(y, shift=S - W2, axis=1) * m_hl  # x[.., h+1, .]
            z = (dot(c3w_ref[3 * idx + 0], xm)
                 + dot(c3w_ref[3 * idx + 1], y)
                 + dot(c3w_ref[3 * idx + 2], xp)
                 + c3b_ref[idx])
            return in_relu(z)

        # ---- first branch chain ([1,3] convs, along W) ----
        xs = [xxx[i * mid:(i + 1) * mid, :] for i in range(BRANCHES)]
        b0 = xs[0]
        b1 = conv3(xs[1] + b0, 0, True)     # conv1x3_1
        b2 = conv3(xs[2] + b1, 1, True)     # conv3x1_1
        b3 = conv3(xs[3] + b2, 2, True)     # conv3x3_1
        b4 = conv3(xs[4] + b3, 3, True)     # conv3x3_1_1
        b5 = conv3(xs[5] + b4, 4, True)     # conv3x3_2_1

        # ---- SK attention: spatial mean FIRST (== avg_pool -> fc -> fcs) ----
        xsum = b0 + b1 + b2 + b3 + b4 + b5                       # (mid, S)
        gap = jnp.mean(xsum, axis=1, keepdims=True)              # (mid, 1)
        sk2 = dot(fcw_ref[...], gap) + fcb_ref[...]              # (num, 1)
        logits = [dot(fcsw_ref[f], sk2) + fcsb_ref[f]            # (mid, 1)
                  for f in range(BRANCHES)]
        mx = logits[0]
        for f in range(1, BRANCHES):
            mx = jnp.maximum(mx, logits[f])
        exps = [jnp.exp(l - mx) for l in logits]
        tot = exps[0]
        for f in range(1, BRANCHES):
            tot = tot + exps[f]
        atts = [e / tot for e in exps]                           # exact softmax

        # ---- conv1x1_1 via per-branch column blocks (no concat) ----
        b_all = (b0, b1, b2, b3, b4, b5)
        xxx2 = dot(a1w_ref[0], b_all[0] * atts[0])
        for f in range(1, BRANCHES):
            xxx2 = xxx2 + dot(a1w_ref[f], b_all[f] * atts[f])
        xxx2 = xxx2 + a1b_ref[...]                               # (Cout, S)

        # ---- second branch chain ([3,1] convs, along H) ----
        ys = [xxx2[i * mid:(i + 1) * mid, :] for i in range(BRANCHES)]
        c0 = ys[0]
        c1 = conv3(ys[1] + c0, 5, False)    # conv1x3_2
        c2 = conv3(c1 + ys[2], 6, False)    # conv3x1_2
        c3_ = conv3(c2 + ys[3], 7, False)   # conv3x3_2
        c4 = conv3(c3_ + ys[4], 8, False)   # conv3x3_1_2
        c5 = conv3(c4 + ys[5], 9, False)    # conv3x3_2_2

        # ---- conv1x1_2 (per-branch blocks) + residual short-connect + ReLU ----
        c_all = (c0, c1, c2, c3_, c4, c5)
        out = dot(a2w_ref[0], c_all[0])
        for f in range(1, BRANCHES):
            out = out + dot(a2w_ref[f], c_all[f])
        out = out + a2b_ref[...] + short_ref[...]
        o_ref[0] = jnp.maximum(out, 0.0)

    return kernel


# --------------------------------- wrapper ----------------------------------

def conv_up_forward(x1_nchw, x2_nchw, params, out_ch):
    B, in_ch, H, W = x1_nchw.shape
    B2, skip_ch, H2, W2 = x2_nchw.shape
    assert B2 == B and H2 == 2 * H and W2 == 2 * W
    assert in_ch > out_ch and skip_ch == in_ch - out_ch, \
        "Conv_up: cat(up(interp(x1)), x2) must have in_ch channels"
    assert out_ch % BRANCHES == 0
    mid = out_ch // BRANCHES
    num = max(mid // 2, 12)
    S = H2 * W2
    assert params["fc_w"].shape == (num, mid)

    # ---- `up` 1x1 conv at LOW resolution (4x fewer FLOPs than after the
    # upsample; channel mix and bilinear upsample commute), then a NN 2x
    # repeat (pure data movement, XLA).  The bilinear 0.75/0.25 blend itself
    # runs in-kernel on the VPU.
    x1 = x1_nchw.reshape(B, in_ch, H * W)
    z = (jnp.einsum("oc,bcp->bop", params["up_w"], x1)
         + params["up_b"][None, :, None]).reshape(B, out_ch, H, W)
    zn = jnp.repeat(jnp.repeat(z, 2, axis=2), 2, axis=3).reshape(B, out_ch, S)
    # TODO(synk): pull the NN repeat into the kernel (strided DMA / lane
    # interleave) so the whole forward is a single pallas_call.

    x2 = x2_nchw.reshape(B, skip_ch, S)

    # trace-time constants (tiny: O(S), no more kron(U_H, U_W))
    cmask = jnp.asarray(_conv_boundary_masks(H2, W2))      # (4, S)
    bcoef = jnp.asarray(_bilinear_blend_coefs(H2, W2))     # (6, S)

    col = lambda v: v.reshape(-1, 1)

    # conv1x1_mid + short_connect stacked into one matmul; K split at the
    # x1u / x2 channel boundary so the channel concat never exists.
    msw = jnp.concatenate([params["mid_w"], params["short_w"]], axis=0)
    msw1 = msw[:, :out_ch]                  # applies to x1u   (2*Cout, Cout)
    msw2 = msw[:, out_ch:]                  # applies to x2    (2*Cout, Cin-Cout)
    msb = col(jnp.concatenate([params["mid_b"], params["short_b"]], axis=0))

    # branch 3-tap convs: per-tap (mid, mid) blocks, row 3*i+t, taps [-1,0,+1]
    c3w = params["conv3_w"].reshape(10 * 3, mid, mid)
    c3b = params["conv3_b"].reshape(10, mid, 1)

    # conv1x1_1 / conv1x1_2: per-branch (out_ch, mid) column blocks
    a1w = params["c1x1_1_w"].reshape(out_ch, BRANCHES, mid).transpose(1, 0, 2)
    a2w = params["c1x1_2_w"].reshape(out_ch, BRANCHES, mid).transpose(1, 0, 2)

    inputs = (
        zn, x2, cmask, bcoef,
        msw1, msw2, msb,
        c3w, c3b,
        a1w, col(params["c1x1_1_b"]),
        a2w, col(params["c1x1_2_b"]),
        params["fc_w"], col(params["fc_b"]),
        params["fcs_w"], params["fcs_b"].reshape(BRANCHES, mid, 1),
    )

    def batch_spec(c, s):
        return pl.BlockSpec((1, c, s), lambda b: (b, 0, 0))

    def full_spec(a):
        zeros = (0,) * a.ndim
        return pl.BlockSpec(a.shape, lambda b: zeros)

    in_specs = [batch_spec(out_ch, S), batch_spec(skip_ch, S)]
    in_specs += [full_spec(a) for a in inputs[2:]]

    kernel = _make_conv_up_kernel(S, W2, mid, out_ch)

    out = pl.pallas_call(
        kernel,
        grid=(B,),
        in_specs=in_specs,
        out_specs=pl.BlockSpec((1, out_ch, S), lambda b: (b, 0, 0)),
        out_shape=jax.ShapeDtypeStruct((B, out_ch, S), jnp.float32),
        scratch_shapes=[pltpu.VMEM((out_ch, S), jnp.float32)],   # parked `short`
        compiler_params=pltpu.CompilerParams(
            dimension_semantics=("parallel",),      # v7x: shard samples over 2 TCs
            vmem_limit_bytes=48 * 1024 * 1024,      # <= v7x 64 MiB; explicit for v5e
        ),
    )(*inputs)

    return out.reshape(B, out_ch, H2, W2)


# ------------------------------ parameter init -------------------------------

def init_params(key, in_ch, out_ch):
    mid = out_ch // BRANCHES
    num = max(mid // 2, 12)
    ks = iter(jax.random.split(key, 24))

    def w(*shape, s=0.3):
        return jax.random.normal(next(ks), shape, jnp.float32) * s

    return {
        # 1x1 convs: weight (Cout, Cin) == PyTorch Conv2d weight[..., 0, 0]
        "up_w": w(out_ch, in_ch), "up_b": w(out_ch),
        "short_w": w(out_ch, in_ch), "short_b": w(out_ch),
        "mid_w": w(out_ch, in_ch), "mid_b": w(out_ch),
        "c1x1_1_w": w(out_ch, out_ch), "c1x1_1_b": w(out_ch),
        "c1x1_2_w": w(out_ch, out_ch), "c1x1_2_b": w(out_ch),
        # 10 branch convs (rows 0-4: stage-1 [1,3] convs in application order,
        # rows 5-9: stage-2 [3,1] convs); axis 1 = taps [-1, 0, +1], i.e.
        # PyTorch Conv2d weight[:, :, 0, 0..2] (resp. [:, :, 0..2, 0]).
        "conv3_w": w(10, 3, mid, mid), "conv3_b": w(10, mid),
        # SK attention: fc (num, mid), 6x fcs (mid, num)
        "fc_w": w(num, mid), "fc_b": w(num),
        "fcs_w": w(BRANCHES, mid, num), "fcs_b": w(BRANCHES, mid),
    }


if __name__ == "__main__":
    in_ch, out_ch = 24, 12          # Conv_up(24, 12): skip tensor has 24-12=12 ch
    B, H, W = 2, 8, 8

    key = jax.random.PRNGKey(0)
    kp, k1, k2 = jax.random.split(key, 3)
    params = init_params(kp, in_ch, out_ch)
    x1 = jax.random.normal(k1, (B, in_ch, H, W), jnp.float32)              # low-res
    x2 = jax.random.normal(k2, (B, in_ch - out_ch, 2 * H, 2 * W), jnp.float32)

    fwd = jax.jit(functools.partial(conv_up_forward, out_ch=out_ch))
    y = fwd(x1, x2, params)
    jax.block_until_ready(y)
    assert y.shape == (B, out_ch, 2 * H, 2 * W), y.shape
    print("KERNEL_OK")
</pallas_src>

<mosaic_0001>
module attributes {stable_mosaic.version = 11 : i64} {
  func.func @kernel(%arg0: i32, %arg1: memref<1x12x256xf32, #tpu.memory_space<vmem>>, %arg2: memref<1x12x256xf32, #tpu.memory_space<vmem>>, %arg3: memref<4x256xf32, #tpu.memory_space<vmem>>, %arg4: memref<6x256xf32, #tpu.memory_space<vmem>>, %arg5: memref<24x12xf32, #tpu.memory_space<vmem>>, %arg6: memref<24x12xf32, #tpu.memory_space<vmem>>, %arg7: memref<24x1xf32, #tpu.memory_space<vmem>>, %arg8: memref<30x2x2xf32, #tpu.memory_space<vmem>>, %arg9: memref<10x2x1xf32, #tpu.memory_space<vmem>>, %arg10: memref<6x12x2xf32, #tpu.memory_space<vmem>>, %arg11: memref<12x1xf32, #tpu.memory_space<vmem>>, %arg12: memref<6x12x2xf32, #tpu.memory_space<vmem>>, %arg13: memref<12x1xf32, #tpu.memory_space<vmem>>, %arg14: memref<12x2xf32, #tpu.memory_space<vmem>>, %arg15: memref<12x1xf32, #tpu.memory_space<vmem>>, %arg16: memref<6x2x12xf32, #tpu.memory_space<vmem>>, %arg17: memref<6x2x1xf32, #tpu.memory_space<vmem>>, %arg18: memref<1x12x256xf32, #tpu.memory_space<vmem>>, %arg19: memref<12x256xf32, #tpu.memory_space<vmem>>) attributes {dimension_semantics = [#tpu.dimension_semantics<parallel>], iteration_bounds = array<i64: 2>, scalar_prefetch = 0 : i64, scratch_operands = 1 : i64, tpu.core_type = #tpu.core_type<tc>, window_params = [{transform_indices = @transform_0, window_bounds = array<i64: 1, 12, 256>}, {transform_indices = @transform_1, window_bounds = array<i64: 1, 12, 256>}, {pipeline_mode = #tpu.pipeline_mode<synchronous>, transform_indices = @transform_2, window_bounds = array<i64: 4, 256>}, {pipeline_mode = #tpu.pipeline_mode<synchronous>, transform_indices = @transform_3, window_bounds = array<i64: 6, 256>}, {pipeline_mode = #tpu.pipeline_mode<synchronous>, transform_indices = @transform_4, window_bounds = array<i64: 24, 12>}, {pipeline_mode = #tpu.pipeline_mode<synchronous>, transform_indices = @transform_5, window_bounds = array<i64: 24, 12>}, {pipeline_mode = #tpu.pipeline_mode<synchronous>, transform_indices = @transform_6, window_bounds = array<i64: 24, 1>}, {pipeline_mode = #tpu.pipeline_mode<synchronous>, transform_indices = @transform_7, window_bounds = array<i64: 30, 2, 2>}, {pipeline_mode = #tpu.pipeline_mode<synchronous>, transform_indices = @transform_8, window_bounds = array<i64: 10, 2, 1>}, {pipeline_mode = #tpu.pipeline_mode<synchronous>, transform_indices = @transform_9, window_bounds = array<i64: 6, 12, 2>}, {pipeline_mode = #tpu.pipeline_mode<synchronous>, transform_indices = @transform_10, window_bounds = array<i64: 12, 1>}, {pipeline_mode = #tpu.pipeline_mode<synchronous>, transform_indices = @transform_11, window_bounds = array<i64: 6, 12, 2>}, {pipeline_mode = #tpu.pipeline_mode<synchronous>, transform_indices = @transform_12, window_bounds = array<i64: 12, 1>}, {pipeline_mode = #tpu.pipeline_mode<synchronous>, transform_indices = @transform_13, window_bounds = array<i64: 12, 2>}, {pipeline_mode = #tpu.pipeline_mode<synchronous>, transform_indices = @transform_14, window_bounds = array<i64: 12, 1>}, {pipeline_mode = #tpu.pipeline_mode<synchronous>, transform_indices = @transform_15, window_bounds = array<i64: 6, 2, 12>}, {pipeline_mode = #tpu.pipeline_mode<synchronous>, transform_indices = @transform_16, window_bounds = array<i64: 6, 2, 1>}, {transform_indices = @transform_17, window_bounds = array<i64: 1, 12, 256>}]} {
    %c0 = arith.constant 0 : index
    %c0_0 = arith.constant 0 : index
    %c0_1 = arith.constant 0 : index
    %0 = vector.load %arg1[%c0, %c0_0, %c0_1] : memref<1x12x256xf32, #tpu.memory_space<vmem>>, vector<1x12x256xf32>
    %1 = vector.shape_cast %0 : vector<1x12x256xf32> to vector<12x256xf32>
    %c0_2 = arith.constant 0 : index
    %c0_3 = arith.constant 0 : index
    %c0_4 = arith.constant 0 : index
    %2 = vector.load %arg2[%c0_2, %c0_3, %c0_4] : memref<1x12x256xf32, #tpu.memory_space<vmem>>, vector<1x12x256xf32>
    %3 = vector.shape_cast %2 : vector<1x12x256xf32> to vector<12x256xf32>
    %c0_5 = arith.constant 0 : index
    %c0_6 = arith.constant 0 : index
    %4 = vector.load %arg3[%c0_5, %c0_6] : memref<4x256xf32, #tpu.memory_space<vmem>>, vector<4x256xf32>
    %c0_7 = arith.constant 0 : index
    %c0_8 = arith.constant 0 : index
    %5 = vector.load %arg4[%c0_7, %c0_8] : memref<6x256xf32, #tpu.memory_space<vmem>>, vector<6x256xf32>
    %6 = vector.extract_strided_slice %4 {offsets = [0, 0], sizes = [1, 256], strides = [1, 1]} : vector<4x256xf32> to vector<1x256xf32>
    %7 = vector.extract_strided_slice %4 {offsets = [1, 0], sizes = [1, 256], strides = [1, 1]} : vector<4x256xf32> to vector<1x256xf32>
    %8 = vector.extract_strided_slice %4 {offsets = [2, 0], sizes = [1, 256], strides = [1, 1]} : vector<4x256xf32> to vector<1x256xf32>
    %9 = vector.extract_strided_slice %4 {offsets = [3, 0], sizes = [1, 256], strides = [1, 1]} : vector<4x256xf32> to vector<1x256xf32>
    %10 = vector.extract_strided_slice %5 {offsets = [0, 0], sizes = [1, 256], strides = [1, 1]} : vector<6x256xf32> to vector<1x256xf32>
    %11 = vector.broadcast %10 : vector<1x256xf32> to vector<12x256xf32>
    %12 = arith.mulf %11, %1 : vector<12x256xf32>
    %13 = vector.extract_strided_slice %5 {offsets = [1, 0], sizes = [1, 256], strides = [1, 1]} : vector<6x256xf32> to vector<1x256xf32>
    %c1_i32 = arith.constant 1 : i32
    %14 = tpu.dynamic_rotate %1 by %c1_i32 dim 1 : vector<12x256xf32>, i32 -> vector<12x256xf32>
    %15 = vector.broadcast %13 : vector<1x256xf32> to vector<12x256xf32>
    %16 = arith.mulf %15, %14 : vector<12x256xf32>
    %17 = arith.addf %12, %16 : vector<12x256xf32>
    %18 = vector.extract_strided_slice %5 {offsets = [2, 0], sizes = [1, 256], strides = [1, 1]} : vector<6x256xf32> to vector<1x256xf32>
    %c255_i32 = arith.constant 255 : i32
    %19 = tpu.dynamic_rotate %1 by %c255_i32 dim 1 : vector<12x256xf32>, i32 -> vector<12x256xf32>
    %20 = vector.broadcast %18 : vector<1x256xf32> to vector<12x256xf32>
    %21 = arith.mulf %20, %19 : vector<12x256xf32>
    %22 = arith.addf %17, %21 : vector<12x256xf32>
    %23 = vector.extract_strided_slice %5 {offsets = [3, 0], sizes = [1, 256], strides = [1, 1]} : vector<6x256xf32> to vector<1x256xf32>
    %24 = vector.broadcast %23 : vector<1x256xf32> to vector<12x256xf32>
    %25 = arith.mulf %24, %22 : vector<12x256xf32>
    %26 = vector.extract_strided_slice %5 {offsets = [4, 0], sizes = [1, 256], strides = [1, 1]} : vector<6x256xf32> to vector<1x256xf32>
    %c16_i32 = arith.constant 16 : i32
    %27 = tpu.dynamic_rotate %22 by %c16_i32 dim 1 : vector<12x256xf32>, i32 -> vector<12x256xf32>
    %28 = vector.broadcast %26 : vector<1x256xf32> to vector<12x256xf32>
    %29 = arith.mulf %28, %27 : vector<12x256xf32>
    %30 = arith.addf %25, %29 : vector<12x256xf32>
    %31 = vector.extract_strided_slice %5 {offsets = [5, 0], sizes = [1, 256], strides = [1, 1]} : vector<6x256xf32> to vector<1x256xf32>
    %c240_i32 = arith.constant 240 : i32
    %32 = tpu.dynamic_rotate %22 by %c240_i32 dim 1 : vector<12x256xf32>, i32 -> vector<12x256xf32>
    %33 = vector.broadcast %31 : vector<1x256xf32> to vector<12x256xf32>
    %34 = arith.mulf %33, %32 : vector<12x256xf32>
    %35 = arith.addf %30, %34 : vector<12x256xf32>
    %c0_9 = arith.constant 0 : index
    %c0_10 = arith.constant 0 : index
    %36 = vector.load %arg5[%c0_9, %c0_10] : memref<24x12xf32, #tpu.memory_space<vmem>>, vector<24x12xf32>
    %cst = arith.constant dense<0.000000e+00> : vector<24x256xf32>
    %37 = tpu.matmul %36, %35, %cst {dimension_numbers = #tpu.dot_dimension_numbers<[1], [0], [0], [1], [0, 0, 1, 1], [], []>} : vector<24x12xf32>, vector<12x256xf32>, vector<24x256xf32> -> vector<24x256xf32>
    %c0_11 = arith.constant 0 : index
    %c0_12 = arith.constant 0 : index
    %38 = vector.load %arg6[%c0_11, %c0_12] : memref<24x12xf32, #tpu.memory_space<vmem>>, vector<24x12xf32>
    %cst_13 = arith.constant dense<0.000000e+00> : vector<24x256xf32>
    %39 = tpu.matmul %38, %3, %cst_13 {dimension_numbers = #tpu.dot_dimension_numbers<[1], [0], [0], [1], [0, 0, 1, 1], [], []>} : vector<24x12xf32>, vector<12x256xf32>, vector<24x256xf32> -> vector<24x256xf32>
    %40 = arith.addf %37, %39 : vector<24x256xf32>
    %c0_14 = arith.constant 0 : index
    %c0_15 = arith.constant 0 : index
    %41 = vector.load %arg7[%c0_14, %c0_15] : memref<24x1xf32, #tpu.memory_space<vmem>>, vector<24x1xf32>
    %42 = vector.broadcast %41 : vector<24x1xf32> to vector<24x256xf32>
    %43 = arith.addf %40, %42 : vector<24x256xf32>
    %44 = vector.extract_strided_slice %43 {offsets = [0, 0], sizes = [12, 256], strides = [1, 1]} : vector<24x256xf32> to vector<12x256xf32>
    %cst_16 = arith.constant dense<0.000000e+00> : vector<12xf32>
    %45 = vector.multi_reduction <add>, %44, %cst_16 [1] : vector<12x256xf32> to vector<12xf32>
    %46 = vector.shape_cast %45 : vector<12xf32> to vector<12x1xf32>
    %cst_17 = arith.constant 2.560000e+02 : f32
    %47 = vector.broadcast %cst_17 : f32 to vector<12x1xf32>
    %48 = arith.divf %46, %47 : vector<12x1xf32>
    %49 = arith.mulf %44, %44 : vector<12x256xf32>
    %cst_18 = arith.constant dense<0.000000e+00> : vector<12xf32>
    %50 = vector.multi_reduction <add>, %49, %cst_18 [1] : vector<12x256xf32> to vector<12xf32>
    %51 = vector.shape_cast %50 : vector<12xf32> to vector<12x1xf32>
    %cst_19 = arith.constant 2.560000e+02 : f32
    %52 = vector.broadcast %cst_19 : f32 to vector<12x1xf32>
    %53 = arith.divf %51, %52 : vector<12x1xf32>
    %54 = arith.mulf %48, %48 : vector<12x1xf32>
    %55 = arith.subf %53, %54 : vector<12x1xf32>
    %cst_20 = arith.constant 0.000000e+00 : f32
    %56 = vector.broadcast %cst_20 : f32 to vector<12x1xf32>
    %57 = arith.maximumf %55, %56 : vector<12x1xf32>
    %58 = vector.broadcast %48 : vector<12x1xf32> to vector<12x256xf32>
    %59 = arith.subf %44, %58 : vector<12x256xf32>
    %cst_21 = arith.constant 9.99999974E-6 : f32
    %60 = vector.broadcast %cst_21 : f32 to vector<12x1xf32>
    %61 = arith.addf %57, %60 : vector<12x1xf32>
    %62 = math.rsqrt %61 : vector<12x1xf32>
    %63 = vector.broadcast %62 : vector<12x1xf32> to vector<12x256xf32>
    %64 = arith.mulf %59, %63 : vector<12x256xf32>
    %cst_22 = arith.constant 0.000000e+00 : f32
    %65 = vector.broadcast %cst_22 : f32 to vector<12x256xf32>
    %66 = arith.maximumf %64, %65 : vector<12x256xf32>
    %67 = vector.extract_strided_slice %43 {offsets = [12, 0], sizes = [12, 256], strides = [1, 1]} : vector<24x256xf32> to vector<12x256xf32>
    %c0_23 = arith.constant 0 : index
    %c0_24 = arith.constant 0 : index
    %68 = vector.load %arg19[%c0_23, %c0_24] : memref<12x256xf32, #tpu.memory_space<vmem>>, vector<12x256xf32>
    tpu.vector_store %arg19[%c0_23, %c0_24], %67 {strides = array<i32>} : memref<12x256xf32, #tpu.memory_space<vmem>>, vector<12x256xf32>,
    %69 = vector.extract_strided_slice %66 {offsets = [0, 0], sizes = [2, 256], strides = [1, 1]} : vector<12x256xf32> to vector<2x256xf32>
    %70 = vector.extract_strided_slice %66 {offsets = [2, 0], sizes = [2, 256], strides = [1, 1]} : vector<12x256xf32> to vector<2x256xf32>
    %71 = vector.extract_strided_slice %66 {offsets = [4, 0], sizes = [2, 256], strides = [1, 1]} : vector<12x256xf32> to vector<2x256xf32>
    %72 = vector.extract_strided_slice %66 {offsets = [6, 0], sizes = [2, 256], strides = [1, 1]} : vector<12x256xf32> to vector<2x256xf32>
    %73 = vector.extract_strided_slice %66 {offsets = [8, 0], sizes = [2, 256], strides = [1, 1]} : vector<12x256xf32> to vector<2x256xf32>
    %74 = vector.extract_strided_slice %66 {offsets = [10, 0], sizes = [2, 256], strides = [1, 1]} : vector<12x256xf32> to vector<2x256xf32>
    %75 = arith.addf %70, %69 : vector<2x256xf32>
    %c1_i32_25 = arith.constant 1 : i32
    %76 = tpu.dynamic_rotate %75 by %c1_i32_25 dim 1 : vector<2x256xf32>, i32 -> vector<2x256xf32>
    %77 = vector.broadcast %6 : vector<1x256xf32> to vector<2x256xf32>
    %78 = arith.mulf %76, %77 : vector<2x256xf32>
    %c255_i32_26 = arith.constant 255 : i32
    %79 = tpu.dynamic_rotate %75 by %c255_i32_26 dim 1 : vector<2x256xf32>, i32 -> vector<2x256xf32>
    %80 = vector.broadcast %7 : vector<1x256xf32> to vector<2x256xf32>
    %81 = arith.mulf %79, %80 : vector<2x256xf32>
    %c0_27 = arith.constant 0 : index
    %c0_28 = arith.constant 0 : index
    %c0_29 = arith.constant 0 : index
    %82 = vector.load %arg8[%c0_27, %c0_28, %c0_29] : memref<30x2x2xf32, #tpu.memory_space<vmem>>, vector<1x2x2xf32>
    %83 = vector.shape_cast %82 : vector<1x2x2xf32> to vector<2x2xf32>
    %cst_30 = arith.constant dense<0.000000e+00> : vector<2x256xf32>
    %84 = tpu.matmul %83, %78, %cst_30 {dimension_numbers = #tpu.dot_dimension_numbers<[1], [0], [0], [1], [0, 0, 1, 1], [], []>} : vector<2x2xf32>, vector<2x256xf32>, vector<2x256xf32> -> vector<2x256xf32>
    %c1 = arith.constant 1 : index
    %c0_31 = arith.constant 0 : index
    %c0_32 = arith.constant 0 : index
    %85 = vector.load %arg8[%c1, %c0_31, %c0_32] : memref<30x2x2xf32, #tpu.memory_space<vmem>>, vector<1x2x2xf32>
    %86 = vector.shape_cast %85 : vector<1x2x2xf32> to vector<2x2xf32>
    %cst_33 = arith.constant dense<0.000000e+00> : vector<2x256xf32>
    %87 = tpu.matmul %86, %75, %cst_33 {dimension_numbers = #tpu.dot_dimension_numbers<[1], [0], [0], [1], [0, 0, 1, 1], [], []>} : vector<2x2xf32>, vector<2x256xf32>, vector<2x256xf32> -> vector<2x256xf32>
    %88 = arith.addf %84, %87 : vector<2x256xf32>
    %c2 = arith.constant 2 : index
    %c0_34 = arith.constant 0 : index
    %c0_35 = arith.constant 0 : index
    %89 = vector.load %arg8[%c2, %c0_34, %c0_35] : memref<30x2x2xf32, #tpu.memory_space<vmem>>, vector<1x2x2xf32>
    %90 = vector.shape_cast %89 : vector<1x2x2xf32> to vector<2x2xf32>
    %cst_36 = arith.constant dense<0.000000e+00> : vector<2x256xf32>
    %91 = tpu.matmul %90, %81, %cst_36 {dimension_numbers = #tpu.dot_dimension_numbers<[1], [0], [0], [1], [0, 0, 1, 1], [], []>} : vector<2x2xf32>, vector<2x256xf32>, vector<2x256xf32> -> vector<2x256xf32>
    %92 = arith.addf %88, %91 : vector<2x256xf32>
    %c0_37 = arith.constant 0 : index
    %c0_38 = arith.constant 0 : index
    %c0_39 = arith.constant 0 : index
    %93 = vector.load %arg9[%c0_37, %c0_38, %c0_39] : memref<10x2x1xf32, #tpu.memory_space<vmem>>, vector<1x2x1xf32>
    %94 = vector.shape_cast %93 : vector<1x2x1xf32> to vector<2x1xf32>
    %95 = vector.broadcast %94 : vector<2x1xf32> to vector<2x256xf32>
    %96 = arith.addf %92, %95 : vector<2x256xf32>
    %cst_40 = arith.constant dense<0.000000e+00> : vector<2xf32>
    %97 = vector.multi_reduction <add>, %96, %cst_40 [1] : vector<2x256xf32> to vector<2xf32>
    %98 = vector.shape_cast %97 : vector<2xf32> to vector<2x1xf32>
    %cst_41 = arith.constant 2.560000e+02 : f32
    %99 = vector.broadcast %cst_41 : f32 to vector<2x1xf32>
    %100 = arith.divf %98, %99 : vector<2x1xf32>
    %101 = arith.mulf %96, %96 : vector<2x256xf32>
    %cst_42 = arith.constant dense<0.000000e+00> : vector<2xf32>
    %102 = vector.multi_reduction <add>, %101, %cst_42 [1] : vector<2x256xf32> to vector<2xf32>
    %103 = vector.shape_cast %102 : vector<2xf32> to vector<2x1xf32>
    %cst_43 = arith.constant 2.560000e+02 : f32
    %104 = vector.broadcast %cst_43 : f32 to vector<2x1xf32>
    %105 = arith.divf %103, %104 : vector<2x1xf32>
    %106 = arith.mulf %100, %100 : vector<2x1xf32>
    %107 = arith.subf %105, %106 : vector<2x1xf32>
    %cst_44 = arith.constant 0.000000e+00 : f32
    %108 = vector.broadcast %cst_44 : f32 to vector<2x1xf32>
    %109 = arith.maximumf %107, %108 : vector<2x1xf32>
    %110 = vector.broadcast %100 : vector<2x1xf32> to vector<2x256xf32>
    %111 = arith.subf %96, %110 : vector<2x256xf32>
    %cst_45 = arith.constant 9.99999974E-6 : f32
    %112 = vector.broadcast %cst_45 : f32 to vector<2x1xf32>
    %113 = arith.addf %109, %112 : vector<2x1xf32>
    %114 = math.rsqrt %113 : vector<2x1xf32>
    %115 = vector.broadcast %114 : vector<2x1xf32> to vector<2x256xf32>
    %116 = arith.mulf %111, %115 : vector<2x256xf32>
    %cst_46 = arith.constant 0.000000e+00 : f32
    %117 = vector.broadcast %cst_46 : f32 to vector<2x256xf32>
    %118 = arith.maximumf %116, %117 : vector<2x256xf32>
    %119 = arith.addf %71, %118 : vector<2x256xf32>
    %c1_i32_47 = arith.constant 1 : i32
    %120 = tpu.dynamic_rotate %119 by %c1_i32_47 dim 1 : vector<2x256xf32>, i32 -> vector<2x256xf32>
    %121 = vector.broadcast %6 : vector<1x256xf32> to vector<2x256xf32>
    %122 = arith.mulf %120, %121 : vector<2x256xf32>
    %c255_i32_48 = arith.constant 255 : i32
    %123 = tpu.dynamic_rotate %119 by %c255_i32_48 dim 1 : vector<2x256xf32>, i32 -> vector<2x256xf32>
    %124 = vector.broadcast %7 : vector<1x256xf32> to vector<2x256xf32>
    %125 = arith.mulf %123, %124 : vector<2x256xf32>
    %c3 = arith.constant 3 : index
    %c0_49 = arith.constant 0 : index
    %c0_50 = arith.constant 0 : index
    %126 = vector.load %arg8[%c3, %c0_49, %c0_50] : memref<30x2x2xf32, #tpu.memory_space<vmem>>, vector<1x2x2xf32>
    %127 = vector.shape_cast %126 : vector<1x2x2xf32> to vector<2x2xf32>
    %cst_51 = arith.constant dense<0.000000e+00> : vector<2x256xf32>
    %128 = tpu.matmul %127, %122, %cst_51 {dimension_numbers = #tpu.dot_dimension_numbers<[1], [0], [0], [1], [0, 0, 1, 1], [], []>} : vector<2x2xf32>, vector<2x256xf32>, vector<2x256xf32> -> vector<2x256xf32>
    %c4 = arith.constant 4 : index
    %c0_52 = arith.constant 0 : index
    %c0_53 = arith.constant 0 : index
    %129 = vector.load %arg8[%c4, %c0_52, %c0_53] : memref<30x2x2xf32, #tpu.memory_space<vmem>>, vector<1x2x2xf32>
    %130 = vector.shape_cast %129 : vector<1x2x2xf32> to vector<2x2xf32>
    %cst_54 = arith.constant dense<0.000000e+00> : vector<2x256xf32>
    %131 = tpu.matmul %130, %119, %cst_54 {dimension_numbers = #tpu.dot_dimension_numbers<[1], [0], [0], [1], [0, 0, 1, 1], [], []>} : vector<2x2xf32>, vector<2x256xf32>, vector<2x256xf32> -> vector<2x256xf32>
    %132 = arith.addf %128, %131 : vector<2x256xf32>
    %c5 = arith.constant 5 : index
    %c0_55 = arith.constant 0 : index
    %c0_56 = arith.constant 0 : index
    %133 = vector.load %arg8[%c5, %c0_55, %c0_56] : memref<30x2x2xf32, #tpu.memory_space<vmem>>, vector<1x2x2xf32>
    %134 = vector.shape_cast %133 : vector<1x2x2xf32> to vector<2x2xf32>
    %cst_57 = arith.constant dense<0.000000e+00> : vector<2x256xf32>
    %135 = tpu.matmul %134, %125, %cst_57 {dimension_numbers = #tpu.dot_dimension_numbers<[1], [0], [0], [1], [0, 0, 1, 1], [], []>} : vector<2x2xf32>, vector<2x256xf32>, vector<2x256xf32> -> vector<2x256xf32>
    %136 = arith.addf %132, %135 : vector<2x256xf32>
    %c1_58 = arith.constant 1 : index
    %c0_59 = arith.constant 0 : index
    %c0_60 = arith.constant 0 : index
    %137 = vector.load %arg9[%c1_58, %c0_59, %c0_60] : memref<10x2x1xf32, #tpu.memory_space<vmem>>, vector<1x2x1xf32>
    %138 = vector.shape_cast %137 : vector<1x2x1xf32> to vector<2x1xf32>
    %139 = vector.broadcast %138 : vector<2x1xf32> to vector<2x256xf32>
    %140 = arith.addf %136, %139 : vector<2x256xf32>
    %cst_61 = arith.constant dense<0.000000e+00> : vector<2xf32>
    %141 = vector.multi_reduction <add>, %140, %cst_61 [1] : vector<2x256xf32> to vector<2xf32>
    %142 = vector.shape_cast %141 : vector<2xf32> to vector<2x1xf32>
    %cst_62 = arith.constant 2.560000e+02 : f32
    %143 = vector.broadcast %cst_62 : f32 to vector<2x1xf32>
    %144 = arith.divf %142, %143 : vector<2x1xf32>
    %145 = arith.mulf %140, %140 : vector<2x256xf32>
    %cst_63 = arith.constant dense<0.000000e+00> : vector<2xf32>
    %146 = vector.multi_reduction <add>, %145, %cst_63 [1] : vector<2x256xf32> to vector<2xf32>
    %147 = vector.shape_cast %146 : vector<2xf32> to vector<2x1xf32>
    %cst_64 = arith.constant 2.560000e+02 : f32
    %148 = vector.broadcast %cst_64 : f32 to vector<2x1xf32>
    %149 = arith.divf %147, %148 : vector<2x1xf32>
    %150 = arith.mulf %144, %144 : vector<2x1xf32>
    %151 = arith.subf %149, %150 : vector<2x1xf32>
    %cst_65 = arith.constant 0.000000e+00 : f32
    %152 = vector.broadcast %cst_65 : f32 to vector<2x1xf32>
    %153 = arith.maximumf %151, %152 : vector<2x1xf32>
    %154 = vector.broadcast %144 : vector<2x1xf32> to vector<2x256xf32>
    %155 = arith.subf %140, %154 : vector<2x256xf32>
    %cst_66 = arith.constant 9.99999974E-6 : f32
    %156 = vector.broadcast %cst_66 : f32 to vector<2x1xf32>
    %157 = arith.addf %153, %156 : vector<2x1xf32>
    %158 = math.rsqrt %157 : vector<2x1xf32>
    %159 = vector.broadcast %158 : vector<2x1xf32> to vector<2x256xf32>
    %160 = arith.mulf %155, %159 : vector<2x256xf32>
    %cst_67 = arith.constant 0.000000e+00 : f32
    %161 = vector.broadcast %cst_67 : f32 to vector<2x256xf32>
    %162 = arith.maximumf %160, %161 : vector<2x256xf32>
    %163 = arith.addf %72, %162 : vector<2x256xf32>
    %c1_i32_68 = arith.constant 1 : i32
    %164 = tpu.dynamic_rotate %163 by %c1_i32_68 dim 1 : vector<2x256xf32>, i32 -> vector<2x256xf32>
    %165 = vector.broadcast %6 : vector<1x256xf32> to vector<2x256xf32>
    %166 = arith.mulf %164, %165 : vector<2x256xf32>
    %c255_i32_69 = arith.constant 255 : i32
    %167 = tpu.dynamic_rotate %163 by %c255_i32_69 dim 1 : vector<2x256xf32>, i32 -> vector<2x256xf32>
    %168 = vector.broadcast %7 : vector<1x256xf32> to vector<2x256xf32>
    %169 = arith.mulf %167, %168 : vector<2x256xf32>
    %c6 = arith.constant 6 : index
    %c0_70 = arith.constant 0 : index
    %c0_71 = arith.constant 0 : index
    %170 = vector.load %arg8[%c6, %c0_70, %c0_71] : memref<30x2x2xf32, #tpu.memory_space<vmem>>, vector<1x2x2xf32>
    %171 = vector.shape_cast %170 : vector<1x2x2xf32> to vector<2x2xf32>
    %cst_72 = arith.constant dense<0.000000e+00> : vector<2x256xf32>
    %172 = tpu.matmul %171, %166, %cst_72 {dimension_numbers = #tpu.dot_dimension_numbers<[1], [0], [0], [1], [0, 0, 1, 1], [], []>} : vector<2x2xf32>, vector<2x256xf32>, vector<2x256xf32> -> vector<2x256xf32>
    %c7 = arith.constant 7 : index
    %c0_73 = arith.constant 0 : index
    %c0_74 = arith.constant 0 : index
    %173 = vector.load %arg8[%c7, %c0_73, %c0_74] : memref<30x2x2xf32, #tpu.memory_space<vmem>>, vector<1x2x2xf32>
    %174 = vector.shape_cast %173 : vector<1x2x2xf32> to vector<2x2xf32>
    %cst_75 = arith.constant dense<0.000000e+00> : vector<2x256xf32>
    %175 = tpu.matmul %174, %163, %cst_75 {dimension_numbers = #tpu.dot_dimension_numbers<[1], [0], [0], [1], [0, 0, 1, 1], [], []>} : vector<2x2xf32>, vector<2x256xf32>, vector<2x256xf32> -> vector<2x256xf32>
    %176 = arith.addf %172, %175 : vector<2x256xf32>
    %c8 = arith.constant 8 : index
    %c0_76 = arith.constant 0 : index
    %c0_77 = arith.constant 0 : index
    %177 = vector.load %arg8[%c8, %c0_76, %c0_77] : memref<30x2x2xf32, #tpu.memory_space<vmem>>, vector<1x2x2xf32>
    %178 = vector.shape_cast %177 : vector<1x2x2xf32> to vector<2x2xf32>
    %cst_78 = arith.constant dense<0.000000e+00> : vector<2x256xf32>
    %179 = tpu.matmul %178, %169, %cst_78 {dimension_numbers = #tpu.dot_dimension_numbers<[1], [0], [0], [1], [0, 0, 1, 1], [], []>} : vector<2x2xf32>, vector<2x256xf32>, vector<2x256xf32> -> vector<2x256xf32>
    %180 = arith.addf %176, %179 : vector<2x256xf32>
    %c2_79 = arith.constant 2 : index
    %c0_80 = arith.constant 0 : index
    %c0_81 = arith.constant 0 : index
    %181 = vector.load %arg9[%c2_79, %c0_80, %c0_81] : memref<10x2x1xf32, #tpu.memory_space<vmem>>, vector<1x2x1xf32>
    %182 = vector.shape_cast %181 : vector<1x2x1xf32> to vector<2x1xf32>
    %183 = vector.broadcast %182 : vector<2x1xf32> to vector<2x256xf32>
    %184 = arith.addf %180, %183 : vector<2x256xf32>
    %cst_82 = arith.constant dense<0.000000e+00> : vector<2xf32>
    %185 = vector.multi_reduction <add>, %184, %cst_82 [1] : vector<2x256xf32> to vector<2xf32>
    %186 = vector.shape_cast %185 : vector<2xf32> to vector<2x1xf32>
    %cst_83 = arith.constant 2.560000e+02 : f32
    %187 = vector.broadcast %cst_83 : f32 to vector<2x1xf32>
    %188 = arith.divf %186, %187 : vector<2x1xf32>
    %189 = arith.mulf %184, %184 : vector<2x256xf32>
    %cst_84 = arith.constant dense<0.000000e+00> : vector<2xf32>
    %190 = vector.multi_reduction <add>, %189, %cst_84 [1] : vector<2x256xf32> to vector<2xf32>
    %191 = vector.shape_cast %190 : vector<2xf32> to vector<2x1xf32>
    %cst_85 = arith.constant 2.560000e+02 : f32
    %192 = vector.broadcast %cst_85 : f32 to vector<2x1xf32>
    %193 = arith.divf %191, %192 : vector<2x1xf32>
    %194 = arith.mulf %188, %188 : vector<2x1xf32>
    %195 = arith.subf %193, %194 : vector<2x1xf32>
    %cst_86 = arith.constant 0.000000e+00 : f32
    %196 = vector.broadcast %cst_86 : f32 to vector<2x1xf32>
    %197 = arith.maximumf %195, %196 : vector<2x1xf32>
    %198 = vector.broadcast %188 : vector<2x1xf32> to vector<2x256xf32>
    %199 = arith.subf %184, %198 : vector<2x256xf32>
    %cst_87 = arith.constant 9.99999974E-6 : f32
    %200 = vector.broadcast %cst_87 : f32 to vector<2x1xf32>
    %201 = arith.addf %197, %200 : vector<2x1xf32>
    %202 = math.rsqrt %201 : vector<2x1xf32>
    %203 = vector.broadcast %202 : vector<2x1xf32> to vector<2x256xf32>
    %204 = arith.mulf %199, %203 : vector<2x256xf32>
    %cst_88 = arith.constant 0.000000e+00 : f32
    %205 = vector.broadcast %cst_88 : f32 to vector<2x256xf32>
    %206 = arith.maximumf %204, %205 : vector<2x256xf32>
    %207 = arith.addf %73, %206 : vector<2x256xf32>
    %c1_i32_89 = arith.constant 1 : i32
    %208 = tpu.dynamic_rotate %207 by %c1_i32_89 dim 1 : vector<2x256xf32>, i32 -> vector<2x256xf32>
    %209 = vector.broadcast %6 : vector<1x256xf32> to vector<2x256xf32>
    %210 = arith.mulf %208, %209 : vector<2x256xf32>
    %c255_i32_90 = arith.constant 255 : i32
    %211 = tpu.dynamic_rotate %207 by %c255_i32_90 dim 1 : vector<2x256xf32>, i32 -> vector<2x256xf32>
    %212 = vector.broadcast %7 : vector<1x256xf32> to vector<2x256xf32>
    %213 = arith.mulf %211, %212 : vector<2x256xf32>
    %c9 = arith.constant 9 : index
    %c0_91 = arith.constant 0 : index
    %c0_92 = arith.constant 0 : index
    %214 = vector.load %arg8[%c9, %c0_91, %c0_92] : memref<30x2x2xf32, #tpu.memory_space<vmem>>, vector<1x2x2xf32>
    %215 = vector.shape_cast %214 : vector<1x2x2xf32> to vector<2x2xf32>
    %cst_93 = arith.constant dense<0.000000e+00> : vector<2x256xf32>
    %216 = tpu.matmul %215, %210, %cst_93 {dimension_numbers = #tpu.dot_dimension_numbers<[1], [0], [0], [1], [0, 0, 1, 1], [], []>} : vector<2x2xf32>, vector<2x256xf32>, vector<2x256xf32> -> vector<2x256xf32>
    %c10 = arith.constant 10 : index
    %c0_94 = arith.constant 0 : index
    %c0_95 = arith.constant 0 : index
    %217 = vector.load %arg8[%c10, %c0_94, %c0_95] : memref<30x2x2xf32, #tpu.memory_space<vmem>>, vector<1x2x2xf32>
    %218 = vector.shape_cast %217 : vector<1x2x2xf32> to vector<2x2xf32>
    %cst_96 = arith.constant dense<0.000000e+00> : vector<2x256xf32>
    %219 = tpu.matmul %218, %207, %cst_96 {dimension_numbers = #tpu.dot_dimension_numbers<[1], [0], [0], [1], [0, 0, 1, 1], [], []>} : vector<2x2xf32>, vector<2x256xf32>, vector<2x256xf32> -> vector<2x256xf32>
    %220 = arith.addf %216, %219 : vector<2x256xf32>
    %c11 = arith.constant 11 : index
    %c0_97 = arith.constant 0 : index
    %c0_98 = arith.constant 0 : index
    %221 = vector.load %arg8[%c11, %c0_97, %c0_98] : memref<30x2x2xf32, #tpu.memory_space<vmem>>, vector<1x2x2xf32>
    %222 = vector.shape_cast %221 : vector<1x2x2xf32> to vector<2x2xf32>
    %cst_99 = arith.constant dense<0.000000e+00> : vector<2x256xf32>
    %223 = tpu.matmul %222, %213, %cst_99 {dimension_numbers = #tpu.dot_dimension_numbers<[1], [0], [0], [1], [0, 0, 1, 1], [], []>} : vector<2x2xf32>, vector<2x256xf32>, vector<2x256xf32> -> vector<2x256xf32>
    %224 = arith.addf %220, %223 : vector<2x256xf32>
    %c3_100 = arith.constant 3 : index
    %c0_101 = arith.constant 0 : index
    %c0_102 = arith.constant 0 : index
    %225 = vector.load %arg9[%c3_100, %c0_101, %c0_102] : memref<10x2x1xf32, #tpu.memory_space<vmem>>, vector<1x2x1xf32>
    %226 = vector.shape_cast %225 : vector<1x2x1xf32> to vector<2x1xf32>
    %227 = vector.broadcast %226 : vector<2x1xf32> to vector<2x256xf32>
    %228 = arith.addf %224, %227 : vector<2x256xf32>
    %cst_103 = arith.constant dense<0.000000e+00> : vector<2xf32>
    %229 = vector.multi_reduction <add>, %228, %cst_103 [1] : vector<2x256xf32> to vector<2xf32>
    %230 = vector.shape_cast %229 : vector<2xf32> to vector<2x1xf32>
    %cst_104 = arith.constant 2.560000e+02 : f32
    %231 = vector.broadcast %cst_104 : f32 to vector<2x1xf32>
    %232 = arith.divf %230, %231 : vector<2x1xf32>
    %233 = arith.mulf %228, %228 : vector<2x256xf32>
    %cst_105 = arith.constant dense<0.000000e+00> : vector<2xf32>
    %234 = vector.multi_reduction <add>, %233, %cst_105 [1] : vector<2x256xf32> to vector<2xf32>
    %235 = vector.shape_cast %234 : vector<2xf32> to vector<2x1xf32>
    %cst_106 = arith.constant 2.560000e+02 : f32
    %236 = vector.broadcast %cst_106 : f32 to vector<2x1xf32>
    %237 = arith.divf %235, %236 : vector<2x1xf32>
    %238 = arith.mulf %232, %232 : vector<2x1xf32>
    %239 = arith.subf %237, %238 : vector<2x1xf32>
    %cst_107 = arith.constant 0.000000e+00 : f32
    %240 = vector.broadcast %cst_107 : f32 to vector<2x1xf32>
    %241 = arith.maximumf %239, %240 : vector<2x1xf32>
    %242 = vector.broadcast %232 : vector<2x1xf32> to vector<2x256xf32>
    %243 = arith.subf %228, %242 : vector<2x256xf32>
    %cst_108 = arith.constant 9.99999974E-6 : f32
    %244 = vector.broadcast %cst_108 : f32 to vector<2x1xf32>
    %245 = arith.addf %241, %244 : vector<2x1xf32>
    %246 = math.rsqrt %245 : vector<2x1xf32>
    %247 = vector.broadcast %246 : vector<2x1xf32> to vector<2x256xf32>
    %248 = arith.mulf %243, %247 : vector<2x256xf32>
    %cst_109 = arith.constant 0.000000e+00 : f32
    %249 = vector.broadcast %cst_109 : f32 to vector<2x256xf32>
    %250 = arith.maximumf %248, %249 : vector<2x256xf32>
    %251 = arith.addf %74, %250 : vector<2x256xf32>
    %c1_i32_110 = arith.constant 1 : i32
    %252 = tpu.dynamic_rotate %251 by %c1_i32_110 dim 1 : vector<2x256xf32>, i32 -> vector<2x256xf32>
    %253 = vector.broadcast %6 : vector<1x256xf32> to vector<2x256xf32>
    %254 = arith.mulf %252, %253 : vector<2x256xf32>
    %c255_i32_111 = arith.constant 255 : i32
    %255 = tpu.dynamic_rotate %251 by %c255_i32_111 dim 1 : vector<2x256xf32>, i32 -> vector<2x256xf32>
    %256 = vector.broadcast %7 : vector<1x256xf32> to vector<2x256xf32>
    %257 = arith.mulf %255, %256 : vector<2x256xf32>
    %c12 = arith.constant 12 : index
    %c0_112 = arith.constant 0 : index
    %c0_113 = arith.constant 0 : index
    %258 = vector.load %arg8[%c12, %c0_112, %c0_113] : memref<30x2x2xf32, #tpu.memory_space<vmem>>, vector<1x2x2xf32>
    %259 = vector.shape_cast %258 : vector<1x2x2xf32> to vector<2x2xf32>
    %cst_114 = arith.constant dense<0.000000e+00> : vector<2x256xf32>
    %260 = tpu.matmul %259, %254, %cst_114 {dimension_numbers = #tpu.dot_dimension_numbers<[1], [0], [0], [1], [0, 0, 1, 1], [], []>} : vector<2x2xf32>, vector<2x256xf32>, vector<2x256xf32> -> vector<2x256xf32>
    %c13 = arith.constant 13 : index
    %c0_115 = arith.constant 0 : index
    %c0_116 = arith.constant 0 : index
    %261 = vector.load %arg8[%c13, %c0_115, %c0_116] : memref<30x2x2xf32, #tpu.memory_space<vmem>>, vector<1x2x2xf32>
    %262 = vector.shape_cast %261 : vector<1x2x2xf32> to vector<2x2xf32>
    %cst_117 = arith.constant dense<0.000000e+00> : vector<2x256xf32>
    %263 = tpu.matmul %262, %251, %cst_117 {dimension_numbers = #tpu.dot_dimension_numbers<[1], [0], [0], [1], [0, 0, 1, 1], [], []>} : vector<2x2xf32>, vector<2x256xf32>, vector<2x256xf32> -> vector<2x256xf32>
    %264 = arith.addf %260, %263 : vector<2x256xf32>
    %c14 = arith.constant 14 : index
    %c0_118 = arith.constant 0 : index
    %c0_119 = arith.constant 0 : index
    %265 = vector.load %arg8[%c14, %c0_118, %c0_119] : memref<30x2x2xf32, #tpu.memory_space<vmem>>, vector<1x2x2xf32>
    %266 = vector.shape_cast %265 : vector<1x2x2xf32> to vector<2x2xf32>
    %cst_120 = arith.constant dense<0.000000e+00> : vector<2x256xf32>
    %267 = tpu.matmul %266, %257, %cst_120 {dimension_numbers = #tpu.dot_dimension_numbers<[1], [0], [0], [1], [0, 0, 1, 1], [], []>} : vector<2x2xf32>, vector<2x256xf32>, vector<2x256xf32> -> vector<2x256xf32>
    %268 = arith.addf %264, %267 : vector<2x256xf32>
    %c4_121 = arith.constant 4 : index
    %c0_122 = arith.constant 0 : index
    %c0_123 = arith.constant 0 : index
    %269 = vector.load %arg9[%c4_121, %c0_122, %c0_123] : memref<10x2x1xf32, #tpu.memory_space<vmem>>, vector<1x2x1xf32>
    %270 = vector.shape_cast %269 : vector<1x2x1xf32> to vector<2x1xf32>
    %271 = vector.broadcast %270 : vector<2x1xf32> to vector<2x256xf32>
    %272 = arith.addf %268, %271 : vector<2x256xf32>
    %cst_124 = arith.constant dense<0.000000e+00> : vector<2xf32>
    %273 = vector.multi_reduction <add>, %272, %cst_124 [1] : vector<2x256xf32> to vector<2xf32>
    %274 = vector.shape_cast %273 : vector<2xf32> to vector<2x1xf32>
    %cst_125 = arith.constant 2.560000e+02 : f32
    %275 = vector.broadcast %cst_125 : f32 to vector<2x1xf32>
    %276 = arith.divf %274, %275 : vector<2x1xf32>
    %277 = arith.mulf %272, %272 : vector<2x256xf32>
    %cst_126 = arith.constant dense<0.000000e+00> : vector<2xf32>
    %278 = vector.multi_reduction <add>, %277, %cst_126 [1] : vector<2x256xf32> to vector<2xf32>
    %279 = vector.shape_cast %278 : vector<2xf32> to vector<2x1xf32>
    %cst_127 = arith.constant 2.560000e+02 : f32
    %280 = vector.broadcast %cst_127 : f32 to vector<2x1xf32>
    %281 = arith.divf %279, %280 : vector<2x1xf32>
    %282 = arith.mulf %276, %276 : vector<2x1xf32>
    %283 = arith.subf %281, %282 : vector<2x1xf32>
    %cst_128 = arith.constant 0.000000e+00 : f32
    %284 = vector.broadcast %cst_128 : f32 to vector<2x1xf32>
    %285 = arith.maximumf %283, %284 : vector<2x1xf32>
    %286 = vector.broadcast %276 : vector<2x1xf32> to vector<2x256xf32>
    %287 = arith.subf %272, %286 : vector<2x256xf32>
    %cst_129 = arith.constant 9.99999974E-6 : f32
    %288 = vector.broadcast %cst_129 : f32 to vector<2x1xf32>
    %289 = arith.addf %285, %288 : vector<2x1xf32>
    %290 = math.rsqrt %289 : vector<2x1xf32>
    %291 = vector.broadcast %290 : vector<2x1xf32> to vector<2x256xf32>
    %292 = arith.mulf %287, %291 : vector<2x256xf32>
    %cst_130 = arith.constant 0.000000e+00 : f32
    %293 = vector.broadcast %cst_130 : f32 to vector<2x256xf32>
    %294 = arith.maximumf %292, %293 : vector<2x256xf32>
    %295 = arith.addf %69, %118 : vector<2x256xf32>
    %296 = arith.addf %295, %162 : vector<2x256xf32>
    %297 = arith.addf %296, %206 : vector<2x256xf32>
    %298 = arith.addf %297, %250 : vector<2x256xf32>
    %299 = arith.addf %298, %294 : vector<2x256xf32>
    %cst_131 = arith.constant dense<0.000000e+00> : vector<2xf32>
    %300 = vector.multi_reduction <add>, %299, %cst_131 [1] : vector<2x256xf32> to vector<2xf32>
    %301 = vector.shape_cast %300 : vector<2xf32> to vector<2x1xf32>
    %cst_132 = arith.constant 2.560000e+02 : f32
    %302 = vector.broadcast %cst_132 : f32 to vector<2x1xf32>
    %303 = arith.divf %301, %302 : vector<2x1xf32>
    %c0_133 = arith.constant 0 : index
    %c0_134 = arith.constant 0 : index
    %304 = vector.load %arg14[%c0_133, %c0_134] : memref<12x2xf32, #tpu.memory_space<vmem>>, vector<12x2xf32>
    %cst_135 = arith.constant dense<0.000000e+00> : vector<12x1xf32>
    %305 = tpu.matmul %304, %303, %cst_135 {dimension_numbers = #tpu.dot_dimension_numbers<[1], [0], [0], [1], [0, 0, 1, 1], [], []>} : vector<12x2xf32>, vector<2x1xf32>, vector<12x1xf32> -> vector<12x1xf32>
    %c0_136 = arith.constant 0 : index
    %c0_137 = arith.constant 0 : index
    %306 = vector.load %arg15[%c0_136, %c0_137] : memref<12x1xf32, #tpu.memory_space<vmem>>, vector<12x1xf32>
    %307 = arith.addf %305, %306 : vector<12x1xf32>
    %c0_138 = arith.constant 0 : index
    %c0_139 = arith.constant 0 : index
    %c0_140 = arith.constant 0 : index
    %308 = vector.load %arg16[%c0_138, %c0_139, %c0_140] : memref<6x2x12xf32, #tpu.memory_space<vmem>>, vector<1x2x12xf32>
    %309 = vector.shape_cast %308 : vector<1x2x12xf32> to vector<2x12xf32>
    %cst_141 = arith.constant dense<0.000000e+00> : vector<2x1xf32>
    %310 = tpu.matmul %309, %307, %cst_141 {dimension_numbers = #tpu.dot_dimension_numbers<[1], [0], [0], [1], [0, 0, 1, 1], [], []>} : vector<2x12xf32>, vector<12x1xf32>, vector<2x1xf32> -> vector<2x1xf32>
    %c0_142 = arith.constant 0 : index
    %c0_143 = arith.constant 0 : index
    %c0_144 = arith.constant 0 : index
    %311 = vector.load %arg17[%c0_142, %c0_143, %c0_144] : memref<6x2x1xf32, #tpu.memory_space<vmem>>, vector<1x2x1xf32>
    %312 = vector.shape_cast %311 : vector<1x2x1xf32> to vector<2x1xf32>
    %313 = arith.addf %310, %312 : vector<2x1xf32>
    %c1_145 = arith.constant 1 : index
    %c0_146 = arith.constant 0 : index
    %c0_147 = arith.constant 0 : index
    %314 = vector.load %arg16[%c1_145, %c0_146, %c0_147] : memref<6x2x12xf32, #tpu.memory_space<vmem>>, vector<1x2x12xf32>
    %315 = vector.shape_cast %314 : vector<1x2x12xf32> to vector<2x12xf32>
    %cst_148 = arith.constant dense<0.000000e+00> : vector<2x1xf32>
    %316 = tpu.matmul %315, %307, %cst_148 {dimension_numbers = #tpu.dot_dimension_numbers<[1], [0], [0], [1], [0, 0, 1, 1], [], []>} : vector<2x12xf32>, vector<12x1xf32>, vector<2x1xf32> -> vector<2x1xf32>
    %c1_149 = arith.constant 1 : index
    %c0_150 = arith.constant 0 : index
    %c0_151 = arith.constant 0 : index
    %317 = vector.load %arg17[%c1_149, %c0_150, %c0_151] : memref<6x2x1xf32, #tpu.memory_space<vmem>>, vector<1x2x1xf32>
    %318 = vector.shape_cast %317 : vector<1x2x1xf32> to vector<2x1xf32>
    %319 = arith.addf %316, %318 : vector<2x1xf32>
    %c2_152 = arith.constant 2 : index
    %c0_153 = arith.constant 0 : index
    %c0_154 = arith.constant 0 : index
    %320 = vector.load %arg16[%c2_152, %c0_153, %c0_154] : memref<6x2x12xf32, #tpu.memory_space<vmem>>, vector<1x2x12xf32>
    %321 = vector.shape_cast %320 : vector<1x2x12xf32> to vector<2x12xf32>
    %cst_155 = arith.constant dense<0.000000e+00> : vector<2x1xf32>
    %322 = tpu.matmul %321, %307, %cst_155 {dimension_numbers = #tpu.dot_dimension_numbers<[1], [0], [0], [1], [0, 0, 1, 1], [], []>} : vector<2x12xf32>, vector<12x1xf32>, vector<2x1xf32> -> vector<2x1xf32>
    %c2_156 = arith.constant 2 : index
    %c0_157 = arith.constant 0 : index
    %c0_158 = arith.constant 0 : index
    %323 = vector.load %arg17[%c2_156, %c0_157, %c0_158] : memref<6x2x1xf32, #tpu.memory_space<vmem>>, vector<1x2x1xf32>
    %324 = vector.shape_cast %323 : vector<1x2x1xf32> to vector<2x1xf32>
    %325 = arith.addf %322, %324 : vector<2x1xf32>
    %c3_159 = arith.constant 3 : index
    %c0_160 = arith.constant 0 : index
    %c0_161 = arith.constant 0 : index
    %326 = vector.load %arg16[%c3_159, %c0_160, %c0_161] : memref<6x2x12xf32, #tpu.memory_space<vmem>>, vector<1x2x12xf32>
    %327 = vector.shape_cast %326 : vector<1x2x12xf32> to vector<2x12xf32>
    %cst_162 = arith.constant dense<0.000000e+00> : vector<2x1xf32>
    %328 = tpu.matmul %327, %307, %cst_162 {dimension_numbers = #tpu.dot_dimension_numbers<[1], [0], [0], [1], [0, 0, 1, 1], [], []>} : vector<2x12xf32>, vector<12x1xf32>, vector<2x1xf32> -> vector<2x1xf32>
    %c3_163 = arith.constant 3 : index
    %c0_164 = arith.constant 0 : index
    %c0_165 = arith.constant 0 : index
    %329 = vector.load %arg17[%c3_163, %c0_164, %c0_165] : memref<6x2x1xf32, #tpu.memory_space<vmem>>, vector<1x2x1xf32>
    %330 = vector.shape_cast %329 : vector<1x2x1xf32> to vector<2x1xf32>
    %331 = arith.addf %328, %330 : vector<2x1xf32>
    %c4_166 = arith.constant 4 : index
    %c0_167 = arith.constant 0 : index
    %c0_168 = arith.constant 0 : index
    %332 = vector.load %arg16[%c4_166, %c0_167, %c0_168] : memref<6x2x12xf32, #tpu.memory_space<vmem>>, vector<1x2x12xf32>
    %333 = vector.shape_cast %332 : vector<1x2x12xf32> to vector<2x12xf32>
    %cst_169 = arith.constant dense<0.000000e+00> : vector<2x1xf32>
    %334 = tpu.matmul %333, %307, %cst_169 {dimension_numbers = #tpu.dot_dimension_numbers<[1], [0], [0], [1], [0, 0, 1, 1], [], []>} : vector<2x12xf32>, vector<12x1xf32>, vector<2x1xf32> -> vector<2x1xf32>
    %c4_170 = arith.constant 4 : index
    %c0_171 = arith.constant 0 : index
    %c0_172 = arith.constant 0 : index
    %335 = vector.load %arg17[%c4_170, %c0_171, %c0_172] : memref<6x2x1xf32, #tpu.memory_space<vmem>>, vector<1x2x1xf32>
    %336 = vector.shape_cast %335 : vector<1x2x1xf32> to vector<2x1xf32>
    %337 = arith.addf %334, %336 : vector<2x1xf32>
    %c5_173 = arith.constant 5 : index
    %c0_174 = arith.constant 0 : index
    %c0_175 = arith.constant 0 : index
    %338 = vector.load %arg16[%c5_173, %c0_174, %c0_175] : memref<6x2x12xf32, #tpu.memory_space<vmem>>, vector<1x2x12xf32>
    %339 = vector.shape_cast %338 : vector<1x2x12xf32> to vector<2x12xf32>
    %cst_176 = arith.constant dense<0.000000e+00> : vector<2x1xf32>
    %340 = tpu.matmul %339, %307, %cst_176 {dimension_numbers = #tpu.dot_dimension_numbers<[1], [0], [0], [1], [0, 0, 1, 1], [], []>} : vector<2x12xf32>, vector<12x1xf32>, vector<2x1xf32> -> vector<2x1xf32>
    %c5_177 = arith.constant 5 : index
    %c0_178 = arith.constant 0 : index
    %c0_179 = arith.constant 0 : index
    %341 = vector.load %arg17[%c5_177, %c0_178, %c0_179] : memref<6x2x1xf32, #tpu.memory_space<vmem>>, vector<1x2x1xf32>
    %342 = vector.shape_cast %341 : vector<1x2x1xf32> to vector<2x1xf32>
    %343 = arith.addf %340, %342 : vector<2x1xf32>
    %344 = arith.maximumf %313, %319 : vector<2x1xf32>
    %345 = arith.maximumf %344, %325 : vector<2x1xf32>
    %346 = arith.maximumf %345, %331 : vector<2x1xf32>
    %347 = arith.maximumf %346, %337 : vector<2x1xf32>
    %348 = arith.maximumf %347, %343 : vector<2x1xf32>
    %349 = arith.subf %313, %348 : vector<2x1xf32>
    %350 = math.exp %349 : vector<2x1xf32>
    %351 = arith.subf %319, %348 : vector<2x1xf32>
    %352 = math.exp %351 : vector<2x1xf32>
    %353 = arith.subf %325, %348 : vector<2x1xf32>
    %354 = math.exp %353 : vector<2x1xf32>
    %355 = arith.subf %331, %348 : vector<2x1xf32>
    %356 = math.exp %355 : vector<2x1xf32>
    %357 = arith.subf %337, %348 : vector<2x1xf32>
    %358 = math.exp %357 : vector<2x1xf32>
    %359 = arith.subf %343, %348 : vector<2x1xf32>
    %360 = math.exp %359 : vector<2x1xf32>
    %361 = arith.addf %350, %352 : vector<2x1xf32>
    %362 = arith.addf %361, %354 : vector<2x1xf32>
    %363 = arith.addf %362, %356 : vector<2x1xf32>
    %364 = arith.addf %363, %358 : vector<2x1xf32>
    %365 = arith.addf %364, %360 : vector<2x1xf32>
    %366 = arith.divf %350, %365 : vector<2x1xf32>
    %367 = arith.divf %352, %365 : vector<2x1xf32>
    %368 = arith.divf %354, %365 : vector<2x1xf32>
    %369 = arith.divf %356, %365 : vector<2x1xf32>
    %370 = arith.divf %358, %365 : vector<2x1xf32>
    %371 = arith.divf %360, %365 : vector<2x1xf32>
    %c0_180 = arith.constant 0 : index
    %c0_181 = arith.constant 0 : index
    %c0_182 = arith.constant 0 : index
    %372 = vector.load %arg10[%c0_180, %c0_181, %c0_182] : memref<6x12x2xf32, #tpu.memory_space<vmem>>, vector<1x12x2xf32>
    %373 = vector.shape_cast %372 : vector<1x12x2xf32> to vector<12x2xf32>
    %374 = vector.broadcast %366 : vector<2x1xf32> to vector<2x256xf32>
    %375 = arith.mulf %69, %374 : vector<2x256xf32>
    %cst_183 = arith.constant dense<0.000000e+00> : vector<12x256xf32>
    %376 = tpu.matmul %373, %375, %cst_183 {dimension_numbers = #tpu.dot_dimension_numbers<[1], [0], [0], [1], [0, 0, 1, 1], [], []>} : vector<12x2xf32>, vector<2x256xf32>, vector<12x256xf32> -> vector<12x256xf32>
    %c1_184 = arith.constant 1 : index
    %c0_185 = arith.constant 0 : index
    %c0_186 = arith.constant 0 : index
    %377 = vector.load %arg10[%c1_184, %c0_185, %c0_186] : memref<6x12x2xf32, #tpu.memory_space<vmem>>, vector<1x12x2xf32>
    %378 = vector.shape_cast %377 : vector<1x12x2xf32> to vector<12x2xf32>
    %379 = vector.broadcast %367 : vector<2x1xf32> to vector<2x256xf32>
    %380 = arith.mulf %118, %379 : vector<2x256xf32>
    %cst_187 = arith.constant dense<0.000000e+00> : vector<12x256xf32>
    %381 = tpu.matmul %378, %380, %cst_187 {dimension_numbers = #tpu.dot_dimension_numbers<[1], [0], [0], [1], [0, 0, 1, 1], [], []>} : vector<12x2xf32>, vector<2x256xf32>, vector<12x256xf32> -> vector<12x256xf32>
    %382 = arith.addf %376, %381 : vector<12x256xf32>
    %c2_188 = arith.constant 2 : index
    %c0_189 = arith.constant 0 : index
    %c0_190 = arith.constant 0 : index
    %383 = vector.load %arg10[%c2_188, %c0_189, %c0_190] : memref<6x12x2xf32, #tpu.memory_space<vmem>>, vector<1x12x2xf32>
    %384 = vector.shape_cast %383 : vector<1x12x2xf32> to vector<12x2xf32>
    %385 = vector.broadcast %368 : vector<2x1xf32> to vector<2x256xf32>
    %386 = arith.mulf %162, %385 : vector<2x256xf32>
    %cst_191 = arith.constant dense<0.000000e+00> : vector<12x256xf32>
    %387 = tpu.matmul %384, %386, %cst_191 {dimension_numbers = #tpu.dot_dimension_numbers<[1], [0], [0], [1], [0, 0, 1, 1], [], []>} : vector<12x2xf32>, vector<2x256xf32>, vector<12x256xf32> -> vector<12x256xf32>
    %388 = arith.addf %382, %387 : vector<12x256xf32>
    %c3_192 = arith.constant 3 : index
    %c0_193 = arith.constant 0 : index
    %c0_194 = arith.constant 0 : index
    %389 = vector.load %arg10[%c3_192, %c0_193, %c0_194] : memref<6x12x2xf32, #tpu.memory_space<vmem>>, vector<1x12x2xf32>
    %390 = vector.shape_cast %389 : vector<1x12x2xf32> to vector<12x2xf32>
    %391 = vector.broadcast %369 : vector<2x1xf32> to vector<2x256xf32>
    %392 = arith.mulf %206, %391 : vector<2x256xf32>
    %cst_195 = arith.constant dense<0.000000e+00> : vector<12x256xf32>
    %393 = tpu.matmul %390, %392, %cst_195 {dimension_numbers = #tpu.dot_dimension_numbers<[1], [0], [0], [1], [0, 0, 1, 1], [], []>} : vector<12x2xf32>, vector<2x256xf32>, vector<12x256xf32> -> vector<12x256xf32>
    %394 = arith.addf %388, %393 : vector<12x256xf32>
    %c4_196 = arith.constant 4 : index
    %c0_197 = arith.constant 0 : index
    %c0_198 = arith.constant 0 : index
    %395 = vector.load %arg10[%c4_196, %c0_197, %c0_198] : memref<6x12x2xf32, #tpu.memory_space<vmem>>, vector<1x12x2xf32>
    %396 = vector.shape_cast %395 : vector<1x12x2xf32> to vector<12x2xf32>
    %397 = vector.broadcast %370 : vector<2x1xf32> to vector<2x256xf32>
    %398 = arith.mulf %250, %397 : vector<2x256xf32>
    %cst_199 = arith.constant dense<0.000000e+00> : vector<12x256xf32>
    %399 = tpu.matmul %396, %398, %cst_199 {dimension_numbers = #tpu.dot_dimension_numbers<[1], [0], [0], [1], [0, 0, 1, 1], [], []>} : vector<12x2xf32>, vector<2x256xf32>, vector<12x256xf32> -> vector<12x256xf32>
    %400 = arith.addf %394, %399 : vector<12x256xf32>
    %c5_200 = arith.constant 5 : index
    %c0_201 = arith.constant 0 : index
    %c0_202 = arith.constant 0 : index
    %401 = vector.load %arg10[%c5_200, %c0_201, %c0_202] : memref<6x12x2xf32, #tpu.memory_space<vmem>>, vector<1x12x2xf32>
    %402 = vector.shape_cast %401 : vector<1x12x2xf32> to vector<12x2xf32>
    %403 = vector.broadcast %371 : vector<2x1xf32> to vector<2x256xf32>
    %404 = arith.mulf %294, %403 : vector<2x256xf32>
    %cst_203 = arith.constant dense<0.000000e+00> : vector<12x256xf32>
    %405 = tpu.matmul %402, %404, %cst_203 {dimension_numbers = #tpu.dot_dimension_numbers<[1], [0], [0], [1], [0, 0, 1, 1], [], []>} : vector<12x2xf32>, vector<2x256xf32>, vector<12x256xf32> -> vector<12x256xf32>
    %406 = arith.addf %400, %405 : vector<12x256xf32>
    %c0_204 = arith.constant 0 : index
    %c0_205 = arith.constant 0 : index
    %407 = vector.load %arg11[%c0_204, %c0_205] : memref<12x1xf32, #tpu.memory_space<vmem>>, vector<12x1xf32>
    %408 = vector.broadcast %407 : vector<12x1xf32> to vector<12x256xf32>
    %409 = arith.addf %406, %408 : vector<12x256xf32>
    %410 = vector.extract_strided_slice %409 {offsets = [0, 0], sizes = [2, 256], strides = [1, 1]} : vector<12x256xf32> to vector<2x256xf32>
    %411 = vector.extract_strided_slice %409 {offsets = [2, 0], sizes = [2, 256], strides = [1, 1]} : vector<12x256xf32> to vector<2x256xf32>
    %412 = vector.extract_strided_slice %409 {offsets = [4, 0], sizes = [2, 256], strides = [1, 1]} : vector<12x256xf32> to vector<2x256xf32>
    %413 = vector.extract_strided_slice %409 {offsets = [6, 0], sizes = [2, 256], strides = [1, 1]} : vector<12x256xf32> to vector<2x256xf32>
    %414 = vector.extract_strided_slice %409 {offsets = [8, 0], sizes = [2, 256], strides = [1, 1]} : vector<12x256xf32> to vector<2x256xf32>
    %415 = vector.extract_strided_slice %409 {offsets = [10, 0], sizes = [2, 256], strides = [1, 1]} : vector<12x256xf32> to vector<2x256xf32>
    %416 = arith.addf %411, %410 : vector<2x256xf32>
    %c16_i32_206 = arith.constant 16 : i32
    %417 = tpu.dynamic_rotate %416 by %c16_i32_206 dim 1 : vector<2x256xf32>, i32 -> vector<2x256xf32>
    %418 = vector.broadcast %8 : vector<1x256xf32> to vector<2x256xf32>
    %419 = arith.mulf %417, %418 : vector<2x256xf32>
    %c240_i32_207 = arith.constant 240 : i32
    %420 = tpu.dynamic_rotate %416 by %c240_i32_207 dim 1 : vector<2x256xf32>, i32 -> vector<2x256xf32>
    %421 = vector.broadcast %9 : vector<1x256xf32> to vector<2x256xf32>
    %422 = arith.mulf %420, %421 : vector<2x256xf32>
    %c15 = arith.constant 15 : index
    %c0_208 = arith.constant 0 : index
    %c0_209 = arith.constant 0 : index
    %423 = vector.load %arg8[%c15, %c0_208, %c0_209] : memref<30x2x2xf32, #tpu.memory_space<vmem>>, vector<1x2x2xf32>
    %424 = vector.shape_cast %423 : vector<1x2x2xf32> to vector<2x2xf32>
    %cst_210 = arith.constant dense<0.000000e+00> : vector<2x256xf32>
    %425 = tpu.matmul %424, %419, %cst_210 {dimension_numbers = #tpu.dot_dimension_numbers<[1], [0], [0], [1], [0, 0, 1, 1], [], []>} : vector<2x2xf32>, vector<2x256xf32>, vector<2x256xf32> -> vector<2x256xf32>
    %c16 = arith.constant 16 : index
    %c0_211 = arith.constant 0 : index
    %c0_212 = arith.constant 0 : index
    %426 = vector.load %arg8[%c16, %c0_211, %c0_212] : memref<30x2x2xf32, #tpu.memory_space<vmem>>, vector<1x2x2xf32>
    %427 = vector.shape_cast %426 : vector<1x2x2xf32> to vector<2x2xf32>
    %cst_213 = arith.constant dense<0.000000e+00> : vector<2x256xf32>
    %428 = tpu.matmul %427, %416, %cst_213 {dimension_numbers = #tpu.dot_dimension_numbers<[1], [0], [0], [1], [0, 0, 1, 1], [], []>} : vector<2x2xf32>, vector<2x256xf32>, vector<2x256xf32> -> vector<2x256xf32>
    %429 = arith.addf %425, %428 : vector<2x256xf32>
    %c17 = arith.constant 17 : index
    %c0_214 = arith.constant 0 : index
    %c0_215 = arith.constant 0 : index
    %430 = vector.load %arg8[%c17, %c0_214, %c0_215] : memref<30x2x2xf32, #tpu.memory_space<vmem>>, vector<1x2x2xf32>
    %431 = vector.shape_cast %430 : vector<1x2x2xf32> to vector<2x2xf32>
    %cst_216 = arith.constant dense<0.000000e+00> : vector<2x256xf32>
    %432 = tpu.matmul %431, %422, %cst_216 {dimension_numbers = #tpu.dot_dimension_numbers<[1], [0], [0], [1], [0, 0, 1, 1], [], []>} : vector<2x2xf32>, vector<2x256xf32>, vector<2x256xf32> -> vector<2x256xf32>
    %433 = arith.addf %429, %432 : vector<2x256xf32>
    %c5_217 = arith.constant 5 : index
    %c0_218 = arith.constant 0 : index
    %c0_219 = arith.constant 0 : index
    %434 = vector.load %arg9[%c5_217, %c0_218, %c0_219] : memref<10x2x1xf32, #tpu.memory_space<vmem>>, vector<1x2x1xf32>
    %435 = vector.shape_cast %434 : vector<1x2x1xf32> to vector<2x1xf32>
    %436 = vector.broadcast %435 : vector<2x1xf32> to vector<2x256xf32>
    %437 = arith.addf %433, %436 : vector<2x256xf32>
    %cst_220 = arith.constant dense<0.000000e+00> : vector<2xf32>
    %438 = vector.multi_reduction <add>, %437, %cst_220 [1] : vector<2x256xf32> to vector<2xf32>
    %439 = vector.shape_cast %438 : vector<2xf32> to vector<2x1xf32>
    %cst_221 = arith.constant 2.560000e+02 : f32
    %440 = vector.broadcast %cst_221 : f32 to vector<2x1xf32>
    %441 = arith.divf %439, %440 : vector<2x1xf32>
    %442 = arith.mulf %437, %437 : vector<2x256xf32>
    %cst_222 = arith.constant dense<0.000000e+00> : vector<2xf32>
    %443 = vector.multi_reduction <add>, %442, %cst_222 [1] : vector<2x256xf32> to vector<2xf32>
    %444 = vector.shape_cast %443 : vector<2xf32> to vector<2x1xf32>
    %cst_223 = arith.constant 2.560000e+02 : f32
    %445 = vector.broadcast %cst_223 : f32 to vector<2x1xf32>
    %446 = arith.divf %444, %445 : vector<2x1xf32>
    %447 = arith.mulf %441, %441 : vector<2x1xf32>
    %448 = arith.subf %446, %447 : vector<2x1xf32>
    %cst_224 = arith.constant 0.000000e+00 : f32
    %449 = vector.broadcast %cst_224 : f32 to vector<2x1xf32>
    %450 = arith.maximumf %448, %449 : vector<2x1xf32>
    %451 = vector.broadcast %441 : vector<2x1xf32> to vector<2x256xf32>
    %452 = arith.subf %437, %451 : vector<2x256xf32>
    %cst_225 = arith.constant 9.99999974E-6 : f32
    %453 = vector.broadcast %cst_225 : f32 to vector<2x1xf32>
    %454 = arith.addf %450, %453 : vector<2x1xf32>
    %455 = math.rsqrt %454 : vector<2x1xf32>
    %456 = vector.broadcast %455 : vector<2x1xf32> to vector<2x256xf32>
    %457 = arith.mulf %452, %456 : vector<2x256xf32>
    %cst_226 = arith.constant 0.000000e+00 : f32
    %458 = vector.broadcast %cst_226 : f32 to vector<2x256xf32>
    %459 = arith.maximumf %457, %458 : vector<2x256xf32>
    %460 = arith.addf %459, %412 : vector<2x256xf32>
    %c16_i32_227 = arith.constant 16 : i32
    %461 = tpu.dynamic_rotate %460 by %c16_i32_227 dim 1 : vector<2x256xf32>, i32 -> vector<2x256xf32>
    %462 = vector.broadcast %8 : vector<1x256xf32> to vector<2x256xf32>
    %463 = arith.mulf %461, %462 : vector<2x256xf32>
    %c240_i32_228 = arith.constant 240 : i32
    %464 = tpu.dynamic_rotate %460 by %c240_i32_228 dim 1 : vector<2x256xf32>, i32 -> vector<2x256xf32>
    %465 = vector.broadcast %9 : vector<1x256xf32> to vector<2x256xf32>
    %466 = arith.mulf %464, %465 : vector<2x256xf32>
    %c18 = arith.constant 18 : index
    %c0_229 = arith.constant 0 : index
    %c0_230 = arith.constant 0 : index
    %467 = vector.load %arg8[%c18, %c0_229, %c0_230] : memref<30x2x2xf32, #tpu.memory_space<vmem>>, vector<1x2x2xf32>
    %468 = vector.shape_cast %467 : vector<1x2x2xf32> to vector<2x2xf32>
    %cst_231 = arith.constant dense<0.000000e+00> : vector<2x256xf32>
    %469 = tpu.matmul %468, %463, %cst_231 {dimension_numbers = #tpu.dot_dimension_numbers<[1], [0], [0], [1], [0, 0, 1, 1], [], []>} : vector<2x2xf32>, vector<2x256xf32>, vector<2x256xf32> -> vector<2x256xf32>
    %c19 = arith.constant 19 : index
    %c0_232 = arith.constant 0 : index
    %c0_233 = arith.constant 0 : index
    %470 = vector.load %arg8[%c19, %c0_232, %c0_233] : memref<30x2x2xf32, #tpu.memory_space<vmem>>, vector<1x2x2xf32>
    %471 = vector.shape_cast %470 : vector<1x2x2xf32> to vector<2x2xf32>
    %cst_234 = arith.constant dense<0.000000e+00> : vector<2x256xf32>
    %472 = tpu.matmul %471, %460, %cst_234 {dimension_numbers = #tpu.dot_dimension_numbers<[1], [0], [0], [1], [0, 0, 1, 1], [], []>} : vector<2x2xf32>, vector<2x256xf32>, vector<2x256xf32> -> vector<2x256xf32>
    %473 = arith.addf %469, %472 : vector<2x256xf32>
    %c20 = arith.constant 20 : index
    %c0_235 = arith.constant 0 : index
    %c0_236 = arith.constant 0 : index
    %474 = vector.load %arg8[%c20, %c0_235, %c0_236] : memref<30x2x2xf32, #tpu.memory_space<vmem>>, vector<1x2x2xf32>
    %475 = vector.shape_cast %474 : vector<1x2x2xf32> to vector<2x2xf32>
    %cst_237 = arith.constant dense<0.000000e+00> : vector<2x256xf32>
    %476 = tpu.matmul %475, %466, %cst_237 {dimension_numbers = #tpu.dot_dimension_numbers<[1], [0], [0], [1], [0, 0, 1, 1], [], []>} : vector<2x2xf32>, vector<2x256xf32>, vector<2x256xf32> -> vector<2x256xf32>
    %477 = arith.addf %473, %476 : vector<2x256xf32>
    %c6_238 = arith.constant 6 : index
    %c0_239 = arith.constant 0 : index
    %c0_240 = arith.constant 0 : index
    %478 = vector.load %arg9[%c6_238, %c0_239, %c0_240] : memref<10x2x1xf32, #tpu.memory_space<vmem>>, vector<1x2x1xf32>
    %479 = vector.shape_cast %478 : vector<1x2x1xf32> to vector<2x1xf32>
    %480 = vector.broadcast %479 : vector<2x1xf32> to vector<2x256xf32>
    %481 = arith.addf %477, %480 : vector<2x256xf32>
    %cst_241 = arith.constant dense<0.000000e+00> : vector<2xf32>
    %482 = vector.multi_reduction <add>, %481, %cst_241 [1] : vector<2x256xf32> to vector<2xf32>
    %483 = vector.shape_cast %482 : vector<2xf32> to vector<2x1xf32>
    %cst_242 = arith.constant 2.560000e+02 : f32
    %484 = vector.broadcast %cst_242 : f32 to vector<2x1xf32>
    %485 = arith.divf %483, %484 : vector<2x1xf32>
    %486 = arith.mulf %481, %481 : vector<2x256xf32>
    %cst_243 = arith.constant dense<0.000000e+00> : vector<2xf32>
    %487 = vector.multi_reduction <add>, %486, %cst_243 [1] : vector<2x256xf32> to vector<2xf32>
    %488 = vector.shape_cast %487 : vector<2xf32> to vector<2x1xf32>
    %cst_244 = arith.constant 2.560000e+02 : f32
    %489 = vector.broadcast %cst_244 : f32 to vector<2x1xf32>
    %490 = arith.divf %488, %489 : vector<2x1xf32>
    %491 = arith.mulf %485, %485 : vector<2x1xf32>
    %492 = arith.subf %490, %491 : vector<2x1xf32>
    %cst_245 = arith.constant 0.000000e+00 : f32
    %493 = vector.broadcast %cst_245 : f32 to vector<2x1xf32>
    %494 = arith.maximumf %492, %493 : vector<2x1xf32>
    %495 = vector.broadcast %485 : vector<2x1xf32> to vector<2x256xf32>
    %496 = arith.subf %481, %495 : vector<2x256xf32>
    %cst_246 = arith.constant 9.99999974E-6 : f32
    %497 = vector.broadcast %cst_246 : f32 to vector<2x1xf32>
    %498 = arith.addf %494, %497 : vector<2x1xf32>
    %499 = math.rsqrt %498 : vector<2x1xf32>
    %500 = vector.broadcast %499 : vector<2x1xf32> to vector<2x256xf32>
    %501 = arith.mulf %496, %500 : vector<2x256xf32>
    %cst_247 = arith.constant 0.000000e+00 : f32
    %502 = vector.broadcast %cst_247 : f32 to vector<2x256xf32>
    %503 = arith.maximumf %501, %502 : vector<2x256xf32>
    %504 = arith.addf %503, %413 : vector<2x256xf32>
    %c16_i32_248 = arith.constant 16 : i32
    %505 = tpu.dynamic_rotate %504 by %c16_i32_248 dim 1 : vector<2x256xf32>, i32 -> vector<2x256xf32>
    %506 = vector.broadcast %8 : vector<1x256xf32> to vector<2x256xf32>
    %507 = arith.mulf %505, %506 : vector<2x256xf32>
    %c240_i32_249 = arith.constant 240 : i32
    %508 = tpu.dynamic_rotate %504 by %c240_i32_249 dim 1 : vector<2x256xf32>, i32 -> vector<2x256xf32>
    %509 = vector.broadcast %9 : vector<1x256xf32> to vector<2x256xf32>
    %510 = arith.mulf %508, %509 : vector<2x256xf32>
    %c21 = arith.constant 21 : index
    %c0_250 = arith.constant 0 : index
    %c0_251 = arith.constant 0 : index
    %511 = vector.load %arg8[%c21, %c0_250, %c0_251] : memref<30x2x2xf32, #tpu.memory_space<vmem>>, vector<1x2x2xf32>
    %512 = vector.shape_cast %511 : vector<1x2x2xf32> to vector<2x2xf32>
    %cst_252 = arith.constant dense<0.000000e+00> : vector<2x256xf32>
    %513 = tpu.matmul %512, %507, %cst_252 {dimension_numbers = #tpu.dot_dimension_numbers<[1], [0], [0], [1], [0, 0, 1, 1], [], []>} : vector<2x2xf32>, vector<2x256xf32>, vector<2x256xf32> -> vector<2x256xf32>
    %c22 = arith.constant 22 : index
    %c0_253 = arith.constant 0 : index
    %c0_254 = arith.constant 0 : index
    %514 = vector.load %arg8[%c22, %c0_253, %c0_254] : memref<30x2x2xf32, #tpu.memory_space<vmem>>, vector<1x2x2xf32>
    %515 = vector.shape_cast %514 : vector<1x2x2xf32> to vector<2x2xf32>
    %cst_255 = arith.constant dense<0.000000e+00> : vector<2x256xf32>
    %516 = tpu.matmul %515, %504, %cst_255 {dimension_numbers = #tpu.dot_dimension_numbers<[1], [0], [0], [1], [0, 0, 1, 1], [], []>} : vector<2x2xf32>, vector<2x256xf32>, vector<2x256xf32> -> vector<2x256xf32>
    %517 = arith.addf %513, %516 : vector<2x256xf32>
    %c23 = arith.constant 23 : index
    %c0_256 = arith.constant 0 : index
    %c0_257 = arith.constant 0 : index
    %518 = vector.load %arg8[%c23, %c0_256, %c0_257] : memref<30x2x2xf32, #tpu.memory_space<vmem>>, vector<1x2x2xf32>
    %519 = vector.shape_cast %518 : vector<1x2x2xf32> to vector<2x2xf32>
    %cst_258 = arith.constant dense<0.000000e+00> : vector<2x256xf32>
    %520 = tpu.matmul %519, %510, %cst_258 {dimension_numbers = #tpu.dot_dimension_numbers<[1], [0], [0], [1], [0, 0, 1, 1], [], []>} : vector<2x2xf32>, vector<2x256xf32>, vector<2x256xf32> -> vector<2x256xf32>
    %521 = arith.addf %517, %520 : vector<2x256xf32>
    %c7_259 = arith.constant 7 : index
    %c0_260 = arith.constant 0 : index
    %c0_261 = arith.constant 0 : index
    %522 = vector.load %arg9[%c7_259, %c0_260, %c0_261] : memref<10x2x1xf32, #tpu.memory_space<vmem>>, vector<1x2x1xf32>
    %523 = vector.shape_cast %522 : vector<1x2x1xf32> to vector<2x1xf32>
    %524 = vector.broadcast %523 : vector<2x1xf32> to vector<2x256xf32>
    %525 = arith.addf %521, %524 : vector<2x256xf32>
    %cst_262 = arith.constant dense<0.000000e+00> : vector<2xf32>
    %526 = vector.multi_reduction <add>, %525, %cst_262 [1] : vector<2x256xf32> to vector<2xf32>
    %527 = vector.shape_cast %526 : vector<2xf32> to vector<2x1xf32>
    %cst_263 = arith.constant 2.560000e+02 : f32
    %528 = vector.broadcast %cst_263 : f32 to vector<2x1xf32>
    %529 = arith.divf %527, %528 : vector<2x1xf32>
    %530 = arith.mulf %525, %525 : vector<2x256xf32>
    %cst_264 = arith.constant dense<0.000000e+00> : vector<2xf32>
    %531 = vector.multi_reduction <add>, %530, %cst_264 [1] : vector<2x256xf32> to vector<2xf32>
    %532 = vector.shape_cast %531 : vector<2xf32> to vector<2x1xf32>
    %cst_265 = arith.constant 2.560000e+02 : f32
    %533 = vector.broadcast %cst_265 : f32 to vector<2x1xf32>
    %534 = arith.divf %532, %533 : vector<2x1xf32>
    %535 = arith.mulf %529, %529 : vector<2x1xf32>
    %536 = arith.subf %534, %535 : vector<2x1xf32>
    %cst_266 = arith.constant 0.000000e+00 : f32
    %537 = vector.broadcast %cst_266 : f32 to vector<2x1xf32>
    %538 = arith.maximumf %536, %537 : vector<2x1xf32>
    %539 = vector.broadcast %529 : vector<2x1xf32> to vector<2x256xf32>
    %540 = arith.subf %525, %539 : vector<2x256xf32>
    %cst_267 = arith.constant 9.99999974E-6 : f32
    %541 = vector.broadcast %cst_267 : f32 to vector<2x1xf32>
    %542 = arith.addf %538, %541 : vector<2x1xf32>
    %543 = math.rsqrt %542 : vector<2x1xf32>
    %544 = vector.broadcast %543 : vector<2x1xf32> to vector<2x256xf32>
    %545 = arith.mulf %540, %544 : vector<2x256xf32>
    %cst_268 = arith.constant 0.000000e+00 : f32
    %546 = vector.broadcast %cst_268 : f32 to vector<2x256xf32>
    %547 = arith.maximumf %545, %546 : vector<2x256xf32>
    %548 = arith.addf %547, %414 : vector<2x256xf32>
    %c16_i32_269 = arith.constant 16 : i32
    %549 = tpu.dynamic_rotate %548 by %c16_i32_269 dim 1 : vector<2x256xf32>, i32 -> vector<2x256xf32>
    %550 = vector.broadcast %8 : vector<1x256xf32> to vector<2x256xf32>
    %551 = arith.mulf %549, %550 : vector<2x256xf32>
    %c240_i32_270 = arith.constant 240 : i32
    %552 = tpu.dynamic_rotate %548 by %c240_i32_270 dim 1 : vector<2x256xf32>, i32 -> vector<2x256xf32>
    %553 = vector.broadcast %9 : vector<1x256xf32> to vector<2x256xf32>
    %554 = arith.mulf %552, %553 : vector<2x256xf32>
    %c24 = arith.constant 24 : index
    %c0_271 = arith.constant 0 : index
    %c0_272 = arith.constant 0 : index
    %555 = vector.load %arg8[%c24, %c0_271, %c0_272] : memref<30x2x2xf32, #tpu.memory_space<vmem>>, vector<1x2x2xf32>
    %556 = vector.shape_cast %555 : vector<1x2x2xf32> to vector<2x2xf32>
    %cst_273 = arith.constant dense<0.000000e+00> : vector<2x256xf32>
    %557 = tpu.matmul %556, %551, %cst_273 {dimension_numbers = #tpu.dot_dimension_numbers<[1], [0], [0], [1], [0, 0, 1, 1], [], []>} : vector<2x2xf32>, vector<2x256xf32>, vector<2x256xf32> -> vector<2x256xf32>
    %c25 = arith.constant 25 : index
    %c0_274 = arith.constant 0 : index
    %c0_275 = arith.constant 0 : index
    %558 = vector.load %arg8[%c25, %c0_274, %c0_275] : memref<30x2x2xf32, #tpu.memory_space<vmem>>, vector<1x2x2xf32>
    %559 = vector.shape_cast %558 : vector<1x2x2xf32> to vector<2x2xf32>
    %cst_276 = arith.constant dense<0.000000e+00> : vector<2x256xf32>
    %560 = tpu.matmul %559, %548, %cst_276 {dimension_numbers = #tpu.dot_dimension_numbers<[1], [0], [0], [1], [0, 0, 1, 1], [], []>} : vector<2x2xf32>, vector<2x256xf32>, vector<2x256xf32> -> vector<2x256xf32>
    %561 = arith.addf %557, %560 : vector<2x256xf32>
    %c26 = arith.constant 26 : index
    %c0_277 = arith.constant 0 : index
    %c0_278 = arith.constant 0 : index
    %562 = vector.load %arg8[%c26, %c0_277, %c0_278] : memref<30x2x2xf32, #tpu.memory_space<vmem>>, vector<1x2x2xf32>
    %563 = vector.shape_cast %562 : vector<1x2x2xf32> to vector<2x2xf32>
    %cst_279 = arith.constant dense<0.000000e+00> : vector<2x256xf32>
    %564 = tpu.matmul %563, %554, %cst_279 {dimension_numbers = #tpu.dot_dimension_numbers<[1], [0], [0], [1], [0, 0, 1, 1], [], []>} : vector<2x2xf32>, vector<2x256xf32>, vector<2x256xf32> -> vector<2x256xf32>
    %565 = arith.addf %561, %564 : vector<2x256xf32>
    %c8_280 = arith.constant 8 : index
    %c0_281 = arith.constant 0 : index
    %c0_282 = arith.constant 0 : index
    %566 = vector.load %arg9[%c8_280, %c0_281, %c0_282] : memref<10x2x1xf32, #tpu.memory_space<vmem>>, vector<1x2x1xf32>
    %567 = vector.shape_cast %566 : vector<1x2x1xf32> to vector<2x1xf32>
    %568 = vector.broadcast %567 : vector<2x1xf32> to vector<2x256xf32>
    %569 = arith.addf %565, %568 : vector<2x256xf32>
    %cst_283 = arith.constant dense<0.000000e+00> : vector<2xf32>
    %570 = vector.multi_reduction <add>, %569, %cst_283 [1] : vector<2x256xf32> to vector<2xf32>
    %571 = vector.shape_cast %570 : vector<2xf32> to vector<2x1xf32>
    %cst_284 = arith.constant 2.560000e+02 : f32
    %572 = vector.broadcast %cst_284 : f32 to vector<2x1xf32>
    %573 = arith.divf %571, %572 : vector<2x1xf32>
    %574 = arith.mulf %569, %569 : vector<2x256xf32>
    %cst_285 = arith.constant dense<0.000000e+00> : vector<2xf32>
    %575 = vector.multi_reduction <add>, %574, %cst_285 [1] : vector<2x256xf32> to vector<2xf32>
    %576 = vector.shape_cast %575 : vector<2xf32> to vector<2x1xf32>
    %cst_286 = arith.constant 2.560000e+02 : f32
    %577 = vector.broadcast %cst_286 : f32 to vector<2x1xf32>
    %578 = arith.divf %576, %577 : vector<2x1xf32>
    %579 = arith.mulf %573, %573 : vector<2x1xf32>
    %580 = arith.subf %578, %579 : vector<2x1xf32>
    %cst_287 = arith.constant 0.000000e+00 : f32
    %581 = vector.broadcast %cst_287 : f32 to vector<2x1xf32>
    %582 = arith.maximumf %580, %581 : vector<2x1xf32>
    %583 = vector.broadcast %573 : vector<2x1xf32> to vector<2x256xf32>
    %584 = arith.subf %569, %583 : vector<2x256xf32>
    %cst_288 = arith.constant 9.99999974E-6 : f32
    %585 = vector.broadcast %cst_288 : f32 to vector<2x1xf32>
    %586 = arith.addf %582, %585 : vector<2x1xf32>
    %587 = math.rsqrt %586 : vector<2x1xf32>
    %588 = vector.broadcast %587 : vector<2x1xf32> to vector<2x256xf32>
    %589 = arith.mulf %584, %588 : vector<2x256xf32>
    %cst_289 = arith.constant 0.000000e+00 : f32
    %590 = vector.broadcast %cst_289 : f32 to vector<2x256xf32>
    %591 = arith.maximumf %589, %590 : vector<2x256xf32>
    %592 = arith.addf %591, %415 : vector<2x256xf32>
    %c16_i32_290 = arith.constant 16 : i32
    %593 = tpu.dynamic_rotate %592 by %c16_i32_290 dim 1 : vector<2x256xf32>, i32 -> vector<2x256xf32>
    %594 = vector.broadcast %8 : vector<1x256xf32> to vector<2x256xf32>
    %595 = arith.mulf %593, %594 : vector<2x256xf32>
    %c240_i32_291 = arith.constant 240 : i32
    %596 = tpu.dynamic_rotate %592 by %c240_i32_291 dim 1 : vector<2x256xf32>, i32 -> vector<2x256xf32>
    %597 = vector.broadcast %9 : vector<1x256xf32> to vector<2x256xf32>
    %598 = arith.mulf %596, %597 : vector<2x256xf32>
    %c27 = arith.constant 27 : index
    %c0_292 = arith.constant 0 : index
    %c0_293 = arith.constant 0 : index
    %599 = vector.load %arg8[%c27, %c0_292, %c0_293] : memref<30x2x2xf32, #tpu.memory_space<vmem>>, vector<1x2x2xf32>
    %600 = vector.shape_cast %599 : vector<1x2x2xf32> to vector<2x2xf32>
    %cst_294 = arith.constant dense<0.000000e+00> : vector<2x256xf32>
    %601 = tpu.matmul %600, %595, %cst_294 {dimension_numbers = #tpu.dot_dimension_numbers<[1], [0], [0], [1], [0, 0, 1, 1], [], []>} : vector<2x2xf32>, vector<2x256xf32>, vector<2x256xf32> -> vector<2x256xf32>
    %c28 = arith.constant 28 : index
    %c0_295 = arith.constant 0 : index
    %c0_296 = arith.constant 0 : index
    %602 = vector.load %arg8[%c28, %c0_295, %c0_296] : memref<30x2x2xf32, #tpu.memory_space<vmem>>, vector<1x2x2xf32>
    %603 = vector.shape_cast %602 : vector<1x2x2xf32> to vector<2x2xf32>
    %cst_297 = arith.constant dense<0.000000e+00> : vector<2x256xf32>
    %604 = tpu.matmul %603, %592, %cst_297 {dimension_numbers = #tpu.dot_dimension_numbers<[1], [0], [0], [1], [0, 0, 1, 1], [], []>} : vector<2x2xf32>, vector<2x256xf32>, vector<2x256xf32> -> vector<2x256xf32>
    %605 = arith.addf %601, %604 : vector<2x256xf32>
    %c29 = arith.constant 29 : index
    %c0_298 = arith.constant 0 : index
    %c0_299 = arith.constant 0 : index
    %606 = vector.load %arg8[%c29, %c0_298, %c0_299] : memref<30x2x2xf32, #tpu.memory_space<vmem>>, vector<1x2x2xf32>
    %607 = vector.shape_cast %606 : vector<1x2x2xf32> to vector<2x2xf32>
    %cst_300 = arith.constant dense<0.000000e+00> : vector<2x256xf32>
    %608 = tpu.matmul %607, %598, %cst_300 {dimension_numbers = #tpu.dot_dimension_numbers<[1], [0], [0], [1], [0, 0, 1, 1], [], []>} : vector<2x2xf32>, vector<2x256xf32>, vector<2x256xf32> -> vector<2x256xf32>
    %609 = arith.addf %605, %608 : vector<2x256xf32>
    %c9_301 = arith.constant 9 : index
    %c0_302 = arith.constant 0 : index
    %c0_303 = arith.constant 0 : index
    %610 = vector.load %arg9[%c9_301, %c0_302, %c0_303] : memref<10x2x1xf32, #tpu.memory_space<vmem>>, vector<1x2x1xf32>
    %611 = vector.shape_cast %610 : vector<1x2x1xf32> to vector<2x1xf32>
    %612 = vector.broadcast %611 : vector<2x1xf32> to vector<2x256xf32>
    %613 = arith.addf %609, %612 : vector<2x256xf32>
    %cst_304 = arith.constant dense<0.000000e+00> : vector<2xf32>
    %614 = vector.multi_reduction <add>, %613, %cst_304 [1] : vector<2x256xf32> to vector<2xf32>
    %615 = vector.shape_cast %614 : vector<2xf32> to vector<2x1xf32>
    %cst_305 = arith.constant 2.560000e+02 : f32
    %616 = vector.broadcast %cst_305 : f32 to vector<2x1xf32>
    %617 = arith.divf %615, %616 : vector<2x1xf32>
    %618 = arith.mulf %613, %613 : vector<2x256xf32>
    %cst_306 = arith.constant dense<0.000000e+00> : vector<2xf32>
    %619 = vector.multi_reduction <add>, %618, %cst_306 [1] : vector<2x256xf32> to vector<2xf32>
    %620 = vector.shape_cast %619 : vector<2xf32> to vector<2x1xf32>
    %cst_307 = arith.constant 2.560000e+02 : f32
    %621 = vector.broadcast %cst_307 : f32 to vector<2x1xf32>
    %622 = arith.divf %620, %621 : vector<2x1xf32>
    %623 = arith.mulf %617, %617 : vector<2x1xf32>
    %624 = arith.subf %622, %623 : vector<2x1xf32>
    %cst_308 = arith.constant 0.000000e+00 : f32
    %625 = vector.broadcast %cst_308 : f32 to vector<2x1xf32>
    %626 = arith.maximumf %624, %625 : vector<2x1xf32>
    %627 = vector.broadcast %617 : vector<2x1xf32> to vector<2x256xf32>
    %628 = arith.subf %613, %627 : vector<2x256xf32>
    %cst_309 = arith.constant 9.99999974E-6 : f32
    %629 = vector.broadcast %cst_309 : f32 to vector<2x1xf32>
    %630 = arith.addf %626, %629 : vector<2x1xf32>
    %631 = math.rsqrt %630 : vector<2x1xf32>
    %632 = vector.broadcast %631 : vector<2x1xf32> to vector<2x256xf32>
    %633 = arith.mulf %628, %632 : vector<2x256xf32>
    %cst_310 = arith.constant 0.000000e+00 : f32
    %634 = vector.broadcast %cst_310 : f32 to vector<2x256xf32>
    %635 = arith.maximumf %633, %634 : vector<2x256xf32>
    %c0_311 = arith.constant 0 : index
    %c0_312 = arith.constant 0 : index
    %c0_313 = arith.constant 0 : index
    %636 = vector.load %arg12[%c0_311, %c0_312, %c0_313] : memref<6x12x2xf32, #tpu.memory_space<vmem>>, vector<1x12x2xf32>
    %637 = vector.shape_cast %636 : vector<1x12x2xf32> to vector<12x2xf32>
    %cst_314 = arith.constant dense<0.000000e+00> : vector<12x256xf32>
    %638 = tpu.matmul %637, %410, %cst_314 {dimension_numbers = #tpu.dot_dimension_numbers<[1], [0], [0], [1], [0, 0, 1, 1], [], []>} : vector<12x2xf32>, vector<2x256xf32>, vector<12x256xf32> -> vector<12x256xf32>
    %c1_315 = arith.constant 1 : index
    %c0_316 = arith.constant 0 : index
    %c0_317 = arith.constant 0 : index
    %639 = vector.load %arg12[%c1_315, %c0_316, %c0_317] : memref<6x12x2xf32, #tpu.memory_space<vmem>>, vector<1x12x2xf32>
    %640 = vector.shape_cast %639 : vector<1x12x2xf32> to vector<12x2xf32>
    %cst_318 = arith.constant dense<0.000000e+00> : vector<12x256xf32>
    %641 = tpu.matmul %640, %459, %cst_318 {dimension_numbers = #tpu.dot_dimension_numbers<[1], [0], [0], [1], [0, 0, 1, 1], [], []>} : vector<12x2xf32>, vector<2x256xf32>, vector<12x256xf32> -> vector<12x256xf32>
    %642 = arith.addf %638, %641 : vector<12x256xf32>
    %c2_319 = arith.constant 2 : index
    %c0_320 = arith.constant 0 : index
    %c0_321 = arith.constant 0 : index
    %643 = vector.load %arg12[%c2_319, %c0_320, %c0_321] : memref<6x12x2xf32, #tpu.memory_space<vmem>>, vector<1x12x2xf32>
    %644 = vector.shape_cast %643 : vector<1x12x2xf32> to vector<12x2xf32>
    %cst_322 = arith.constant dense<0.000000e+00> : vector<12x256xf32>
    %645 = tpu.matmul %644, %503, %cst_322 {dimension_numbers = #tpu.dot_dimension_numbers<[1], [0], [0], [1], [0, 0, 1, 1], [], []>} : vector<12x2xf32>, vector<2x256xf32>, vector<12x256xf32> -> vector<12x256xf32>
    %646 = arith.addf %642, %645 : vector<12x256xf32>
    %c3_323 = arith.constant 3 : index
    %c0_324 = arith.constant 0 : index
    %c0_325 = arith.constant 0 : index
    %647 = vector.load %arg12[%c3_323, %c0_324, %c0_325] : memref<6x12x2xf32, #tpu.memory_space<vmem>>, vector<1x12x2xf32>
    %648 = vector.shape_cast %647 : vector<1x12x2xf32> to vector<12x2xf32>
    %cst_326 = arith.constant dense<0.000000e+00> : vector<12x256xf32>
    %649 = tpu.matmul %648, %547, %cst_326 {dimension_numbers = #tpu.dot_dimension_numbers<[1], [0], [0], [1], [0, 0, 1, 1], [], []>} : vector<12x2xf32>, vector<2x256xf32>, vector<12x256xf32> -> vector<12x256xf32>
    %650 = arith.addf %646, %649 : vector<12x256xf32>
    %c4_327 = arith.constant 4 : index
    %c0_328 = arith.constant 0 : index
    %c0_329 = arith.constant 0 : index
    %651 = vector.load %arg12[%c4_327, %c0_328, %c0_329] : memref<6x12x2xf32, #tpu.memory_space<vmem>>, vector<1x12x2xf32>
    %652 = vector.shape_cast %651 : vector<1x12x2xf32> to vector<12x2xf32>
    %cst_330 = arith.constant dense<0.000000e+00> : vector<12x256xf32>
    %653 = tpu.matmul %652, %591, %cst_330 {dimension_numbers = #tpu.dot_dimension_numbers<[1], [0], [0], [1], [0, 0, 1, 1], [], []>} : vector<12x2xf32>, vector<2x256xf32>, vector<12x256xf32> -> vector<12x256xf32>
    %654 = arith.addf %650, %653 : vector<12x256xf32>
    %c5_331 = arith.constant 5 : index
    %c0_332 = arith.constant 0 : index
    %c0_333 = arith.constant 0 : index
    %655 = vector.load %arg12[%c5_331, %c0_332, %c0_333] : memref<6x12x2xf32, #tpu.memory_space<vmem>>, vector<1x12x2xf32>
    %656 = vector.shape_cast %655 : vector<1x12x2xf32> to vector<12x2xf32>
    %cst_334 = arith.constant dense<0.000000e+00> : vector<12x256xf32>
    %657 = tpu.matmul %656, %635, %cst_334 {dimension_numbers = #tpu.dot_dimension_numbers<[1], [0], [0], [1], [0, 0, 1, 1], [], []>} : vector<12x2xf32>, vector<2x256xf32>, vector<12x256xf32> -> vector<12x256xf32>
    %658 = arith.addf %654, %657 : vector<12x256xf32>
    %c0_335 = arith.constant 0 : index
    %c0_336 = arith.constant 0 : index
    %659 = vector.load %arg13[%c0_335, %c0_336] : memref<12x1xf32, #tpu.memory_space<vmem>>, vector<12x1xf32>
    %660 = vector.broadcast %659 : vector<12x1xf32> to vector<12x256xf32>
    %661 = arith.addf %658, %660 : vector<12x256xf32>
    %c0_337 = arith.constant 0 : index
    %c0_338 = arith.constant 0 : index
    %662 = vector.load %arg19[%c0_337, %c0_338] : memref<12x256xf32, #tpu.memory_space<vmem>>, vector<12x256xf32>
    %663 = arith.addf %661, %662 : vector<12x256xf32>
    %cst_339 = arith.constant 0.000000e+00 : f32
    %664 = vector.broadcast %cst_339 : f32 to vector<12x256xf32>
    %665 = arith.maximumf %663, %664 : vector<12x256xf32>
    %c0_340 = arith.constant 0 : index
    %c0_341 = arith.constant 0 : index
    %c0_342 = arith.constant 0 : index
    %666 = vector.load %arg18[%c0_340, %c0_341, %c0_342] : memref<1x12x256xf32, #tpu.memory_space<vmem>>, vector<1x12x256xf32>
    %667 = vector.shape_cast %666 : vector<1x12x256xf32> to vector<12x256xf32>
    %668 = vector.shape_cast %665 : vector<12x256xf32> to vector<1x12x256xf32>
    tpu.vector_store %arg18[%c0_340, %c0_341, %c0_342], %668 {strides = array<i32>} : memref<1x12x256xf32, #tpu.memory_space<vmem>>, vector<1x12x256xf32>,
    return
  }
  func.func @transform_0(%arg0: i32) -> (i32, i32, i32) {
    %c0_i32 = arith.constant 0 : i32
    %c0_i32_0 = arith.constant 0 : i32
    %c0_i32_1 = arith.constant 0 : i32
    return %arg0, %c0_i32, %c0_i32_0 : i32, i32, i32
  }
  func.func @transform_1(%arg0: i32) -> (i32, i32, i32) {
    %c0_i32 = arith.constant 0 : i32
    %c0_i32_0 = arith.constant 0 : i32
    %c0_i32_1 = arith.constant 0 : i32
    return %arg0, %c0_i32, %c0_i32_0 : i32, i32, i32
  }
  func.func @transform_2(%arg0: i32) -> (i32, i32) {
    %c0_i32 = arith.constant 0 : i32
    %c0_i32_0 = arith.constant 0 : i32
    %c0_i32_1 = arith.constant 0 : i32
    return %c0_i32, %c0_i32_0 : i32, i32
  }
  func.func @transform_3(%arg0: i32) -> (i32, i32) {
    %c0_i32 = arith.constant 0 : i32
    %c0_i32_0 = arith.constant 0 : i32
    %c0_i32_1 = arith.constant 0 : i32
    return %c0_i32, %c0_i32_0 : i32, i32
  }
  func.func @transform_4(%arg0: i32) -> (i32, i32) {
    %c0_i32 = arith.constant 0 : i32
    %c0_i32_0 = arith.constant 0 : i32
    %c0_i32_1 = arith.constant 0 : i32
    return %c0_i32, %c0_i32_0 : i32, i32
  }
  func.func @transform_5(%arg0: i32) -> (i32, i32) {
    %c0_i32 = arith.constant 0 : i32
    %c0_i32_0 = arith.constant 0 : i32
    %c0_i32_1 = arith.constant 0 : i32
    return %c0_i32, %c0_i32_0 : i32, i32
  }
  func.func @transform_6(%arg0: i32) -> (i32, i32) {
    %c0_i32 = arith.constant 0 : i32
    %c0_i32_0 = arith.constant 0 : i32
    %c0_i32_1 = arith.constant 0 : i32
    return %c0_i32, %c0_i32_0 : i32, i32
  }
  func.func @transform_7(%arg0: i32) -> (i32, i32, i32) {
    %c0_i32 = arith.constant 0 : i32
    %c0_i32_0 = arith.constant 0 : i32
    %c0_i32_1 = arith.constant 0 : i32
    %c0_i32_2 = arith.constant 0 : i32
    return %c0_i32, %c0_i32_0, %c0_i32_1 : i32, i32, i32
  }
  func.func @transform_8(%arg0: i32) -> (i32, i32, i32) {
    %c0_i32 = arith.constant 0 : i32
    %c0_i32_0 = arith.constant 0 : i32
    %c0_i32_1 = arith.constant 0 : i32
    %c0_i32_2 = arith.constant 0 : i32
    return %c0_i32, %c0_i32_0, %c0_i32_1 : i32, i32, i32
  }
  func.func @transform_9(%arg0: i32) -> (i32, i32, i32) {
    %c0_i32 = arith.constant 0 : i32
    %c0_i32_0 = arith.constant 0 : i32
    %c0_i32_1 = arith.constant 0 : i32
    %c0_i32_2 = arith.constant 0 : i32
    return %c0_i32, %c0_i32_0, %c0_i32_1 : i32, i32, i32
  }
  func.func @transform_10(%arg0: i32) -> (i32, i32) {
    %c0_i32 = arith.constant 0 : i32
    %c0_i32_0 = arith.constant 0 : i32
    %c0_i32_1 = arith.constant 0 : i32
    return %c0_i32, %c0_i32_0 : i32, i32
  }
  func.func @transform_11(%arg0: i32) -> (i32, i32, i32) {
    %c0_i32 = arith.constant 0 : i32
    %c0_i32_0 = arith.constant 0 : i32
    %c0_i32_1 = arith.constant 0 : i32
    %c0_i32_2 = arith.constant 0 : i32
    return %c0_i32, %c0_i32_0, %c0_i32_1 : i32, i32, i32
  }
  func.func @transform_12(%arg0: i32) -> (i32, i32) {
    %c0_i32 = arith.constant 0 : i32
    %c0_i32_0 = arith.constant 0 : i32
    %c0_i32_1 = arith.constant 0 : i32
    return %c0_i32, %c0_i32_0 : i32, i32
  }
  func.func @transform_13(%arg0: i32) -> (i32, i32) {
    %c0_i32 = arith.constant 0 : i32
    %c0_i32_0 = arith.constant 0 : i32
    %c0_i32_1 = arith.constant 0 : i32
    return %c0_i32, %c0_i32_0 : i32, i32
  }
  func.func @transform_14(%arg0: i32) -> (i32, i32) {
    %c0_i32 = arith.constant 0 : i32
    %c0_i32_0 = arith.constant 0 : i32
    %c0_i32_1 = arith.constant 0 : i32
    return %c0_i32, %c0_i32_0 : i32, i32
  }
  func.func @transform_15(%arg0: i32) -> (i32, i32, i32) {
    %c0_i32 = arith.constant 0 : i32
    %c0_i32_0 = arith.constant 0 : i32
    %c0_i32_1 = arith.constant 0 : i32
    %c0_i32_2 = arith.constant 0 : i32
    return %c0_i32, %c0_i32_0, %c0_i32_1 : i32, i32, i32
  }
  func.func @transform_16(%arg0: i32) -> (i32, i32, i32) {
    %c0_i32 = arith.constant 0 : i32
    %c0_i32_0 = arith.constant 0 : i32
    %c0_i32_1 = arith.constant 0 : i32
    %c0_i32_2 = arith.constant 0 : i32
    return %c0_i32, %c0_i32_0, %c0_i32_1 : i32, i32, i32
  }
  func.func @transform_17(%arg0: i32) -> (i32, i32, i32) {
    %c0_i32 = arith.constant 0 : i32
    %c0_i32_0 = arith.constant 0 : i32
    %c0_i32_1 = arith.constant 0 : i32
    return %arg0, %c0_i32, %c0_i32_0 : i32, i32, i32
  }
}

</mosaic_0001>

<llo_original>
// kernel: conv_up_forward.1
$region0: #{conv_up_forward.1}
  #allocation0 [shape = 'u32[]', space=smem, size = 0x4, offset = 0x4, fixed_abs, tag = 'smem constant byte address 0x4 - core index']
  #allocation1 [shape = 'u32[72,128]{1,0:T(1,128)}', space=vmem, size = 0x9000, scoped, tag = 'internal scratch']
  #allocation2 [shape = 'f32[12,256]{1,0:T(8,128)}', space=vmem, size = 0x4000, scoped, tag = 'scratch operand']
  %s0 = inlined_call_operand.vmem [shape: f32[2,12,256], index: 0, kind: input, shape index: {}]
  %s1 = inlined_call_operand.vmem [shape: f32[2,12,256], index: 1, kind: input, shape index: {}]
  %s2 = inlined_call_operand.vmem [shape: f32[4,256], index: 2, kind: input, shape index: {}]
  %s3 = inlined_call_operand.vmem [shape: f32[6,256], index: 3, kind: input, shape index: {}]
  %s4 = inlined_call_operand.vmem [shape: f32[24,12], index: 4, kind: input, shape index: {}]
  %s5 = inlined_call_operand.vmem [shape: f32[24,12], index: 5, kind: input, shape index: {}]
  %s6 = inlined_call_operand.vmem [shape: f32[24,1], index: 6, kind: input, shape index: {}]
  %s7 = inlined_call_operand.vmem [shape: f32[30,2,2], index: 7, kind: input, shape index: {}]
  %s8 = inlined_call_operand.vmem [shape: f32[10,2,1], index: 8, kind: input, shape index: {}]
  %s9 = inlined_call_operand.vmem [shape: f32[6,12,2], index: 9, kind: input, shape index: {}]
  %s10 = inlined_call_operand.vmem [shape: f32[12,1], index: 10, kind: input, shape index: {}]
  %s11 = inlined_call_operand.vmem [shape: f32[6,12,2], index: 11, kind: input, shape index: {}]
  %s12 = inlined_call_operand.vmem [shape: f32[12,1], index: 12, kind: input, shape index: {}]
  %s13 = inlined_call_operand.vmem [shape: f32[12,2], index: 13, kind: input, shape index: {}]
  %s14 = inlined_call_operand.vmem [shape: f32[12,1], index: 14, kind: input, shape index: {}]
  %s15 = inlined_call_operand.vmem [shape: f32[6,2,12], index: 15, kind: input, shape index: {}]
  %s16 = inlined_call_operand.vmem [shape: f32[6,2,1], index: 16, kind: input, shape index: {}]
  %s17 = inlined_call_operand.vmem [shape: f32[2,12,256], index: 17, kind: output, shape index: {}]
  %s18 = sld [smem:[#allocation0]]
  $region101: #{conv_up_forward.1} parent=0
    _
  %s20 = ssub.s32 1, %s18
  %s21 = scalar_select 0, %s20, %s18
  loop: start=0, step=1, limit=4
  $region2: #{conv_up_forward.1} parent=0 // loop_pre_header
    _
  $region3: #{conv_up_forward.1} parent=0 // loop_header
    %s23 = sphi 0, %s27
    %p24 = scmp.ge.s32.totalorder %s23, 4
    %s33 = sphi 0, %s35
    %s36 = sphi 0, %s33
    %s37 = sphi 0, %s36
    %s53 = sphi 0, %s37
    %s59 = sphi 0, %s61
    %s62 = sphi 0, %s59
    %s63 = sphi 0, %s62
    %s79 = sphi 0, %s63
    %s83 = sphi 0, %s83
    %s85 = sphi 0, %s83
    %s86 = sphi 0, %s85
    %s100 = sphi 0, %s86
    %s104 = sphi 0, %s104
    %s106 = sphi 0, %s104
    %s107 = sphi 0, %s106
    %s121 = sphi 0, %s107
    %s125 = sphi 0, %s125
    %s127 = sphi 0, %s125
    %s128 = sphi 0, %s127
    %s142 = sphi 0, %s128
    %s146 = sphi 0, %s146
    %s148 = sphi 0, %s146
    %s149 = sphi 0, %s148
    %s163 = sphi 0, %s149
    %s167 = sphi 0, %s167
    %s169 = sphi 0, %s167
    %s170 = sphi 0, %s169
    %s184 = sphi 0, %s170
    %s188 = sphi 0, %s188
    %s190 = sphi 0, %s188
    %s191 = sphi 0, %s190
    %s205 = sphi 0, %s191
    %s209 = sphi 0, %s209
    %s211 = sphi 0, %s209
    %s212 = sphi 0, %s211
    %s226 = sphi 0, %s212
    %s230 = sphi 0, %s230
    %s232 = sphi 0, %s230
    %s233 = sphi 0, %s232
    %s247 = sphi 0, %s233
    %s251 = sphi 0, %s251
    %s253 = sphi 0, %s251
    %s254 = sphi 0, %s253
    %s268 = sphi 0, %s254
    %s272 = sphi 0, %s272
    %s274 = sphi 0, %s272
    %s275 = sphi 0, %s274
    %s289 = sphi 0, %s275
    %s293 = sphi 0, %s293
    %s295 = sphi 0, %s293
    %s296 = sphi 0, %s295
    %s310 = sphi 0, %s296
    %s314 = sphi 0, %s314
    %s316 = sphi 0, %s314
    %s317 = sphi 0, %s316
    %s331 = sphi 0, %s317
    %s335 = sphi 0, %s335
    %s337 = sphi 0, %s335
    %s338 = sphi 0, %s337
    %s352 = sphi 0, %s338
    %s356 = sphi 0, %s356
    %s358 = sphi 0, %s356
    %s359 = sphi 0, %s358
    %s373 = sphi 0, %s359
    %s377 = sphi 0, %s377
    %s379 = sphi 0, %s377
    %s380 = sphi 0, %s379
    %s394 = sphi 0, %s380
    %s400 = sphi 0, %s402
    %s403 = sphi 0, %s400
    %s404 = sphi 0, %s403
    %s420 = sphi 0, %s404
  $region4: #{conv_up_forward.1} parent=0 // loop_header_branch
    %26 = sbr.rel (%p24) target = $region8
  $region5: #{conv_up_forward.1} parent=0 // loop_body
    %s28 = ssub.s32 %s23, 1
    %s29 = ssub.s32 %s23, 2
    %s30 = sadd.s32 %s23, 1
    %s31 = ssub.s32 %s23, %s30
    %p32 = scmp.eq.s32.totalorder %s31, 0
    %s34 = sadd.s32 %s33, 1
    %s35 = scalar_select %p32, %s33, %s34
    %p38 = pneg %p32
    %p39 = scmp.eq.s32.totalorder %s23, 1
    %p40 = por %p38, %p39
    %p41 = scmp.ne.s32.totalorder %s33, %s36
    %p42 = scmp.eq.s32.totalorder %s23, 0
    %p43 = por %p41, %p42
    %p44 = scmp.ne.s32.totalorder %s33, %s36
    %p45 = scmp.eq.s32.totalorder %s28, 1
    %p46 = por %p44, %p45
    %p47 = scmp.ne.s32.totalorder %s36, %s37
    %p48 = scmp.eq.s32.totalorder %s28, 0
    %p49 = por %p47, %p48
    %p50 = scmp.ne.s32.totalorder %s36, %s37
    %p51 = scmp.eq.s32.totalorder %s29, 1
    %p52 = por %p50, %p51
    %p54 = scmp.ne.s32.totalorder %s37, %s53
    %p55 = scmp.eq.s32.totalorder %s29, 0
    %p56 = por %p54, %p55
    %s57 = ssub.s32 %s23, %s30
    %p58 = scmp.eq.s32.totalorder %s57, 0
    %s60 = sadd.s32 %s59, 1
    %s61 = scalar_select %p58, %s59, %s60
    %p64 = pneg %p58
    %p65 = scmp.eq.s32.totalorder %s23, 1
    %p66 = por %p64, %p65
    %p67 = scmp.ne.s32.totalorder %s59, %s62
    %p68 = scmp.eq.s32.totalorder %s23, 0
    %p69 = por %p67, %p68
    %p70 = scmp.ne.s32.totalorder %s59, %s62
    %p71 = scmp.eq.s32.totalorder %s28, 1
    %p72 = por %p70, %p71
    %p73 = scmp.ne.s32.totalorder %s62, %s63
    %p74 = scmp.eq.s32.totalorder %s28, 0
    %p75 = por %p73, %p74
    %p76 = scmp.ne.s32.totalorder %s62, %s63
    %p77 = scmp.eq.s32.totalorder %s29, 1
    %p78 = por %p76, %p77
    %p80 = scmp.ne.s32.totalorder %s63, %s79
    %p81 = scmp.eq.s32.totalorder %s29, 0
    %p82 = por %p80, %p81
    %s84 = sadd.s32 %s83, 1
    %p87 = scmp.eq.s32.totalorder %s23, 1
    %p88 = scmp.ne.s32.totalorder %s83, %s85
    %p89 = scmp.eq.s32.totalorder %s23, 0
    %p90 = por %p88, %p89
    %p91 = scmp.ne.s32.totalorder %s83, %s85
    %p92 = scmp.eq.s32.totalorder %s28, 1
    %p93 = por %p91, %p92
    %p94 = scmp.ne.s32.totalorder %s85, %s86
    %p95 = scmp.eq.s32.totalorder %s28, 0
    %p96 = por %p94, %p95
    %p97 = scmp.ne.s32.totalorder %s85, %s86
    %p98 = scmp.eq.s32.totalorder %s29, 1
    %p99 = por %p97, %p98
    %p101 = scmp.ne.s32.totalorder %s86, %s100
    %p102 = scmp.eq.s32.totalorder %s29, 0
    %p103 = por %p101, %p102
    %s105 = sadd.s32 %s104, 1
    %p108 = scmp.eq.s32.totalorder %s23, 1
    %p109 = scmp.ne.s32.totalorder %s104, %s106
    %p110 = scmp.eq.s32.totalorder %s23, 0
    %p111 = por %p109, %p110
    %p112 = scmp.ne.s32.totalorder %s104, %s106
    %p113 = scmp.eq.s32.totalorder %s28, 1
    %p114 = por %p112, %p113
    %p115 = scmp.ne.s32.totalorder %s106, %s107
    %p116 = scmp.eq.s32.totalorder %s28, 0
    %p117 = por %p115, %p116
    %p118 = scmp.ne.s32.totalorder %s106, %s107
    %p119 = scmp.eq.s32.totalorder %s29, 1
    %p120 = por %p118, %p119
    %p122 = scmp.ne.s32.totalorder %s107, %s121
    %p123 = scmp.eq.s32.totalorder %s29, 0
    %p124 = por %p122, %p123
    %s126 = sadd.s32 %s125, 1
    %p129 = scmp.eq.s32.totalorder %s23, 1
    %p130 = scmp.ne.s32.totalorder %s125, %s127
    %p131 = scmp.eq.s32.totalorder %s23, 0
    %p132 = por %p130, %p131
    %p133 = scmp.ne.s32.totalorder %s125, %s127
    %p134 = scmp.eq.s32.totalorder %s28, 1
    %p135 = por %p133, %p134
    %p136 = scmp.ne.s32.totalorder %s127, %s128
    %p137 = scmp.eq.s32.totalorder %s28, 0
    %p138 = por %p136, %p137
    %p139 = scmp.ne.s32.totalorder %s127, %s128
    %p140 = scmp.eq.s32.totalorder %s29, 1
    %p141 = por %p139, %p140
    %p143 = scmp.ne.s32.totalorder %s128, %s142
    %p144 = scmp.eq.s32.totalorder %s29, 0
    %p145 = por %p143, %p144
    %s147 = sadd.s32 %s146, 1
    %p150 = scmp.eq.s32.totalorder %s23, 1
    %p151 = scmp.ne.s32.totalorder %s146, %s148
    %p152 = scmp.eq.s32.totalorder %s23, 0
    %p153 = por %p151, %p152
    %p154 = scmp.ne.s32.totalorder %s146, %s148
    %p155 = scmp.eq.s32.totalorder %s28, 1
    %p156 = por %p154, %p155
    %p157 = scmp.ne.s32.totalorder %s148, %s149
    %p158 = scmp.eq.s32.totalorder %s28, 0
    %p159 = por %p157, %p158
    %p160 = scmp.ne.s32.totalorder %s148, %s149
    %p161 = scmp.eq.s32.totalorder %s29, 1
    %p162 = por %p160, %p161
    %p164 = scmp.ne.s32.totalorder %s149, %s163
    %p165 = scmp.eq.s32.totalorder %s29, 0
    %p166 = por %p164, %p165
    %s168 = sadd.s32 %s167, 1
    %p171 = scmp.eq.s32.totalorder %s23, 1
    %p172 = scmp.ne.s32.totalorder %s167, %s169
    %p173 = scmp.eq.s32.totalorder %s23, 0
    %p174 = por %p172, %p173
    %p175 = scmp.ne.s32.totalorder %s167, %s169
    %p176 = scmp.eq.s32.totalorder %s28, 1
    %p177 = por %p175, %p176
    %p178 = scmp.ne.s32.totalorder %s169, %s170
    %p179 = scmp.eq.s32.totalorder %s28, 0
    %p180 = por %p178, %p179
    %p181 = scmp.ne.s32.totalorder %s169, %s170
    %p182 = scmp.eq.s32.totalorder %s29, 1
    %p183 = por %p181, %p182
    %p185 = scmp.ne.s32.totalorder %s170, %s184
    %p186 = scmp.eq.s32.totalorder %s29, 0
    %p187 = por %p185, %p186
    %s189 = sadd.s32 %s188, 1
    %p192 = scmp.eq.s32.totalorder %s23, 1
    %p193 = scmp.ne.s32.totalorder %s188, %s190
    %p194 = scmp.eq.s32.totalorder %s23, 0
    %p195 = por %p193, %p194
    %p196 = scmp.ne.s32.totalorder %s188, %s190
    %p197 = scmp.eq.s32.totalorder %s28, 1
    %p198 = por %p196, %p197
    %p199 = scmp.ne.s32.totalorder %s190, %s191
    %p200 = scmp.eq.s32.totalorder %s28, 0
    %p201 = por %p199, %p200
    %p202 = scmp.ne.s32.totalorder %s190, %s191
    %p203 = scmp.eq.s32.totalorder %s29, 1
    %p204 = por %p202, %p203
    %p206 = scmp.ne.s32.totalorder %s191, %s205
    %p207 = scmp.eq.s32.totalorder %s29, 0
    %p208 = por %p206, %p207
    %s210 = sadd.s32 %s209, 1
    %p213 = scmp.eq.s32.totalorder %s23, 1
    %p214 = scmp.ne.s32.totalorder %s209, %s211
    %p215 = scmp.eq.s32.totalorder %s23, 0
    %p216 = por %p214, %p215
    %p217 = scmp.ne.s32.totalorder %s209, %s211
    %p218 = scmp.eq.s32.totalorder %s28, 1
    %p219 = por %p217, %p218
    %p220 = scmp.ne.s32.totalorder %s211, %s212
    %p221 = scmp.eq.s32.totalorder %s28, 0
    %p222 = por %p220, %p221
    %p223 = scmp.ne.s32.totalorder %s211, %s212
    %p224 = scmp.eq.s32.totalorder %s29, 1
    %p225 = por %p223, %p224
    %p227 = scmp.ne.s32.totalorder %s212, %s226
    %p228 = scmp.eq.s32.totalorder %s29, 0
    %p229 = por %p227, %p228
    %s231 = sadd.s32 %s230, 1
    %p234 = scmp.eq.s32.totalorder %s23, 1
    %p235 = scmp.ne.s32.totalorder %s230, %s232
    %p236 = scmp.eq.s32.totalorder %s23, 0
    %p237 = por %p235, %p236
    %p238 = scmp.ne.s32.totalorder %s230, %s232
    %p239 = scmp.eq.s32.totalorder %s28, 1
    %p240 = por %p238, %p239
    %p241 = scmp.ne.s32.totalorder %s232, %s233
    %p242 = scmp.eq.s32.totalorder %s28, 0
    %p243 = por %p241, %p242
    %p244 = scmp.ne.s32.totalorder %s232, %s233
    %p245 = scmp.eq.s32.totalorder %s29, 1
    %p246 = por %p244, %p245
    %p248 = scmp.ne.s32.totalorder %s233, %s247
    %p249 = scmp.eq.s32.totalorder %s29, 0
    %p250 = por %p248, %p249
    %s252 = sadd.s32 %s251, 1
    %p255 = scmp.eq.s32.totalorder %s23, 1
    %p256 = scmp.ne.s32.totalorder %s251, %s253
    %p257 = scmp.eq.s32.totalorder %s23, 0
    %p258 = por %p256, %p257
    %p259 = scmp.ne.s32.totalorder %s251, %s253
    %p260 = scmp.eq.s32.totalorder %s28, 1
    %p261 = por %p259, %p260
    %p262 = scmp.ne.s32.totalorder %s253, %s254
    %p263 = scmp.eq.s32.totalorder %s28, 0
    %p264 = por %p262, %p263
    %p265 = scmp.ne.s32.totalorder %s253, %s254
    %p266 = scmp.eq.s32.totalorder %s29, 1
    %p267 = por %p265, %p266
    %p269 = scmp.ne.s32.totalorder %s254, %s268
    %p270 = scmp.eq.s32.totalorder %s29, 0
    %p271 = por %p269, %p270
    %s273 = sadd.s32 %s272, 1
    %p276 = scmp.eq.s32.totalorder %s23, 1
    %p277 = scmp.ne.s32.totalorder %s272, %s274
    %p278 = scmp.eq.s32.totalorder %s23, 0
    %p279 = por %p277, %p278
    %p280 = scmp.ne.s32.totalorder %s272, %s274
    %p281 = scmp.eq.s32.totalorder %s28, 1
    %p282 = por %p280, %p281
    %p283 = scmp.ne.s32.totalorder %s274, %s275
    %p284 = scmp.eq.s32.totalorder %s28, 0
    %p285 = por %p283, %p284
    %p286 = scmp.ne.s32.totalorder %s274, %s275
    %p287 = scmp.eq.s32.totalorder %s29, 1
    %p288 = por %p286, %p287
    %p290 = scmp.ne.s32.totalorder %s275, %s289
    %p291 = scmp.eq.s32.totalorder %s29, 0
    %p292 = por %p290, %p291
    %s294 = sadd.s32 %s293, 1
    %p297 = scmp.eq.s32.totalorder %s23, 1
    %p298 = scmp.ne.s32.totalorder %s293, %s295
    %p299 = scmp.eq.s32.totalorder %s23, 0
    %p300 = por %p298, %p299
    %p301 = scmp.ne.s32.totalorder %s293, %s295
    %p302 = scmp.eq.s32.totalorder %s28, 1
    %p303 = por %p301, %p302
    %p304 = scmp.ne.s32.totalorder %s295, %s296
    %p305 = scmp.eq.s32.totalorder %s28, 0
    %p306 = por %p304, %p305
    %p307 = scmp.ne.s32.totalorder %s295, %s296
    %p308 = scmp.eq.s32.totalorder %s29, 1
    %p309 = por %p307, %p308
    %p311 = scmp.ne.s32.totalorder %s296, %s310
    %p312 = scmp.eq.s32.totalorder %s29, 0
    %p313 = por %p311, %p312
    %s315 = sadd.s32 %s314, 1
    %p318 = scmp.eq.s32.totalorder %s23, 1
    %p319 = scmp.ne.s32.totalorder %s314, %s316
    %p320 = scmp.eq.s32.totalorder %s23, 0
    %p321 = por %p319, %p320
    %p322 = scmp.ne.s32.totalorder %s314, %s316
    %p323 = scmp.eq.s32.totalorder %s28, 1
    %p324 = por %p322, %p323
    %p325 = scmp.ne.s32.totalorder %s316, %s317
    %p326 = scmp.eq.s32.totalorder %s28, 0
    %p327 = por %p325, %p326
    %p328 = scmp.ne.s32.totalorder %s316, %s317
    %p329 = scmp.eq.s32.totalorder %s29, 1
    %p330 = por %p328, %p329
    %p332 = scmp.ne.s32.totalorder %s317, %s331
    %p333 = scmp.eq.s32.totalorder %s29, 0
    %p334 = por %p332, %p333
    %s336 = sadd.s32 %s335, 1
    %p339 = scmp.eq.s32.totalorder %s23, 1
    %p340 = scmp.ne.s32.totalorder %s335, %s337
    %p341 = scmp.eq.s32.totalorder %s23, 0
    %p342 = por %p340, %p341
    %p343 = scmp.ne.s32.totalorder %s335, %s337
    %p344 = scmp.eq.s32.totalorder %s28, 1
    %p345 = por %p343, %p344
    %p346 = scmp.ne.s32.totalorder %s337, %s338
    %p347 = scmp.eq.s32.totalorder %s28, 0
    %p348 = por %p346, %p347
    %p349 = scmp.ne.s32.totalorder %s337, %s338
    %p350 = scmp.eq.s32.totalorder %s29, 1
    %p351 = por %p349, %p350
    %p353 = scmp.ne.s32.totalorder %s338, %s352
    %p354 = scmp.eq.s32.totalorder %s29, 0
    %p355 = por %p353, %p354
    %s357 = sadd.s32 %s356, 1
    %p360 = scmp.eq.s32.totalorder %s23, 1
    %p361 = scmp.ne.s32.totalorder %s356, %s358
    %p362 = scmp.eq.s32.totalorder %s23, 0
    %p363 = por %p361, %p362
    %p364 = scmp.ne.s32.totalorder %s356, %s358
    %p365 = scmp.eq.s32.totalorder %s28, 1
    %p366 = por %p364, %p365
    %p367 = scmp.ne.s32.totalorder %s358, %s359
    %p368 = scmp.eq.s32.totalorder %s28, 0
    %p369 = por %p367, %p368
    %p370 = scmp.ne.s32.totalorder %s358, %s359
    %p371 = scmp.eq.s32.totalorder %s29, 1
    %p372 = por %p370, %p371
    %p374 = scmp.ne.s32.totalorder %s359, %s373
    %p375 = scmp.eq.s32.totalorder %s29, 0
    %p376 = por %p374, %p375
    %s378 = sadd.s32 %s377, 1
    %p381 = scmp.eq.s32.totalorder %s23, 1
    %p382 = scmp.ne.s32.totalorder %s377, %s379
    %p383 = scmp.eq.s32.totalorder %s23, 0
    %p384 = por %p382, %p383
    %p385 = scmp.ne.s32.totalorder %s377, %s379
    %p386 = scmp.eq.s32.totalorder %s28, 1
    %p387 = por %p385, %p386
    %p388 = scmp.ne.s32.totalorder %s379, %s380
    %p389 = scmp.eq.s32.totalorder %s28, 0
    %p390 = por %p388, %p389
    %p391 = scmp.ne.s32.totalorder %s379, %s380
    %p392 = scmp.eq.s32.totalorder %s29, 1
    %p393 = por %p391, %p392
    %p395 = scmp.ne.s32.totalorder %s380, %s394
    %p396 = scmp.eq.s32.totalorder %s29, 0
    %p397 = por %p395, %p396
    %s398 = ssub.s32 %s23, %s30
    %p399 = scmp.eq.s32.totalorder %s398, 0
    %s401 = sadd.s32 %s400, 1
    %s402 = scalar_select %p399, %s400, %s401
    %p405 = pneg %p399
    %p406 = scmp.eq.s32.totalorder %s23, 1
    %p407 = por %p405, %p406
    %p408 = scmp.ne.s32.totalorder %s400, %s403
    %p409 = scmp.eq.s32.totalorder %s23, 0
    %p410 = por %p408, %p409
    %p411 = scmp.ne.s32.totalorder %s400, %s403
    %p412 = scmp.eq.s32.totalorder %s28, 1
    %p413 = por %p411, %p412
    %p414 = scmp.ne.s32.totalorder %s403, %s404
    %p415 = scmp.eq.s32.totalorder %s28, 0
    %p416 = por %p414, %p415
    %p417 = scmp.ne.s32.totalorder %s403, %s404
    %p418 = scmp.eq.s32.totalorder %s29, 1
    %p419 = por %p417, %p418
    %p421 = scmp.ne.s32.totalorder %s404, %s420
    %p422 = scmp.eq.s32.totalorder %s29, 0
    %p423 = por %p421, %p422
    %p424 = scmp.le.s32.totalorder 1, %s23
    %p425 = scmp.lt.s32.totalorder %s23, 3
    %p426 = pnand %p424, %p425
    %p427 = pneg %p426
    // Predicated region
    $region9: #{conv_up_forward.1} parent=5 // pred_check
      _
    $region10: #{conv_up_forward.1} parent=5 // pred_check_branch
      %429 = sbr.rel (%p426) target = $region12
    $region11: #{conv_up_forward.1} parent=5 // pred_region
      %s430 = ssub.s32 %s23, 1
      // Predicated region
      $region13: #{conv_up_forward.1} parent=11 // pred_check
        %p431 = pneg %p96
      $region14: #{conv_up_forward.1} parent=11 // pred_check_branch
        %433 = sbr.rel (%p431) target = $region16
      $region15: #{conv_up_forward.1} parent=11 // pred_region
        _
      $region16: #{conv_up_forward.1} parent=11 // pred_fallthru
        _
      // Predicated region
      $region17: #{conv_up_forward.1} parent=11 // pred_check
        %p434 = pneg %p117
      $region18: #{conv_up_forward.1} parent=11 // pred_check_branch
        %436 = sbr.rel (%p434) target = $region20
      $region19: #{conv_up_forward.1} parent=11 // pred_region
        _
      $region20: #{conv_up_forward.1} parent=11 // pred_fallthru
        _
      // Predicated region
      $region21: #{conv_up_forward.1} parent=11 // pred_check
        %p437 = pneg %p138
      $region22: #{conv_up_forward.1} parent=11 // pred_check_branch
        %439 = sbr.rel (%p437) target = $region24
      $region23: #{conv_up_forward.1} parent=11 // pred_region
        _
      $region24: #{conv_up_forward.1} parent=11 // pred_fallthru
        _
      // Predicated region
      $region25: #{conv_up_forward.1} parent=11 // pred_check
        %p440 = pneg %p159
      $region26: #{conv_up_forward.1} parent=11 // pred_check_branch
        %442 = sbr.rel (%p440) target = $region28
      $region27: #{conv_up_forward.1} parent=11 // pred_region
        _
      $region28: #{conv_up_forward.1} parent=11 // pred_fallthru
        _
      // Predicated region
      $region29: #{conv_up_forward.1} parent=11 // pred_check
        %p443 = pneg %p180
      $region30: #{conv_up_forward.1} parent=11 // pred_check_branch
        %445 = sbr.rel (%p443) target = $region32
      $region31: #{conv_up_forward.1} parent=11 // pred_region
        _
      $region32: #{conv_up_forward.1} parent=11 // pred_fallthru
        _
      // Predicated region
      $region33: #{conv_up_forward.1} parent=11 // pred_check
        %p446 = pneg %p201
      $region34: #{conv_up_forward.1} parent=11 // pred_check_branch
        %448 = sbr.rel (%p446) target = $region36
      $region35: #{conv_up_forward.1} parent=11 // pred_region
        _
      $region36: #{conv_up_forward.1} parent=11 // pred_fallthru
        _
      // Predicated region
      $region37: #{conv_up_forward.1} parent=11 // pred_check
        %p449 = pneg %p222
      $region38: #{conv_up_forward.1} parent=11 // pred_check_branch
        %451 = sbr.rel (%p449) target = $region40
      $region39: #{conv_up_forward.1} parent=11 // pred_region
        _
      $region40: #{conv_up_forward.1} parent=11 // pred_fallthru
        _
      // Predicated region
      $region41: #{conv_up_forward.1} parent=11 // pred_check
        %p452 = pneg %p243
      $region42: #{conv_up_forward.1} parent=11 // pred_check_branch
        %454 = sbr.rel (%p452) target = $region44
      $region43: #{conv_up_forward.1} parent=11 // pred_region
        _
      $region44: #{conv_up_forward.1} parent=11 // pred_fallthru
        _
      // Predicated region
      $region45: #{conv_up_forward.1} parent=11 // pred_check
        %p455 = pneg %p264
      $region46: #{conv_up_forward.1} parent=11 // pred_check_branch
        %457 = sbr.rel (%p455) target = $region48
      $region47: #{conv_up_forward.1} parent=11 // pred_region
        _
      $region48: #{conv_up_forward.1} parent=11 // pred_fallthru
        _
      // Predicated region
      $region49: #{conv_up_forward.1} parent=11 // pred_check
        %p458 = pneg %p285
      $region50: #{conv_up_forward.1} parent=11 // pred_check_branch
        %460 = sbr.rel (%p458) target = $region52
      $region51: #{conv_up_forward.1} parent=11 // pred_region
        _
      $region52: #{conv_up_forward.1} parent=11 // pred_fallthru
        _
      // Predicated region
      $region53: #{conv_up_forward.1} parent=11 // pred_check
        %p461 = pneg %p306
      $region54: #{conv_up_forward.1} parent=11 // pred_check_branch
        %463 = sbr.rel (%p461) target = $region56
      $region55: #{conv_up_forward.1} parent=11 // pred_region
        _
      $region56: #{conv_up_forward.1} parent=11 // pred_fallthru
        _
      // Predicated region
      $region57: #{conv_up_forward.1} parent=11 // pred_check
        %p464 = pneg %p327
      $region58: #{conv_up_forward.1} parent=11 // pred_check_branch
        %466 = sbr.rel (%p464) target = $region60
      $region59: #{conv_up_forward.1} parent=11 // pred_region
        _
      $region60: #{conv_up_forward.1} parent=11 // pred_fallthru
        _
      // Predicated region
      $region61: #{conv_up_forward.1} parent=11 // pred_check
        %p467 = pneg %p348
      $region62: #{conv_up_forward.1} parent=11 // pred_check_branch
        %469 = sbr.rel (%p467) target = $region64
      $region63: #{conv_up_forward.1} parent=11 // pred_region
        _
      $region64: #{conv_up_forward.1} parent=11 // pred_fallthru
        _
      // Predicated region
      $region65: #{conv_up_forward.1} parent=11 // pred_check
        %p470 = pneg %p369
      $region66: #{conv_up_forward.1} parent=11 // pred_check_branch
        %472 = sbr.rel (%p470) target = $region68
      $region67: #{conv_up_forward.1} parent=11 // pred_region
        _
      $region68: #{conv_up_forward.1} parent=11 // pred_fallthru
        _
      // Predicated region
      $region69: #{conv_up_forward.1} parent=11 // pred_check
        %p473 = pneg %p390
      $region70: #{conv_up_forward.1} parent=11 // pred_check_branch
        %475 = sbr.rel (%p473) target = $region72
      $region71: #{conv_up_forward.1} parent=11 // pred_region
        _
      $region72: #{conv_up_forward.1} parent=11 // pred_fallthru
        _
    $region12: #{conv_up_forward.1} parent=5 // pred_fallthru
      _
    %p476 = scmp.lt.s32.totalorder %s23, 2
    // Predicated region
    $region73: #{conv_up_forward.1} parent=5 // pred_check
      %p477 = pneg %p476
    $region74: #{conv_up_forward.1} parent=5 // pred_check_branch
      %479 = sbr.rel (%p477) target = $region76
    $region75: #{conv_up_forward.1} parent=5 // pred_region
      // Predicated region
      $region77: #{conv_up_forward.1} parent=75 // pred_check
        %p480 = pneg %p43
      $region78: #{conv_up_forward.1} parent=75 // pred_check_branch
        %482 = sbr.rel (%p480) target = $region80
      $region79: #{conv_up_forward.1} parent=75 // pred_region
        %p483 = scmp.lt.s32.totalorder %s23, 1
        %s484 = scalar_select %p483, %s23, 1
        %s485 = smul.addr %s484, 4
        %s486 = smul.addr %s485, 8
        %s487 = scalar_lea.vmem %s0, %s486
      $region80: #{conv_up_forward.1} parent=75 // pred_fallthru
        _
      // Predicated region
      $region81: #{conv_up_forward.1} parent=75 // pred_check
        %p488 = pneg %p69
      $region82: #{conv_up_forward.1} parent=75 // pred_check_branch
        %490 = sbr.rel (%p488) target = $region84
      $region83: #{conv_up_forward.1} parent=75 // pred_region
        %p491 = scmp.lt.s32.totalorder %s23, 1
        %s492 = scalar_select %p491, %s23, 1
        %s493 = smul.addr %s492, 4
        %s494 = smul.addr %s493, 8
        %s495 = scalar_lea.vmem %s1, %s494
      $region84: #{conv_up_forward.1} parent=75 // pred_fallthru
        _
    $region76: #{conv_up_forward.1} parent=5 // pred_fallthru
      _
    %p496 = scmp.le.s32.totalorder 1, %s23
    %p497 = scmp.lt.s32.totalorder %s23, 3
    %p498 = pnand %p496, %p497
    %p499 = pneg %p498
    // Predicated region
    $region85: #{conv_up_forward.1} parent=5 // pred_check
      _
    $region86: #{conv_up_forward.1} parent=5 // pred_check_branch
      %501 = sbr.rel (%p498) target = $region88
    $region87: #{conv_up_forward.1} parent=5 // pred_region
      %s502 = ssub.s32 %s23, 1
      %p503 = scmp.lt.s32.totalorder %s28, 1
      %s504 = scalar_select %p503, %s28, 1
      %s505 = smul.addr %s504, 4
      %s506 = smul.addr %s505, 8
      %s507 = scalar_lea.vmem %s0, %s506
      %p508 = pneg %p49
      %p509 = pneg %p46
      %p510 = scmp.lt.s32.totalorder %s28, 1
      %s511 = scalar_select %p510, %s28, 1
      %s512 = smul.addr %s511, 4
      %s513 = smul.addr %s512, 8
      %s514 = scalar_lea.vmem %s1, %s513
      %p515 = pneg %p75
      %p516 = pneg %p72
      %p517 = pneg %p96
      %p518 = pneg %p93
      %p519 = pneg %p117
      %p520 = pneg %p114
      %p521 = pneg %p138
      %p522 = pneg %p135
      %p523 = pneg %p159
      %p524 = pneg %p156
      %p525 = pneg %p180
      %p526 = pneg %p177
      %p527 = pneg %p201
      %p528 = pneg %p198
      %p529 = pneg %p222
      %p530 = pneg %p219
      %p531 = pneg %p243
      %p532 = pneg %p240
      %p533 = pneg %p264
      %p534 = pneg %p261
      %p535 = pneg %p285
      %p536 = pneg %p282
      %p537 = pneg %p306
      %p538 = pneg %p303
      %p539 = pneg %p327
      %p540 = pneg %p324
      %p541 = pneg %p348
      %p542 = pneg %p345
      %p543 = pneg %p369
      %p544 = pneg %p366
      %p545 = pneg %p390
      %p546 = pneg %p387
      %p547 = pneg %p416
      %p548 = pneg %p413
      %p549 = scmp.lt.s32.totalorder %s28, 1
      %s550 = scalar_select %p549, %s28, 1
      %s551 = smul.addr %s550, 4
      %s552 = smul.addr %s551, 8
      %s553 = scalar_lea.vmem %s17, %s552
      %p554 = scmp.lt.s32.totalorder %s28, 1
      %s555 = scalar_select %p554, %s28, 1
      %s556 = smul.addr %s555, 4
      %s557 = smul.addr %s556, 8
      %s558 = scalar_lea.vmem %s0, %s557
      %p559 = scmp.lt.s32.totalorder %s28, 1
      %s560 = scalar_select %p559, %s28, 1
      %s561 = smul.addr %s560, 4
      %s562 = smul.addr %s561, 8
      %s563 = scalar_lea.vmem %s1, %s562
      %p564 = scmp.lt.s32.totalorder %s28, 1
      %s565 = scalar_select %p564, %s28, 1
      %s566 = smul.addr %s565, 4
      %s567 = smul.addr %s566, 8
      %s568 = scalar_lea.vmem %s17, %s567
      %v569 = vld [vmem:[%s558] sm:$0xff]
      %v570 = vld [vmem:[%s558 + $0x8] sm:$0xff]
      %v571 = vld [vmem:[%s558 + $0x10] sm:$0xf]
      %v572 = vld [vmem:[%s558 + $0x18] sm:$0xf]
      %v573 = vld [vmem:[%s563] sm:$0xff]
      %v574 = vld [vmem:[%s563 + $0x8] sm:$0xff]
      %v575 = vld [vmem:[%s563 + $0x10] sm:$0xf]
      %v576 = vld [vmem:[%s563 + $0x18] sm:$0xf]
      %v577 = vld [vmem:[%s2] sm:$0xff]
      %v578 = vld [vmem:[%s3] sm:$0x3f]
      %v579 = vld [vmem:[%s3 + $0x8] sm:$0x3f]
      %v580 = vperm.slane %v578, 0
      %v581 = vperm.slane %v579, 0
      %v582 = vmul.f32 %v580, %v569
      %v583 = vmul.f32 %v581, %v570
      %v584 = vmul.f32 %v580, %v571
      %v585 = vmul.f32 %v581, %v572
      %586 = vrot.lane.b32.xlu0 %v569, 1
      %v587 = vpop.permute.xlu0 %586
      %588 = vrot.lane.b32.xlu0 %v571, 1
      %v589 = vpop.permute.xlu0 %588
      %590 = vrot.lane.b32.xlu0 %v570, 1
      %v591 = vpop.permute.xlu0 %590
      %592 = vrot.lane.b32.xlu0 %v572, 1
      %v593 = vpop.permute.xlu0 %592
      %v594 = vlaneseq
      %v595 = vand.u32 %v594, 127
      %vm596 = vcmp.lt.s32.totalorder %v595, 1
      %v597 = vsel %vm596, %v587, %v591
      %v598 = vsel %vm596, %v589, %v593
      %v599 = vsel %vm596, %v591, %v587
      %v600 = vsel %vm596, %v593, %v589
      %v601 = vperm.slane %v578, 1
      %v602 = vperm.slane %v579, 1
      %v603 = vmul.f32 %v601, %v599
      %v604 = vmul.f32 %v602, %v597
      %v605 = vmul.f32 %v601, %v600
      %v606 = vmul.f32 %v602, %v598
      %v607 = vadd.f32 %v582, %v603
      %v608 = vadd.f32 %v583, %v604
      %v609 = vadd.f32 %v584, %v605
      %v610 = vadd.f32 %v585, %v606
      %611 = vrot.lane.b32.xlu0 %v569, 127
      %v612 = vpop.permute.xlu0 %611
      %613 = vrot.lane.b32.xlu0 %v571, 127
      %v614 = vpop.permute.xlu0 %613
      %615 = vrot.lane.b32.xlu0 %v570, 127
      %v616 = vpop.permute.xlu0 %615
      %617 = vrot.lane.b32.xlu0 %v572, 127
      %v618 = vpop.permute.xlu0 %617
      %vm619 = vcmp.lt.s32.totalorder %v595, 127
      %v620 = vsel %vm619, %v612, %v616
      %v621 = vsel %vm619, %v614, %v618
      %v622 = vsel %vm619, %v616, %v612
      %v623 = vsel %vm619, %v618, %v614
      %v624 = vperm.slane %v578, 2
      %v625 = vperm.slane %v579, 2
      %v626 = vmul.f32 %v624, %v620
      %v627 = vmul.f32 %v625, %v622
      %v628 = vmul.f32 %v624, %v621
      %v629 = vmul.f32 %v625, %v623
      %v630 = vadd.f32 %v607, %v626
      %v631 = vadd.f32 %v608, %v627
      %v632 = vadd.f32 %v609, %v628
      %v633 = vadd.f32 %v610, %v629
      %v634 = vperm.slane %v578, 3
      %v635 = vperm.slane %v579, 3
      %v636 = vmul.f32 %v634, %v630
      %v637 = vmul.f32 %v635, %v631
      %v638 = vmul.f32 %v634, %v632
      %v639 = vmul.f32 %v635, %v633
      %640 = vrot.lane.b32.xlu0 %v630, 16
      %v641 = vpop.permute.xlu0 %640
      %642 = vrot.lane.b32.xlu0 %v632, 16
      %v643 = vpop.permute.xlu0 %642
      %644 = vrot.lane.b32.xlu0 %v631, 16
      %v645 = vpop.permute.xlu0 %644
      %646 = vrot.lane.b32.xlu0 %v633, 16
      %v647 = vpop.permute.xlu0 %646
      %vm648 = vcmp.lt.s32.totalorder %v595, 16
      %v649 = vsel %vm648, %v641, %v645
      %v650 = vsel %vm648, %v643, %v647
      %v651 = vsel %vm648, %v645, %v641
      %v652 = vsel %vm648, %v647, %v643
      %v653 = vperm.slane %v578, 4
      %v654 = vperm.slane %v579, 4
      %v655 = vmul.f32 %v653, %v651
      %v656 = vmul.f32 %v654, %v649
      %v657 = vmul.f32 %v653, %v652
      %v658 = vmul.f32 %v654, %v650
      %v659 = vadd.f32 %v636, %v655
      %v660 = vadd.f32 %v637, %v656
      %v661 = vadd.f32 %v638, %v657
      %v662 = vadd.f32 %v639, %v658
      %663 = vrot.lane.b32.xlu0 %v630, 112
      %v664 = vpop.permute.xlu0 %663
      %665 = vrot.lane.b32.xlu0 %v632, 112
      %v666 = vpop.permute.xlu0 %665
      %667 = vrot.lane.b32.xlu0 %v631, 112
      %v668 = vpop.permute.xlu0 %667
      %669 = vrot.lane.b32.xlu0 %v633, 112
      %v670 = vpop.permute.xlu0 %669
      %vm671 = vcmp.lt.s32.totalorder %v595, 112
      %v672 = vsel %vm671, %v664, %v668
      %v673 = vsel %vm671, %v666, %v670
      %v674 = vsel %vm671, %v668, %v664
      %v675 = vsel %vm671, %v670, %v666
      %v676 = vperm.slane %v578, 5
      %v677 = vperm.slane %v579, 5
      %v678 = vmul.f32 %v676, %v672
      %v679 = vmul.f32 %v677, %v674
      %v680 = vmul.f32 %v676, %v673
      %v681 = vmul.f32 %v677, %v675
      %v682 = vadd.f32 %v659, %v678
      %v683 = vadd.f32 %v660, %v679
      %v684 = vadd.f32 %v661, %v680
      %v685 = vadd.f32 %v662, %v681
      %v686 = vld [vmem:[%s4] sm:$0xff]
      %v687 = vld [vmem:[%s4 + $0x8] sm:$0xff]
      %v688 = vld [vmem:[%s4 + $0x10] sm:$0xff]
      %v689 = vld [vmem:[%s5] sm:$0xff]
      %v690 = vld [vmem:[%s5 + $0x8] sm:$0xff]
      %v691 = vld [vmem:[%s5 + $0x10] sm:$0xff]
      %vm692 = vcmask 97280
      %v694 = vsel %vm692, %v689, 0
      %v697 = vsel %vm692, %v690, 0
      %v700 = vsel %vm692, %v691, 0
      %vm702 = vcmask 1043456
      %v704 = vsel %vm702, %v575, 0
      %v707 = vsel %vm702, %v576, 0
      %709 = vmatpush.msra.mxu0 0.0
      %710 = vmatpush.msra.mxu0 0.0
      %711 = vmatpush.msra.mxu0 0.0
      %712 = vmatpush.msra.mxu0 0.0
      %713 = vmatpush.msra.mxu0 0.0
      %714 = vmatpush.msra.mxu0 0.0
      %715 = vmatpush.msra.mxu0 0.0
      %716 = vmatpush.msra.mxu0 0.0
      %717 = vmatpush.msra.mxu0 0.0
      %718 = vmatpush.msra.mxu0 0.0
      %719 = vmatpush.msra.mxu0 0.0
      %720 = vmatpush.msra.mxu0 0.0
      %721 = vmatpush.msra.mxu0 0.0
      %722 = vmatpush.msra.mxu0 0.0
      %723 = vmatpush.msra.mxu0 %v704
      %724 = vmatpush.msra.mxu0 %v573
      %725 = vmatmul.f32.gmra.mxu0 %v694
      %v726 = vpop.f32.mrf.mxu0
      %v727 = vadd.f32 0.0, %v726
      %728 = vmatmul.f32.gmra.mxu0 %v697
      %v729 = vpop.f32.mrf.mxu0
      %v730 = vadd.f32 0.0, %v729
      %731 = vmatmul.f32.gmra.mxu0 %v700
      %v732 = vpop.f32.mrf.mxu0
      %v733 = vadd.f32 0.0, %v732
      %734 = vdwg.mxu0
      %735 = vmatpush.msra.mxu0 0.0
      %736 = vmatpush.msra.mxu0 0.0
      %737 = vmatpush.msra.mxu0 0.0
      %738 = vmatpush.msra.mxu0 0.0
      %739 = vmatpush.msra.mxu0 0.0
      %740 = vmatpush.msra.mxu0 0.0
      %741 = vmatpush.msra.mxu0 0.0
      %742 = vmatpush.msra.mxu0 0.0
      %743 = vmatpush.msra.mxu0 0.0
      %744 = vmatpush.msra.mxu0 0.0
      %745 = vmatpush.msra.mxu0 0.0
      %746 = vmatpush.msra.mxu0 0.0
      %747 = vmatpush.msra.mxu0 0.0
      %748 = vmatpush.msra.mxu0 0.0
      %749 = vmatpush.msra.mxu0 %v707
      %750 = vmatpush.msra.mxu0 %v574
      %751 = vmatmul.f32.gmra.mxu0 %v694
      %v752 = vpop.f32.mrf.mxu0
      %v753 = vadd.f32 0.0, %v752
      %754 = vmatmul.f32.gmra.mxu0 %v697
      %v755 = vpop.f32.mrf.mxu0
      %v756 = vadd.f32 0.0, %v755
      %757 = vmatmul.f32.gmra.mxu0 %v700
      %v758 = vpop.f32.mrf.mxu0
      %v759 = vadd.f32 0.0, %v758
      %760 = vdwg.mxu0
      %v762 = vsel %vm692, %v686, 0
      %v765 = vsel %vm692, %v687, 0
      %v768 = vsel %vm692, %v688, 0
      %v771 = vsel %vm702, %v684, 0
      %v774 = vsel %vm702, %v685, 0
      %776 = vmatpush.msra.mxu0 0.0
      %777 = vmatpush.msra.mxu0 0.0
      %778 = vmatpush.msra.mxu0 0.0
      %779 = vmatpush.msra.mxu0 0.0
      %780 = vmatpush.msra.mxu0 0.0
      %781 = vmatpush.msra.mxu0 0.0
      %782 = vmatpush.msra.mxu0 0.0
      %783 = vmatpush.msra.mxu0 0.0
      %784 = vmatpush.msra.mxu0 0.0
      %785 = vmatpush.msra.mxu0 0.0
      %786 = vmatpush.msra.mxu0 0.0
      %787 = vmatpush.msra.mxu0 0.0
      %788 = vmatpush.msra.mxu0 0.0
      %789 = vmatpush.msra.mxu0 0.0
      %790 = vmatpush.msra.mxu0 %v771
      %791 = vmatpush.msra.mxu0 %v682
      %792 = vmatmul.f32.gmra.mxu0 %v762
      %v793 = vpop.f32.mrf.mxu0
      %v794 = vadd.f32 %v727, %v793
      %795 = vmatmul.f32.gmra.mxu0 %v765
      %v796 = vpop.f32.mrf.mxu0
      %v797 = vadd.f32 %v730, %v796
      %798 = vmatmul.f32.gmra.mxu0 %v768
      %v799 = vpop.f32.mrf.mxu0
      %v800 = vadd.f32 %v733, %v799
      %801 = vdwg.mxu0
      %802 = vmatpush.msra.mxu0 0.0
      %803 = vmatpush.msra.mxu0 0.0
      %804 = vmatpush.msra.mxu0 0.0
      %805 = vmatpush.msra.mxu0 0.0
      %806 = vmatpush.msra.mxu0 0.0
      %807 = vmatpush.msra.mxu0 0.0
      %808 = vmatpush.msra.mxu0 0.0
      %809 = vmatpush.msra.mxu0 0.0
      %810 = vmatpush.msra.mxu0 0.0
      %811 = vmatpush.msra.mxu0 0.0
      %812 = vmatpush.msra.mxu0 0.0
      %813 = vmatpush.msra.mxu0 0.0
      %814 = vmatpush.msra.mxu0 0.0
      %815 = vmatpush.msra.mxu0 0.0
      %816 = vmatpush.msra.mxu0 %v774
      %817 = vmatpush.msra.mxu0 %v683
      %818 = vmatmul.f32.gmra.mxu0 %v762
      %v819 = vpop.f32.mrf.mxu0
      %v820 = vadd.f32 %v753, %v819
      %821 = vmatmul.f32.gmra.mxu0 %v765
      %v822 = vpop.f32.mrf.mxu0
      %v823 = vadd.f32 %v756, %v822
      %824 = vmatmul.f32.gmra.mxu0 %v768
      %v825 = vpop.f32.mrf.mxu0
      %v826 = vadd.f32 %v759, %v825
      %827 = vdwg.mxu0
      %v828 = vld [vmem:[%s6] sm:$0xff]
      %v829 = vld [vmem:[%s6 + $0x8] sm:$0xff]
      %v830 = vld [vmem:[%s6 + $0x10] sm:$0xff]
      %832 = vset.pattern.permute.xlu0 0
      %833 = vperm.xlu0 %832, %v828
      %v834 = vpop.permute.xlu0 %833
      %837 = vset.pattern.permute.xlu0 0
      %838 = vperm.xlu0 %837, %v829
      %v839 = vpop.permute.xlu0 %838
      %842 = vset.pattern.permute.xlu0 0
      %843 = vperm.xlu0 %842, %v830
      %v844 = vpop.permute.xlu0 %843
      %v846 = vadd.f32 %v794, %v834
      %v847 = vadd.f32 %v820, %v834
      %v848 = vadd.f32 %v797, %v839
      %v849 = vadd.f32 %v823, %v839
      %v850 = vadd.f32 %v800, %v844
      %v851 = vadd.f32 %v826, %v844
      %v852 = vadd.f32 %v846, %v847
      %853 = vadd.xlane.f32.xlu0 %v852
      %v854 = vpop.xlane.xlu0 %853
      %v855 = vsel %vm702, %v848, 0.0
      %v856 = vsel %vm702, %v849, 0.0
      %v857 = vadd.f32 %v855, %v856
      %858 = vadd.xlane.f32.xlu0 %v857
      %v859 = vpop.xlane.xlu0 %858
      %v860 = vrcp.pop 256.0
      %v861 = vmul.f32 256.0, %v860
      %v862 = vsub.f32 1.0, %v861
      %v863 = vmul.f32 %v860, %v862
      %v864 = vadd.f32 %v860, %v863
      %vm865 = vweird.f32 %v860
      %v866 = vsel %vm865, %v860, %v864
      %v867 = vmul.f32 %v854, %v866
      %v868 = vmul.f32 %v859, %v866
      %v869 = vmul.f32 %v846, %v846
      %v870 = vmul.f32 %v847, %v847
      %v871 = vmul.f32 %v848, %v848
      %v872 = vmul.f32 %v849, %v849
      %v873 = vadd.f32 %v869, %v870
      %874 = vadd.xlane.f32.xlu0 %v873
      %v875 = vpop.xlane.xlu0 %874
      %v876 = vsel %vm702, %v871, 0.0
      %v877 = vsel %vm702, %v872, 0.0
      %v878 = vadd.f32 %v876, %v877
      %879 = vadd.xlane.f32.xlu0 %v878
      %v880 = vpop.xlane.xlu0 %879
      %v881 = vmul.f32 %v875, %v866
      %v882 = vmul.f32 %v880, %v866
      %v883 = vmul.f32 %v867, %v867
      %v884 = vmul.f32 %v868, %v868
      %v885 = vsub.f32 %v881, %v883
      %v886 = vsub.f32 %v882, %v884
      %v887 = vmax.f32 %v885, 0.0
      %v888 = vmax.f32 %v886, 0.0
      %v889 = vsub.f32 %v846, %v867
      %v890 = vsub.f32 %v847, %v867
      %v891 = vsub.f32 %v848, %v868
      %v892 = vsub.f32 %v849, %v868
      %v893 = vadd.f32 %v887, 1e-05
      %v894 = vadd.f32 %v888, 1e-05
      %v895 = vrsqrt.pop %v893
      %v896 = vmul.f32 %v895, %v893
      %v897 = vmul.f32 %v896, %v895
      %v898 = vmul.f32 0.5, %v897
      %v899 = vsub.f32 1.5, %v898
      %v900 = vmul.f32 %v895, %v899
      %vm901 = vweird.f32 %v893
      %vm902 = vweird.f32 %v895
      %vm903 = vmor %vm901, %vm902
      %v904 = vsel %vm903, %v895, %v900
      %v905 = vrsqrt.pop %v894
      %v906 = vmul.f32 %v905, %v894
      %v907 = vmul.f32 %v906, %v905
      %v908 = vmul.f32 0.5, %v907
      %v909 = vsub.f32 1.5, %v908
      %v910 = vmul.f32 %v905, %v909
      %vm911 = vweird.f32 %v894
      %vm912 = vweird.f32 %v905
      %vm913 = vmor %vm911, %vm912
      %v914 = vsel %vm913, %v905, %v910
      %v915 = vmul.f32 %v889, %v904
      %v916 = vmul.f32 %v890, %v904
      %v917 = vmul.f32 %v891, %v914
      %v918 = vmul.f32 %v892, %v914
      %v919 = vmax.f32 %v915, 0.0
      %v920 = vmax.f32 %v916, 0.0
      %v921 = vmax.f32 %v917, 0.0
      %v922 = vmax.f32 %v918, 0.0
      %v927 = vrot.slane %v848, 4
      %v928 = vrot.slane %v850, 4
      %v929 = vsel %vm702, %v927, %v928
      %v930 = vrot.slane %v849, 4
      %v931 = vrot.slane %v851, 4
      %v932 = vsel %vm702, %v930, %v931
      %937 = vst [vmem:[#allocation2] sm:$0xff] %v929
      %938 = vst [vmem:[#allocation2 + $0x8] sm:$0xff] %v932
      %939 = vst [vmem:[#allocation2 + $0x10] sm:$0xf] %v928
      %940 = vst [vmem:[#allocation2 + $0x18] sm:$0xf] %v931
      %v943 = vrot.slane %v919, 6
      %v944 = vrot.slane %v920, 6
      %v947 = vadd.f32 %v919, %v943
      %v948 = vadd.f32 %v920, %v944
      %v951 = vrot.slane %v947, 2
      %v952 = vrot.slane %v948, 2
      %955 = vrot.lane.b32.xlu0 %v951, 1
      %v956 = vpop.permute.xlu0 %955
      %957 = vrot.lane.b32.xlu0 %v952, 1
      %v958 = vpop.permute.xlu0 %957
      %v959 = vsel %vm596, %v956, %v958
      %v960 = vsel %vm596, %v958, %v956
      %v962 = vperm.slane %v577, 0
      %v963 = vperm.slane %v577, 4
      %v966 = vperm.slane %v962, 0
      %v967 = vperm.slane %v963, 0
      %v968 = vmul.f32 %v960, %v966
      %v969 = vmul.f32 %v959, %v967
      %970 = vrot.lane.b32.xlu0 %v951, 127
      %v971 = vpop.permute.xlu0 %970
      %972 = vrot.lane.b32.xlu0 %v952, 127
      %v973 = vpop.permute.xlu0 %972
      %v974 = vsel %vm619, %v971, %v973
      %v975 = vsel %vm619, %v973, %v971
      %v976 = vperm.slane %v577, 1
      %v977 = vperm.slane %v577, 5
      %v980 = vperm.slane %v976, 1
      %v981 = vperm.slane %v977, 1
      %v982 = vmul.f32 %v974, %v980
      %v983 = vmul.f32 %v975, %v981
      %v984 = vld [vmem:[%s7] sm:$0x3]
      %s985 = scalar_lea.vmem %s7, 2
      %v986 = vld [vmem:[%s985] sm:$0x3]
      %vm987 = vcmask 15360
      %v989 = vsel %vm987, %v986, 0
      %vm991 = vcmask 1041408
      %v992 = vsel %vm991, %v951, 0
      %v994 = vsel %vm991, %v952, 0
      %996 = vmatpush.msra.mxu0 0.0
      %997 = vmatpush.msra.mxu0 0.0
      %998 = vmatpush.msra.mxu0 0.0
      %999 = vmatpush.msra.mxu0 0.0
      %1000 = vmatpush.msra.mxu0 0.0
      %1001 = vmatpush.msra.mxu0 0.0
      %1002 = vmatpush.msra.mxu0 0.0
      %1003 = vmatpush.msra.mxu0 0.0
      %1004 = vmatpush.msra.mxu0 0.0
      %1005 = vmatpush.msra.mxu0 0.0
      %1006 = vmatpush.msra.mxu0 0.0
      %1007 = vmatpush.msra.mxu0 0.0
      %1008 = vmatpush.msra.mxu0 0.0
      %1009 = vmatpush.msra.mxu0 0.0
      %1010 = vmatpush.msra.mxu0 0.0
      %1011 = vmatpush.msra.mxu0 %v992
      %1012 = vmatmul.f32.gmra.mxu0 %v989
      %v1013 = vpop.f32.mrf.mxu0
      %v1014 = vadd.f32 0.0, %v1013
      %1015 = vdwg.mxu0
      %1016 = vmatpush.msra.mxu0 0.0
      %1017 = vmatpush.msra.mxu0 0.0
      %1018 = vmatpush.msra.mxu0 0.0
      %1019 = vmatpush.msra.mxu0 0.0
      %1020 = vmatpush.msra.mxu0 0.0
      %1021 = vmatpush.msra.mxu0 0.0
      %1022 = vmatpush.msra.mxu0 0.0
      %1023 = vmatpush.msra.mxu0 0.0
      %1024 = vmatpush.msra.mxu0 0.0
      %1025 = vmatpush.msra.mxu0 0.0
      %1026 = vmatpush.msra.mxu0 0.0
      %1027 = vmatpush.msra.mxu0 0.0
      %1028 = vmatpush.msra.mxu0 0.0
      %1029 = vmatpush.msra.mxu0 0.0
      %1030 = vmatpush.msra.mxu0 0.0
      %1031 = vmatpush.msra.mxu0 %v994
      %1032 = vmatmul.f32.gmra.mxu0 %v989
      %v1033 = vpop.f32.mrf.mxu0
      %v1034 = vadd.f32 0.0, %v1033
      %1035 = vdwg.mxu0
      %v1037 = vsel %vm987, %v984, 0
      %v1040 = vsel %vm991, %v968, 0
      %v1043 = vsel %vm991, %v969, 0
      %1045 = vmatpush.msra.mxu0 0.0
      %1046 = vmatpush.msra.mxu0 0.0
      %1047 = vmatpush.msra.mxu0 0.0
      %1048 = vmatpush.msra.mxu0 0.0
      %1049 = vmatpush.msra.mxu0 0.0
      %1050 = vmatpush.msra.mxu0 0.0
      %1051 = vmatpush.msra.mxu0 0.0
      %1052 = vmatpush.msra.mxu0 0.0
      %1053 = vmatpush.msra.mxu0 0.0
      %1054 = vmatpush.msra.mxu0 0.0
      %1055 = vmatpush.msra.mxu0 0.0
      %1056 = vmatpush.msra.mxu0 0.0
      %1057 = vmatpush.msra.mxu0 0.0
      %1058 = vmatpush.msra.mxu0 0.0
      %1059 = vmatpush.msra.mxu0 0.0
      %1060 = vmatpush.msra.mxu0 %v1040
      %1061 = vmatmul.f32.gmra.mxu0 %v1037
      %v1062 = vpop.f32.mrf.mxu0
      %v1063 = vadd.f32 %v1014, %v1062
      %1064 = vdwg.mxu0
      %1065 = vmatpush.msra.mxu0 0.0
      %1066 = vmatpush.msra.mxu0 0.0
      %1067 = vmatpush.msra.mxu0 0.0
      %1068 = vmatpush.msra.mxu0 0.0
      %1069 = vmatpush.msra.mxu0 0.0
      %1070 = vmatpush.msra.mxu0 0.0
      %1071 = vmatpush.msra.mxu0 0.0
      %1072 = vmatpush.msra.mxu0 0.0
      %1073 = vmatpush.msra.mxu0 0.0
      %1074 = vmatpush.msra.mxu0 0.0
      %1075 = vmatpush.msra.mxu0 0.0
      %1076 = vmatpush.msra.mxu0 0.0
      %1077 = vmatpush.msra.mxu0 0.0
      %1078 = vmatpush.msra.mxu0 0.0
      %1079 = vmatpush.msra.mxu0 0.0
      %1080 = vmatpush.msra.mxu0 %v1043
      %1081 = vmatmul.f32.gmra.mxu0 %v1037
      %v1082 = vpop.f32.mrf.mxu0
      %v1083 = vadd.f32 %v1034, %v1082
      %1084 = vdwg.mxu0
      %s1085 = scalar_lea.vmem %s7, 4
      %v1086 = vld [vmem:[%s1085] sm:$0x3]
      %v1088 = vsel %vm987, %v1086, 0
      %v1091 = vsel %vm991, %v982, 0
      %v1094 = vsel %vm991, %v983, 0
      %1096 = vmatpush.msra.mxu0 0.0
      %1097 = vmatpush.msra.mxu0 0.0
      %1098 = vmatpush.msra.mxu0 0.0
      %1099 = vmatpush.msra.mxu0 0.0
      %1100 = vmatpush.msra.mxu0 0.0
      %1101 = vmatpush.msra.mxu0 0.0
      %1102 = vmatpush.msra.mxu0 0.0
      %1103 = vmatpush.msra.mxu0 0.0
      %1104 = vmatpush.msra.mxu0 0.0
      %1105 = vmatpush.msra.mxu0 0.0
      %1106 = vmatpush.msra.mxu0 0.0
      %1107 = vmatpush.msra.mxu0 0.0
      %1108 = vmatpush.msra.mxu0 0.0
      %1109 = vmatpush.msra.mxu0 0.0
      %1110 = vmatpush.msra.mxu0 0.0
      %1111 = vmatpush.msra.mxu0 %v1091
      %1112 = vmatmul.f32.gmra.mxu0 %v1088
      %v1113 = vpop.f32.mrf.mxu0
      %v1114 = vadd.f32 0.0, %v1113
      %1115 = vdwg.mxu0
      %1116 = vmatpush.msra.mxu0 0.0
      %1117 = vmatpush.msra.mxu0 0.0
      %1118 = vmatpush.msra.mxu0 0.0
      %1119 = vmatpush.msra.mxu0 0.0
      %1120 = vmatpush.msra.mxu0 0.0
      %1121 = vmatpush.msra.mxu0 0.0
      %1122 = vmatpush.msra.mxu0 0.0
      %1123 = vmatpush.msra.mxu0 0.0
      %1124 = vmatpush.msra.mxu0 0.0
      %1125 = vmatpush.msra.mxu0 0.0
      %1126 = vmatpush.msra.mxu0 0.0
      %1127 = vmatpush.msra.mxu0 0.0
      %1128 = vmatpush.msra.mxu0 0.0
      %1129 = vmatpush.msra.mxu0 0.0
      %1130 = vmatpush.msra.mxu0 0.0
      %1131 = vmatpush.msra.mxu0 %v1094
      %1132 = vmatmul.f32.gmra.mxu0 %v1088
      %v1133 = vpop.f32.mrf.mxu0
      %v1134 = vadd.f32 0.0, %v1133
      %1135 = vdwg.mxu0
      %v1136 = vadd.f32 %v1063, %v1114
      %v1137 = vadd.f32 %v1083, %v1134
      %v1138 = vld [vmem:[%s8] sm:$0x3]
      %1140 = vset.pattern.permute.xlu0 0
      %1141 = vperm.xlu0 %1140, %v1138
      %v1142 = vpop.permute.xlu0 %1141
      %v1144 = vadd.f32 %v1136, %v1142
      %v1145 = vadd.f32 %v1137, %v1142
      %v1146 = vsel %vm991, %v1144, 0.0
      %v1147 = vsel %vm991, %v1145, 0.0
      %v1148 = vadd.f32 %v1146, %v1147
      %1149 = vadd.xlane.f32.xlu0 %v1148
      %v1150 = vpop.xlane.xlu0 %1149
      %v1151 = vmul.f32 %v1150, %v866
      %v1152 = vmul.f32 %v1144, %v1144
      %v1153 = vmul.f32 %v1145, %v1145
      %v1154 = vsel %vm991, %v1152, 0.0
      %v1155 = vsel %vm991, %v1153, 0.0
      %v1156 = vadd.f32 %v1154, %v1155
      %1157 = vadd.xlane.f32.xlu0 %v1156
      %v1158 = vpop.xlane.xlu0 %1157
      %v1159 = vmul.f32 %v1158, %v866
      %v1160 = vmul.f32 %v1151, %v1151
      %v1161 = vsub.f32 %v1159, %v1160
      %v1162 = vmax.f32 %v1161, 0.0
      %v1163 = vsub.f32 %v1144, %v1151
      %v1164 = vsub.f32 %v1145, %v1151
      %v1165 = vadd.f32 %v1162, 1e-05
      %v1166 = vrsqrt.pop %v1165
      %v1167 = vmul.f32 %v1166, %v1165
      %v1168 = vmul.f32 %v1167, %v1166
      %v1169 = vmul.f32 0.5, %v1168
      %v1170 = vsub.f32 1.5, %v1169
      %v1171 = vmul.f32 %v1166, %v1170
      %vm1172 = vweird.f32 %v1165
      %vm1173 = vweird.f32 %v1166
      %vm1174 = vmor %vm1172, %vm1173
      %v1175 = vsel %vm1174, %v1166, %v1171
      %v1176 = vmul.f32 %v1163, %v1175
      %v1177 = vmul.f32 %v1164, %v1175
      %v1178 = vmax.f32 %v1176, 0.0
      %v1179 = vmax.f32 %v1177, 0.0
      %v1182 = vrot.slane %v1178, 4
      %v1183 = vrot.slane %v1179, 4
      %v1186 = vadd.f32 %v919, %v1182
      %v1187 = vadd.f32 %v920, %v1183
      %v1190 = vrot.slane %v1186, 4
      %v1191 = vrot.slane %v1187, 4
      %1194 = vrot.lane.b32.xlu0 %v1190, 1
      %v1195 = vpop.permute.xlu0 %1194
      %1196 = vrot.lane.b32.xlu0 %v1191, 1
      %v1197 = vpop.permute.xlu0 %1196
      %v1198 = vsel %vm596, %v1195, %v1197
      %v1199 = vsel %vm596, %v1197, %v1195
      %v1200 = vmul.f32 %v1199, %v966
      %v1201 = vmul.f32 %v1198, %v967
      %1202 = vrot.lane.b32.xlu0 %v1190, 127
      %v1203 = vpop.permute.xlu0 %1202
      %1204 = vrot.lane.b32.xlu0 %v1191, 127
      %v1205 = vpop.permute.xlu0 %1204
      %v1206 = vsel %vm619, %v1203, %v1205
      %v1207 = vsel %vm619, %v1205, %v1203
      %v1208 = vmul.f32 %v1206, %v980
      %v1209 = vmul.f32 %v1207, %v981
      %s1210 = scalar_lea.vmem %s7, 6
      %v1211 = vld [vmem:[%s1210] sm:$0x3]
      %s1212 = scalar_lea.vmem %s7, 8
      %v1213 = vld [vmem:[%s1212] sm:$0x3]
      %v1215 = vsel %vm987, %v1213, 0
      %v1217 = vsel %vm991, %v1190, 0
      %v1219 = vsel %vm991, %v1191, 0
      %1221 = vmatpush.msra.mxu0 0.0
      %1222 = vmatpush.msra.mxu0 0.0
      %1223 = vmatpush.msra.mxu0 0.0
      %1224 = vmatpush.msra.mxu0 0.0
      %1225 = vmatpush.msra.mxu0 0.0
      %1226 = vmatpush.msra.mxu0 0.0
      %1227 = vmatpush.msra.mxu0 0.0
      %1228 = vmatpush.msra.mxu0 0.0
      %1229 = vmatpush.msra.mxu0 0.0
      %1230 = vmatpush.msra.mxu0 0.0
      %1231 = vmatpush.msra.mxu0 0.0
      %1232 = vmatpush.msra.mxu0 0.0
      %1233 = vmatpush.msra.mxu0 0.0
      %1234 = vmatpush.msra.mxu0 0.0
      %1235 = vmatpush.msra.mxu0 0.0
      %1236 = vmatpush.msra.mxu0 %v1217
      %1237 = vmatmul.f32.gmra.mxu0 %v1215
      %v1238 = vpop.f32.mrf.mxu0
      %v1239 = vadd.f32 0.0, %v1238
      %1240 = vdwg.mxu0
      %1241 = vmatpush.msra.mxu0 0.0
      %1242 = vmatpush.msra.mxu0 0.0
      %1243 = vmatpush.msra.mxu0 0.0
      %1244 = vmatpush.msra.mxu0 0.0
      %1245 = vmatpush.msra.mxu0 0.0
      %1246 = vmatpush.msra.mxu0 0.0
      %1247 = vmatpush.msra.mxu0 0.0
      %1248 = vmatpush.msra.mxu0 0.0
      %1249 = vmatpush.msra.mxu0 0.0
      %1250 = vmatpush.msra.mxu0 0.0
      %1251 = vmatpush.msra.mxu0 0.0
      %1252 = vmatpush.msra.mxu0 0.0
      %1253 = vmatpush.msra.mxu0 0.0
      %1254 = vmatpush.msra.mxu0 0.0
      %1255 = vmatpush.msra.mxu0 0.0
      %1256 = vmatpush.msra.mxu0 %v1219
      %1257 = vmatmul.f32.gmra.mxu0 %v1215
      %v1258 = vpop.f32.mrf.mxu0
      %v1259 = vadd.f32 0.0, %v1258
      %1260 = vdwg.mxu0
      %v1262 = vsel %vm987, %v1211, 0
      %v1265 = vsel %vm991, %v1200, 0
      %v1268 = vsel %vm991, %v1201, 0
      %1270 = vmatpush.msra.mxu0 0.0
      %1271 = vmatpush.msra.mxu0 0.0
      %1272 = vmatpush.msra.mxu0 0.0
      %1273 = vmatpush.msra.mxu0 0.0
      %1274 = vmatpush.msra.mxu0 0.0
      %1275 = vmatpush.msra.mxu0 0.0
      %1276 = vmatpush.msra.mxu0 0.0
      %1277 = vmatpush.msra.mxu0 0.0
      %1278 = vmatpush.msra.mxu0 0.0
      %1279 = vmatpush.msra.mxu0 0.0
      %1280 = vmatpush.msra.mxu0 0.0
      %1281 = vmatpush.msra.mxu0 0.0
      %1282 = vmatpush.msra.mxu0 0.0
      %1283 = vmatpush.msra.mxu0 0.0
      %1284 = vmatpush.msra.mxu0 0.0
      %1285 = vmatpush.msra.mxu0 %v1265
      %1286 = vmatmul.f32.gmra.mxu0 %v1262
      %v1287 = vpop.f32.mrf.mxu0
      %v1288 = vadd.f32 %v1239, %v1287
      %1289 = vdwg.mxu0
      %1290 = vmatpush.msra.mxu0 0.0
      %1291 = vmatpush.msra.mxu0 0.0
      %1292 = vmatpush.msra.mxu0 0.0
      %1293 = vmatpush.msra.mxu0 0.0
      %1294 = vmatpush.msra.mxu0 0.0
      %1295 = vmatpush.msra.mxu0 0.0
      %1296 = vmatpush.msra.mxu0 0.0
      %1297 = vmatpush.msra.mxu0 0.0
      %1298 = vmatpush.msra.mxu0 0.0
      %1299 = vmatpush.msra.mxu0 0.0
      %1300 = vmatpush.msra.mxu0 0.0
      %1301 = vmatpush.msra.mxu0 0.0
      %1302 = vmatpush.msra.mxu0 0.0
      %1303 = vmatpush.msra.mxu0 0.0
      %1304 = vmatpush.msra.mxu0 0.0
      %1305 = vmatpush.msra.mxu0 %v1268
      %1306 = vmatmul.f32.gmra.mxu0 %v1262
      %v1307 = vpop.f32.mrf.mxu0
      %v1308 = vadd.f32 %v1259, %v1307
      %1309 = vdwg.mxu0
      %s1310 = scalar_lea.vmem %s7, 10
      %v1311 = vld [vmem:[%s1310] sm:$0x3]
      %v1313 = vsel %vm987, %v1311, 0
      %v1316 = vsel %vm991, %v1208, 0
      %v1319 = vsel %vm991, %v1209, 0
      %1321 = vmatpush.msra.mxu0 0.0
      %1322 = vmatpush.msra.mxu0 0.0
      %1323 = vmatpush.msra.mxu0 0.0
      %1324 = vmatpush.msra.mxu0 0.0
      %1325 = vmatpush.msra.mxu0 0.0
      %1326 = vmatpush.msra.mxu0 0.0
      %1327 = vmatpush.msra.mxu0 0.0
      %1328 = vmatpush.msra.mxu0 0.0
      %1329 = vmatpush.msra.mxu0 0.0
      %1330 = vmatpush.msra.mxu0 0.0
      %1331 = vmatpush.msra.mxu0 0.0
      %1332 = vmatpush.msra.mxu0 0.0
      %1333 = vmatpush.msra.mxu0 0.0
      %1334 = vmatpush.msra.mxu0 0.0
      %1335 = vmatpush.msra.mxu0 0.0
      %1336 = vmatpush.msra.mxu0 %v1316
      %1337 = vmatmul.f32.gmra.mxu0 %v1313
      %v1338 = vpop.f32.mrf.mxu0
      %v1339 = vadd.f32 0.0, %v1338
      %1340 = vdwg.mxu0
      %1341 = vmatpush.msra.mxu0 0.0
      %1342 = vmatpush.msra.mxu0 0.0
      %1343 = vmatpush.msra.mxu0 0.0
      %1344 = vmatpush.msra.mxu0 0.0
      %1345 = vmatpush.msra.mxu0 0.0
      %1346 = vmatpush.msra.mxu0 0.0
      %1347 = vmatpush.msra.mxu0 0.0
      %1348 = vmatpush.msra.mxu0 0.0
      %1349 = vmatpush.msra.mxu0 0.0
      %1350 = vmatpush.msra.mxu0 0.0
      %1351 = vmatpush.msra.mxu0 0.0
      %1352 = vmatpush.msra.mxu0 0.0
      %1353 = vmatpush.msra.mxu0 0.0
      %1354 = vmatpush.msra.mxu0 0.0
      %1355 = vmatpush.msra.mxu0 0.0
      %1356 = vmatpush.msra.mxu0 %v1319
      %1357 = vmatmul.f32.gmra.mxu0 %v1313
      %v1358 = vpop.f32.mrf.mxu0
      %v1359 = vadd.f32 0.0, %v1358
      %1360 = vdwg.mxu0
      %v1361 = vadd.f32 %v1288, %v1339
      %v1362 = vadd.f32 %v1308, %v1359
      %s1363 = scalar_lea.vmem %s8, 2
      %v1364 = vld [vmem:[%s1363] sm:$0x3]
      %1366 = vset.pattern.permute.xlu0 0
      %1367 = vperm.xlu0 %1366, %v1364
      %v1368 = vpop.permute.xlu0 %1367
      %v1370 = vadd.f32 %v1361, %v1368
      %v1371 = vadd.f32 %v1362, %v1368
      %v1372 = vsel %vm991, %v1370, 0.0
      %v1373 = vsel %vm991, %v1371, 0.0
      %v1374 = vadd.f32 %v1372, %v1373
      %1375 = vadd.xlane.f32.xlu0 %v1374
      %v1376 = vpop.xlane.xlu0 %1375
      %v1377 = vmul.f32 %v1376, %v866
      %v1378 = vmul.f32 %v1370, %v1370
      %v1379 = vmul.f32 %v1371, %v1371
      %v1380 = vsel %vm991, %v1378, 0.0
      %v1381 = vsel %vm991, %v1379, 0.0
      %v1382 = vadd.f32 %v1380, %v1381
      %1383 = vadd.xlane.f32.xlu0 %v1382
      %v1384 = vpop.xlane.xlu0 %1383
      %v1385 = vmul.f32 %v1384, %v866
      %v1386 = vmul.f32 %v1377, %v1377
      %v1387 = vsub.f32 %v1385, %v1386
      %v1388 = vmax.f32 %v1387, 0.0
      %v1389 = vsub.f32 %v1370, %v1377
      %v1390 = vsub.f32 %v1371, %v1377
      %v1391 = vadd.f32 %v1388, 1e-05
      %v1392 = vrsqrt.pop %v1391
      %v1393 = vmul.f32 %v1392, %v1391
      %v1394 = vmul.f32 %v1393, %v1392
      %v1395 = vmul.f32 0.5, %v1394
      %v1396 = vsub.f32 1.5, %v1395
      %v1397 = vmul.f32 %v1392, %v1396
      %vm1398 = vweird.f32 %v1391
      %vm1399 = vweird.f32 %v1392
      %vm1400 = vmor %vm1398, %vm1399
      %v1401 = vsel %vm1400, %v1392, %v1397
      %v1402 = vmul.f32 %v1389, %v1401
      %v1403 = vmul.f32 %v1390, %v1401
      %v1404 = vmax.f32 %v1402, 0.0
      %v1405 = vmax.f32 %v1403, 0.0
      %v1408 = vrot.slane %v1404, 2
      %v1409 = vrot.slane %v1405, 2
      %v1412 = vadd.f32 %v919, %v1408
      %v1413 = vadd.f32 %v920, %v1409
      %v1416 = vrot.slane %v1412, 6
      %v1417 = vrot.slane %v1413, 6
      %1420 = vrot.lane.b32.xlu0 %v1416, 1
      %v1421 = vpop.permute.xlu0 %1420
      %1422 = vrot.lane.b32.xlu0 %v1417, 1
      %v1423 = vpop.permute.xlu0 %1422
      %v1424 = vsel %vm596, %v1421, %v1423
      %v1425 = vsel %vm596, %v1423, %v1421
      %v1426 = vmul.f32 %v1425, %v966
      %v1427 = vmul.f32 %v1424, %v967
      %1428 = vrot.lane.b32.xlu0 %v1416, 127
      %v1429 = vpop.permute.xlu0 %1428
      %1430 = vrot.lane.b32.xlu0 %v1417, 127
      %v1431 = vpop.permute.xlu0 %1430
      %v1432 = vsel %vm619, %v1429, %v1431
      %v1433 = vsel %vm619, %v1431, %v1429
      %v1434 = vmul.f32 %v1432, %v980
      %v1435 = vmul.f32 %v1433, %v981
      %s1436 = scalar_lea.vmem %s7, 12
      %v1437 = vld [vmem:[%s1436] sm:$0x3]
      %s1438 = scalar_lea.vmem %s7, 14
      %v1439 = vld [vmem:[%s1438] sm:$0x3]
      %v1441 = vsel %vm987, %v1439, 0
      %v1443 = vsel %vm991, %v1416, 0
      %v1445 = vsel %vm991, %v1417, 0
      %1447 = vmatpush.msra.mxu0 0.0
      %1448 = vmatpush.msra.mxu0 0.0
      %1449 = vmatpush.msra.mxu0 0.0
      %1450 = vmatpush.msra.mxu0 0.0
      %1451 = vmatpush.msra.mxu0 0.0
      %1452 = vmatpush.msra.mxu0 0.0
      %1453 = vmatpush.msra.mxu0 0.0
      %1454 = vmatpush.msra.mxu0 0.0
      %1455 = vmatpush.msra.mxu0 0.0
      %1456 = vmatpush.msra.mxu0 0.0
      %1457 = vmatpush.msra.mxu0 0.0
      %1458 = vmatpush.msra.mxu0 0.0
      %1459 = vmatpush.msra.mxu0 0.0
      %1460 = vmatpush.msra.mxu0 0.0
      %1461 = vmatpush.msra.mxu0 0.0
      %1462 = vmatpush.msra.mxu0 %v1443
      %1463 = vmatmul.f32.gmra.mxu0 %v1441
      %v1464 = vpop.f32.mrf.mxu0
      %v1465 = vadd.f32 0.0, %v1464
      %1466 = vdwg.mxu0
      %1467 = vmatpush.msra.mxu0 0.0
      %1468 = vmatpush.msra.mxu0 0.0
      %1469 = vmatpush.msra.mxu0 0.0
      %1470 = vmatpush.msra.mxu0 0.0
      %1471 = vmatpush.msra.mxu0 0.0
      %1472 = vmatpush.msra.mxu0 0.0
      %1473 = vmatpush.msra.mxu0 0.0
      %1474 = vmatpush.msra.mxu0 0.0
      %1475 = vmatpush.msra.mxu0 0.0
      %1476 = vmatpush.msra.mxu0 0.0
      %1477 = vmatpush.msra.mxu0 0.0
      %1478 = vmatpush.msra.mxu0 0.0
      %1479 = vmatpush.msra.mxu0 0.0
      %1480 = vmatpush.msra.mxu0 0.0
      %1481 = vmatpush.msra.mxu0 0.0
      %1482 = vmatpush.msra.mxu0 %v1445
      %1483 = vmatmul.f32.gmra.mxu0 %v1441
      %v1484 = vpop.f32.mrf.mxu0
      %v1485 = vadd.f32 0.0, %v1484
      %1486 = vdwg.mxu0
      %v1488 = vsel %vm987, %v1437, 0
      %v1491 = vsel %vm991, %v1426, 0
      %v1494 = vsel %vm991, %v1427, 0
      %1496 = vmatpush.msra.mxu0 0.0
      %1497 = vmatpush.msra.mxu0 0.0
      %1498 = vmatpush.msra.mxu0 0.0
      %1499 = vmatpush.msra.mxu0 0.0
      %1500 = vmatpush.msra.mxu0 0.0
      %1501 = vmatpush.msra.mxu0 0.0
      %1502 = vmatpush.msra.mxu0 0.0
      %1503 = vmatpush.msra.mxu0 0.0
      %1504 = vmatpush.msra.mxu0 0.0
      %1505 = vmatpush.msra.mxu0 0.0
      %1506 = vmatpush.msra.mxu0 0.0
      %1507 = vmatpush.msra.mxu0 0.0
      %1508 = vmatpush.msra.mxu0 0.0
      %1509 = vmatpush.msra.mxu0 0.0
      %1510 = vmatpush.msra.mxu0 0.0
      %1511 = vmatpush.msra.mxu0 %v1491
      %1512 = vmatmul.f32.gmra.mxu0 %v1488
      %v1513 = vpop.f32.mrf.mxu0
      %v1514 = vadd.f32 %v1465, %v1513
      %1515 = vdwg.mxu0
      %1516 = vmatpush.msra.mxu0 0.0
      %1517 = vmatpush.msra.mxu0 0.0
      %1518 = vmatpush.msra.mxu0 0.0
      %1519 = vmatpush.msra.mxu0 0.0
      %1520 = vmatpush.msra.mxu0 0.0
      %1521 = vmatpush.msra.mxu0 0.0
      %1522 = vmatpush.msra.mxu0 0.0
      %1523 = vmatpush.msra.mxu0 0.0
      %1524 = vmatpush.msra.mxu0 0.0
      %1525 = vmatpush.msra.mxu0 0.0
      %1526 = vmatpush.msra.mxu0 0.0
      %1527 = vmatpush.msra.mxu0 0.0
      %1528 = vmatpush.msra.mxu0 0.0
      %1529 = vmatpush.msra.mxu0 0.0
      %1530 = vmatpush.msra.mxu0 0.0
      %1531 = vmatpush.msra.mxu0 %v1494
      %1532 = vmatmul.f32.gmra.mxu0 %v1488
      %v1533 = vpop.f32.mrf.mxu0
      %v1534 = vadd.f32 %v1485, %v1533
      %1535 = vdwg.mxu0
      %s1536 = scalar_lea.vmem %s7, 16
      %v1537 = vld [vmem:[%s1536] sm:$0x3]
      %v1539 = vsel %vm987, %v1537, 0
      %v1542 = vsel %vm991, %v1434, 0
      %v1545 = vsel %vm991, %v1435, 0
      %1547 = vmatpush.msra.mxu0 0.0
      %1548 = vmatpush.msra.mxu0 0.0
      %1549 = vmatpush.msra.mxu0 0.0
      %1550 = vmatpush.msra.mxu0 0.0
      %1551 = vmatpush.msra.mxu0 0.0
      %1552 = vmatpush.msra.mxu0 0.0
      %1553 = vmatpush.msra.mxu0 0.0
      %1554 = vmatpush.msra.mxu0 0.0
      %1555 = vmatpush.msra.mxu0 0.0
      %1556 = vmatpush.msra.mxu0 0.0
      %1557 = vmatpush.msra.mxu0 0.0
      %1558 = vmatpush.msra.mxu0 0.0
      %1559 = vmatpush.msra.mxu0 0.0
      %1560 = vmatpush.msra.mxu0 0.0
      %1561 = vmatpush.msra.mxu0 0.0
      %1562 = vmatpush.msra.mxu0 %v1542
      %1563 = vmatmul.f32.gmra.mxu0 %v1539
      %v1564 = vpop.f32.mrf.mxu0
      %v1565 = vadd.f32 0.0, %v1564
      %1566 = vdwg.mxu0
      %1567 = vmatpush.msra.mxu0 0.0
      %1568 = vmatpush.msra.mxu0 0.0
      %1569 = vmatpush.msra.mxu0 0.0
      %1570 = vmatpush.msra.mxu0 0.0
      %1571 = vmatpush.msra.mxu0 0.0
      %1572 = vmatpush.msra.mxu0 0.0
      %1573 = vmatpush.msra.mxu0 0.0
      %1574 = vmatpush.msra.mxu0 0.0
      %1575 = vmatpush.msra.mxu0 0.0
      %1576 = vmatpush.msra.mxu0 0.0
      %1577 = vmatpush.msra.mxu0 0.0
      %1578 = vmatpush.msra.mxu0 0.0
      %1579 = vmatpush.msra.mxu0 0.0
      %1580 = vmatpush.msra.mxu0 0.0
      %1581 = vmatpush.msra.mxu0 0.0
      %1582 = vmatpush.msra.mxu0 %v1545
      %1583 = vmatmul.f32.gmra.mxu0 %v1539
      %v1584 = vpop.f32.mrf.mxu0
      %v1585 = vadd.f32 0.0, %v1584
      %1586 = vdwg.mxu0
      %v1587 = vadd.f32 %v1514, %v1565
      %v1588 = vadd.f32 %v1534, %v1585
      %s1589 = scalar_lea.vmem %s8, 4
      %v1590 = vld [vmem:[%s1589] sm:$0x3]
      %1592 = vset.pattern.permute.xlu0 0
      %1593 = vperm.xlu0 %1592, %v1590
      %v1594 = vpop.permute.xlu0 %1593
      %v1596 = vadd.f32 %v1587, %v1594
      %v1597 = vadd.f32 %v1588, %v1594
      %v1598 = vsel %vm991, %v1596, 0.0
      %v1599 = vsel %vm991, %v1597, 0.0
      %v1600 = vadd.f32 %v1598, %v1599
      %1601 = vadd.xlane.f32.xlu0 %v1600
      %v1602 = vpop.xlane.xlu0 %1601
      %v1603 = vmul.f32 %v1602, %v866
      %v1604 = vmul.f32 %v1596, %v1596
      %v1605 = vmul.f32 %v1597, %v1597
      %v1606 = vsel %vm991, %v1604, 0.0
      %v1607 = vsel %vm991, %v1605, 0.0
      %v1608 = vadd.f32 %v1606, %v1607
      %1609 = vadd.xlane.f32.xlu0 %v1608
      %v1610 = vpop.xlane.xlu0 %1609
      %v1611 = vmul.f32 %v1610, %v866
      %v1612 = vmul.f32 %v1603, %v1603
      %v1613 = vsub.f32 %v1611, %v1612
      %v1614 = vmax.f32 %v1613, 0.0
      %v1615 = vsub.f32 %v1596, %v1603
      %v1616 = vsub.f32 %v1597, %v1603
      %v1617 = vadd.f32 %v1614, 1e-05
      %v1618 = vrsqrt.pop %v1617
      %v1619 = vmul.f32 %v1618, %v1617
      %v1620 = vmul.f32 %v1619, %v1618
      %v1621 = vmul.f32 0.5, %v1620
      %v1622 = vsub.f32 1.5, %v1621
      %v1623 = vmul.f32 %v1618, %v1622
      %vm1624 = vweird.f32 %v1617
      %vm1625 = vweird.f32 %v1618
      %vm1626 = vmor %vm1624, %vm1625
      %v1627 = vsel %vm1626, %v1618, %v1623
      %v1628 = vmul.f32 %v1615, %v1627
      %v1629 = vmul.f32 %v1616, %v1627
      %v1630 = vmax.f32 %v1628, 0.0
      %v1631 = vmax.f32 %v1629, 0.0
      %v1632 = vadd.f32 %v921, %v1630
      %v1633 = vadd.f32 %v922, %v1631
      %1634 = vrot.lane.b32.xlu0 %v1632, 1
      %v1635 = vpop.permute.xlu0 %1634
      %1636 = vrot.lane.b32.xlu0 %v1633, 1
      %v1637 = vpop.permute.xlu0 %1636
      %v1638 = vsel %vm596, %v1635, %v1637
      %v1639 = vsel %vm596, %v1637, %v1635
      %v1640 = vmul.f32 %v1639, %v966
      %v1641 = vmul.f32 %v1638, %v967
      %1642 = vrot.lane.b32.xlu0 %v1632, 127
      %v1643 = vpop.permute.xlu0 %1642
      %1644 = vrot.lane.b32.xlu0 %v1633, 127
      %v1645 = vpop.permute.xlu0 %1644
      %v1646 = vsel %vm619, %v1643, %v1645
      %v1647 = vsel %vm619, %v1645, %v1643
      %v1648 = vmul.f32 %v1646, %v980
      %v1649 = vmul.f32 %v1647, %v981
      %s1650 = scalar_lea.vmem %s7, 18
      %v1651 = vld [vmem:[%s1650] sm:$0x3]
      %s1652 = scalar_lea.vmem %s7, 20
      %v1653 = vld [vmem:[%s1652] sm:$0x3]
      %v1655 = vsel %vm987, %v1653, 0
      %v1658 = vsel %vm991, %v1632, 0
      %v1661 = vsel %vm991, %v1633, 0
      %1663 = vmatpush.msra.mxu0 0.0
      %1664 = vmatpush.msra.mxu0 0.0
      %1665 = vmatpush.msra.mxu0 0.0
      %1666 = vmatpush.msra.mxu0 0.0
      %1667 = vmatpush.msra.mxu0 0.0
      %1668 = vmatpush.msra.mxu0 0.0
      %1669 = vmatpush.msra.mxu0 0.0
      %1670 = vmatpush.msra.mxu0 0.0
      %1671 = vmatpush.msra.mxu0 0.0
      %1672 = vmatpush.msra.mxu0 0.0
      %1673 = vmatpush.msra.mxu0 0.0
      %1674 = vmatpush.msra.mxu0 0.0
      %1675 = vmatpush.msra.mxu0 0.0
      %1676 = vmatpush.msra.mxu0 0.0
      %1677 = vmatpush.msra.mxu0 0.0
      %1678 = vmatpush.msra.mxu0 %v1658
      %1679 = vmatmul.f32.gmra.mxu0 %v1655
      %v1680 = vpop.f32.mrf.mxu0
      %v1681 = vadd.f32 0.0, %v1680
      %1682 = vdwg.mxu0
      %1683 = vmatpush.msra.mxu0 0.0
      %1684 = vmatpush.msra.mxu0 0.0
      %1685 = vmatpush.msra.mxu0 0.0
      %1686 = vmatpush.msra.mxu0 0.0
      %1687 = vmatpush.msra.mxu0 0.0
      %1688 = vmatpush.msra.mxu0 0.0
      %1689 = vmatpush.msra.mxu0 0.0
      %1690 = vmatpush.msra.mxu0 0.0
      %1691 = vmatpush.msra.mxu0 0.0
      %1692 = vmatpush.msra.mxu0 0.0
      %1693 = vmatpush.msra.mxu0 0.0
      %1694 = vmatpush.msra.mxu0 0.0
      %1695 = vmatpush.msra.mxu0 0.0
      %1696 = vmatpush.msra.mxu0 0.0
      %1697 = vmatpush.msra.mxu0 0.0
      %1698 = vmatpush.msra.mxu0 %v1661
      %1699 = vmatmul.f32.gmra.mxu0 %v1655
      %v1700 = vpop.f32.mrf.mxu0
      %v1701 = vadd.f32 0.0, %v1700
      %1702 = vdwg.mxu0
      %v1704 = vsel %vm987, %v1651, 0
      %v1707 = vsel %vm991, %v1640, 0
      %v1710 = vsel %vm991, %v1641, 0
      %1712 = vmatpush.msra.mxu0 0.0
      %1713 = vmatpush.msra.mxu0 0.0
      %1714 = vmatpush.msra.mxu0 0.0
      %1715 = vmatpush.msra.mxu0 0.0
      %1716 = vmatpush.msra.mxu0 0.0
      %1717 = vmatpush.msra.mxu0 0.0
      %1718 = vmatpush.msra.mxu0 0.0
      %1719 = vmatpush.msra.mxu0 0.0
      %1720 = vmatpush.msra.mxu0 0.0
      %1721 = vmatpush.msra.mxu0 0.0
      %1722 = vmatpush.msra.mxu0 0.0
      %1723 = vmatpush.msra.mxu0 0.0
      %1724 = vmatpush.msra.mxu0 0.0
      %1725 = vmatpush.msra.mxu0 0.0
      %1726 = vmatpush.msra.mxu0 0.0
      %1727 = vmatpush.msra.mxu0 %v1707
      %1728 = vmatmul.f32.gmra.mxu0 %v1704
      %v1729 = vpop.f32.mrf.mxu0
      %v1730 = vadd.f32 %v1681, %v1729
      %1731 = vdwg.mxu0
      %1732 = vmatpush.msra.mxu0 0.0
      %1733 = vmatpush.msra.mxu0 0.0
      %1734 = vmatpush.msra.mxu0 0.0
      %1735 = vmatpush.msra.mxu0 0.0
      %1736 = vmatpush.msra.mxu0 0.0
      %1737 = vmatpush.msra.mxu0 0.0
      %1738 = vmatpush.msra.mxu0 0.0
      %1739 = vmatpush.msra.mxu0 0.0
      %1740 = vmatpush.msra.mxu0 0.0
      %1741 = vmatpush.msra.mxu0 0.0
      %1742 = vmatpush.msra.mxu0 0.0
      %1743 = vmatpush.msra.mxu0 0.0
      %1744 = vmatpush.msra.mxu0 0.0
      %1745 = vmatpush.msra.mxu0 0.0
      %1746 = vmatpush.msra.mxu0 0.0
      %1747 = vmatpush.msra.mxu0 %v1710
      %1748 = vmatmul.f32.gmra.mxu0 %v1704
      %v1749 = vpop.f32.mrf.mxu0
      %v1750 = vadd.f32 %v1701, %v1749
      %1751 = vdwg.mxu0
      %s1752 = scalar_lea.vmem %s7, 22
      %v1753 = vld [vmem:[%s1752] sm:$0x3]
      %v1755 = vsel %vm987, %v1753, 0
      %v1758 = vsel %vm991, %v1648, 0
      %v1761 = vsel %vm991, %v1649, 0
      %1763 = vmatpush.msra.mxu0 0.0
      %1764 = vmatpush.msra.mxu0 0.0
      %1765 = vmatpush.msra.mxu0 0.0
      %1766 = vmatpush.msra.mxu0 0.0
      %1767 = vmatpush.msra.mxu0 0.0
      %1768 = vmatpush.msra.mxu0 0.0
      %1769 = vmatpush.msra.mxu0 0.0
      %1770 = vmatpush.msra.mxu0 0.0
      %1771 = vmatpush.msra.mxu0 0.0
      %1772 = vmatpush.msra.mxu0 0.0
      %1773 = vmatpush.msra.mxu0 0.0
      %1774 = vmatpush.msra.mxu0 0.0
      %1775 = vmatpush.msra.mxu0 0.0
      %1776 = vmatpush.msra.mxu0 0.0
      %1777 = vmatpush.msra.mxu0 0.0
      %1778 = vmatpush.msra.mxu0 %v1758
      %1779 = vmatmul.f32.gmra.mxu0 %v1755
      %v1780 = vpop.f32.mrf.mxu0
      %v1781 = vadd.f32 0.0, %v1780
      %1782 = vdwg.mxu0
      %1783 = vmatpush.msra.mxu0 0.0
      %1784 = vmatpush.msra.mxu0 0.0
      %1785 = vmatpush.msra.mxu0 0.0
      %1786 = vmatpush.msra.mxu0 0.0
      %1787 = vmatpush.msra.mxu0 0.0
      %1788 = vmatpush.msra.mxu0 0.0
      %1789 = vmatpush.msra.mxu0 0.0
      %1790 = vmatpush.msra.mxu0 0.0
      %1791 = vmatpush.msra.mxu0 0.0
      %1792 = vmatpush.msra.mxu0 0.0
      %1793 = vmatpush.msra.mxu0 0.0
      %1794 = vmatpush.msra.mxu0 0.0
      %1795 = vmatpush.msra.mxu0 0.0
      %1796 = vmatpush.msra.mxu0 0.0
      %1797 = vmatpush.msra.mxu0 0.0
      %1798 = vmatpush.msra.mxu0 %v1761
      %1799 = vmatmul.f32.gmra.mxu0 %v1755
      %v1800 = vpop.f32.mrf.mxu0
      %v1801 = vadd.f32 0.0, %v1800
      %1802 = vdwg.mxu0
      %v1803 = vadd.f32 %v1730, %v1781
      %v1804 = vadd.f32 %v1750, %v1801
      %s1805 = scalar_lea.vmem %s8, 6
      %v1806 = vld [vmem:[%s1805] sm:$0x3]
      %1808 = vset.pattern.permute.xlu0 0
      %1809 = vperm.xlu0 %1808, %v1806
      %v1810 = vpop.permute.xlu0 %1809
      %v1812 = vadd.f32 %v1803, %v1810
      %v1813 = vadd.f32 %v1804, %v1810
      %v1814 = vsel %vm991, %v1812, 0.0
      %v1815 = vsel %vm991, %v1813, 0.0
      %v1816 = vadd.f32 %v1814, %v1815
      %1817 = vadd.xlane.f32.xlu0 %v1816
      %v1818 = vpop.xlane.xlu0 %1817
      %v1819 = vmul.f32 %v1818, %v866
      %v1820 = vmul.f32 %v1812, %v1812
      %v1821 = vmul.f32 %v1813, %v1813
      %v1822 = vsel %vm991, %v1820, 0.0
      %v1823 = vsel %vm991, %v1821, 0.0
      %v1824 = vadd.f32 %v1822, %v1823
      %1825 = vadd.xlane.f32.xlu0 %v1824
      %v1826 = vpop.xlane.xlu0 %1825
      %v1827 = vmul.f32 %v1826, %v866
      %v1828 = vmul.f32 %v1819, %v1819
      %v1829 = vsub.f32 %v1827, %v1828
      %v1830 = vmax.f32 %v1829, 0.0
      %v1831 = vsub.f32 %v1812, %v1819
      %v1832 = vsub.f32 %v1813, %v1819
      %v1833 = vadd.f32 %v1830, 1e-05
      %v1834 = vrsqrt.pop %v1833
      %v1835 = vmul.f32 %v1834, %v1833
      %v1836 = vmul.f32 %v1835, %v1834
      %v1837 = vmul.f32 0.5, %v1836
      %v1838 = vsub.f32 1.5, %v1837
      %v1839 = vmul.f32 %v1834, %v1838
      %vm1840 = vweird.f32 %v1833
      %vm1841 = vweird.f32 %v1834
      %vm1842 = vmor %vm1840, %vm1841
      %v1843 = vsel %vm1842, %v1834, %v1839
      %v1844 = vmul.f32 %v1831, %v1843
      %v1845 = vmul.f32 %v1832, %v1843
      %v1846 = vmax.f32 %v1844, 0.0
      %v1847 = vmax.f32 %v1845, 0.0
      %v1850 = vrot.slane %v1846, 6
      %v1851 = vrot.slane %v1847, 6
      %v1854 = vadd.f32 %v921, %v1850
      %v1855 = vadd.f32 %v922, %v1851
      %v1858 = vrot.slane %v1854, 2
      %v1859 = vrot.slane %v1855, 2
      %1862 = vrot.lane.b32.xlu0 %v1858, 1
      %v1863 = vpop.permute.xlu0 %1862
      %1864 = vrot.lane.b32.xlu0 %v1859, 1
      %v1865 = vpop.permute.xlu0 %1864
      %v1866 = vsel %vm596, %v1863, %v1865
      %v1867 = vsel %vm596, %v1865, %v1863
      %v1868 = vmul.f32 %v1867, %v966
      %v1869 = vmul.f32 %v1866, %v967
      %1870 = vrot.lane.b32.xlu0 %v1858, 127
      %v1871 = vpop.permute.xlu0 %1870
      %1872 = vrot.lane.b32.xlu0 %v1859, 127
      %v1873 = vpop.permute.xlu0 %1872
      %v1874 = vsel %vm619, %v1871, %v1873
      %v1875 = vsel %vm619, %v1873, %v1871
      %v1876 = vmul.f32 %v1874, %v980
      %v1877 = vmul.f32 %v1875, %v981
      %s1878 = scalar_lea.vmem %s7, 24
      %v1879 = vld [vmem:[%s1878] sm:$0x3]
      %s1880 = scalar_lea.vmem %s7, 26
      %v1881 = vld [vmem:[%s1880] sm:$0x3]
      %v1883 = vsel %vm987, %v1881, 0
      %v1885 = vsel %vm991, %v1858, 0
      %v1887 = vsel %vm991, %v1859, 0
      %1889 = vmatpush.msra.mxu0 0.0
      %1890 = vmatpush.msra.mxu0 0.0
      %1891 = vmatpush.msra.mxu0 0.0
      %1892 = vmatpush.msra.mxu0 0.0
      %1893 = vmatpush.msra.mxu0 0.0
      %1894 = vmatpush.msra.mxu0 0.0
      %1895 = vmatpush.msra.mxu0 0.0
      %1896 = vmatpush.msra.mxu0 0.0
      %1897 = vmatpush.msra.mxu0 0.0
      %1898 = vmatpush.msra.mxu0 0.0
      %1899 = vmatpush.msra.mxu0 0.0
      %1900 = vmatpush.msra.mxu0 0.0
      %1901 = vmatpush.msra.mxu0 0.0
      %1902 = vmatpush.msra.mxu0 0.0
      %1903 = vmatpush.msra.mxu0 0.0
      %1904 = vmatpush.msra.mxu0 %v1885
      %1905 = vmatmul.f32.gmra.mxu0 %v1883
      %v1906 = vpop.f32.mrf.mxu0
      %v1907 = vadd.f32 0.0, %v1906
      %1908 = vdwg.mxu0
      %1909 = vmatpush.msra.mxu0 0.0
      %1910 = vmatpush.msra.mxu0 0.0
      %1911 = vmatpush.msra.mxu0 0.0
      %1912 = vmatpush.msra.mxu0 0.0
      %1913 = vmatpush.msra.mxu0 0.0
      %1914 = vmatpush.msra.mxu0 0.0
      %1915 = vmatpush.msra.mxu0 0.0
      %1916 = vmatpush.msra.mxu0 0.0
      %1917 = vmatpush.msra.mxu0 0.0
      %1918 = vmatpush.msra.mxu0 0.0
      %1919 = vmatpush.msra.mxu0 0.0
      %1920 = vmatpush.msra.mxu0 0.0
      %1921 = vmatpush.msra.mxu0 0.0
      %1922 = vmatpush.msra.mxu0 0.0
      %1923 = vmatpush.msra.mxu0 0.0
      %1924 = vmatpush.msra.mxu0 %v1887
      %1925 = vmatmul.f32.gmra.mxu0 %v1883
      %v1926 = vpop.f32.mrf.mxu0
      %v1927 = vadd.f32 0.0, %v1926
      %1928 = vdwg.mxu0
      %v1930 = vsel %vm987, %v1879, 0
      %v1933 = vsel %vm991, %v1868, 0
      %v1936 = vsel %vm991, %v1869, 0
      %1938 = vmatpush.msra.mxu0 0.0
      %1939 = vmatpush.msra.mxu0 0.0
      %1940 = vmatpush.msra.mxu0 0.0
      %1941 = vmatpush.msra.mxu0 0.0
      %1942 = vmatpush.msra.mxu0 0.0
      %1943 = vmatpush.msra.mxu0 0.0
      %1944 = vmatpush.msra.mxu0 0.0
      %1945 = vmatpush.msra.mxu0 0.0
      %1946 = vmatpush.msra.mxu0 0.0
      %1947 = vmatpush.msra.mxu0 0.0
      %1948 = vmatpush.msra.mxu0 0.0
      %1949 = vmatpush.msra.mxu0 0.0
      %1950 = vmatpush.msra.mxu0 0.0
      %1951 = vmatpush.msra.mxu0 0.0
      %1952 = vmatpush.msra.mxu0 0.0
      %1953 = vmatpush.msra.mxu0 %v1933
      %1954 = vmatmul.f32.gmra.mxu0 %v1930
      %v1955 = vpop.f32.mrf.mxu0
      %v1956 = vadd.f32 %v1907, %v1955
      %1957 = vdwg.mxu0
      %1958 = vmatpush.msra.mxu0 0.0
      %1959 = vmatpush.msra.mxu0 0.0
      %1960 = vmatpush.msra.mxu0 0.0
      %1961 = vmatpush.msra.mxu0 0.0
      %1962 = vmatpush.msra.mxu0 0.0
      %1963 = vmatpush.msra.mxu0 0.0
      %1964 = vmatpush.msra.mxu0 0.0
      %1965 = vmatpush.msra.mxu0 0.0
      %1966 = vmatpush.msra.mxu0 0.0
      %1967 = vmatpush.msra.mxu0 0.0
      %1968 = vmatpush.msra.mxu0 0.0
      %1969 = vmatpush.msra.mxu0 0.0
      %1970 = vmatpush.msra.mxu0 0.0
      %1971 = vmatpush.msra.mxu0 0.0
      %1972 = vmatpush.msra.mxu0 0.0
      %1973 = vmatpush.msra.mxu0 %v1936
      %1974 = vmatmul.f32.gmra.mxu0 %v1930
      %v1975 = vpop.f32.mrf.mxu0
      %v1976 = vadd.f32 %v1927, %v1975
      %1977 = vdwg.mxu0
      %s1978 = scalar_lea.vmem %s7, 28
      %v1979 = vld [vmem:[%s1978] sm:$0x3]
      %v1981 = vsel %vm987, %v1979, 0
      %v1984 = vsel %vm991, %v1876, 0
      %v1987 = vsel %vm991, %v1877, 0
      %1989 = vmatpush.msra.mxu0 0.0
      %1990 = vmatpush.msra.mxu0 0.0
      %1991 = vmatpush.msra.mxu0 0.0
      %1992 = vmatpush.msra.mxu0 0.0
      %1993 = vmatpush.msra.mxu0 0.0
      %1994 = vmatpush.msra.mxu0 0.0
      %1995 = vmatpush.msra.mxu0 0.0
      %1996 = vmatpush.msra.mxu0 0.0
      %1997 = vmatpush.msra.mxu0 0.0
      %1998 = vmatpush.msra.mxu0 0.0
      %1999 = vmatpush.msra.mxu0 0.0
      %2000 = vmatpush.msra.mxu0 0.0
      %2001 = vmatpush.msra.mxu0 0.0
      %2002 = vmatpush.msra.mxu0 0.0
      %2003 = vmatpush.msra.mxu0 0.0
      %2004 = vmatpush.msra.mxu0 %v1984
      %2005 = vmatmul.f32.gmra.mxu0 %v1981
      %v2006 = vpop.f32.mrf.mxu0
      %v2007 = vadd.f32 0.0, %v2006
      %2008 = vdwg.mxu0
      %2009 = vmatpush.msra.mxu0 0.0
      %2010 = vmatpush.msra.mxu0 0.0
      %2011 = vmatpush.msra.mxu0 0.0
      %2012 = vmatpush.msra.mxu0 0.0
      %2013 = vmatpush.msra.mxu0 0.0
      %2014 = vmatpush.msra.mxu0 0.0
      %2015 = vmatpush.msra.mxu0 0.0
      %2016 = vmatpush.msra.mxu0 0.0
      %2017 = vmatpush.msra.mxu0 0.0
      %2018 = vmatpush.msra.mxu0 0.0
      %2019 = vmatpush.msra.mxu0 0.0
      %2020 = vmatpush.msra.mxu0 0.0
      %2021 = vmatpush.msra.mxu0 0.0
      %2022 = vmatpush.msra.mxu0 0.0
      %2023 = vmatpush.msra.mxu0 0.0
      %2024 = vmatpush.msra.mxu0 %v1987
      %2025 = vmatmul.f32.gmra.mxu0 %v1981
      %v2026 = vpop.f32.mrf.mxu0
      %v2027 = vadd.f32 0.0, %v2026
      %2028 = vdwg.mxu0
      %v2029 = vadd.f32 %v1956, %v2007
      %v2030 = vadd.f32 %v1976, %v2027
      %s2031 = scalar_lea.vmem %s8, 8
      %v2032 = vld [vmem:[%s2031] sm:$0x3]
      %2034 = vset.pattern.permute.xlu0 0
      %2035 = vperm.xlu0 %2034, %v2032
      %v2036 = vpop.permute.xlu0 %2035
      %v2038 = vadd.f32 %v2029, %v2036
      %v2039 = vadd.f32 %v2030, %v2036
      %v2040 = vsel %vm991, %v2038, 0.0
      %v2041 = vsel %vm991, %v2039, 0.0
      %v2042 = vadd.f32 %v2040, %v2041
      %2043 = vadd.xlane.f32.xlu0 %v2042
      %v2044 = vpop.xlane.xlu0 %2043
      %v2045 = vmul.f32 %v2044, %v866
      %v2046 = vmul.f32 %v2038, %v2038
      %v2047 = vmul.f32 %v2039, %v2039
      %v2048 = vsel %vm991, %v2046, 0.0
      %v2049 = vsel %vm991, %v2047, 0.0
      %v2050 = vadd.f32 %v2048, %v2049
      %2051 = vadd.xlane.f32.xlu0 %v2050
      %v2052 = vpop.xlane.xlu0 %2051
      %v2053 = vmul.f32 %v2052, %v866
      %v2054 = vmul.f32 %v2045, %v2045
      %v2055 = vsub.f32 %v2053, %v2054
      %v2056 = vmax.f32 %v2055, 0.0
      %v2057 = vsub.f32 %v2038, %v2045
      %v2058 = vsub.f32 %v2039, %v2045
      %v2059 = vadd.f32 %v2056, 1e-05
      %v2060 = vrsqrt.pop %v2059
      %v2061 = vmul.f32 %v2060, %v2059
      %v2062 = vmul.f32 %v2061, %v2060
      %v2063 = vmul.f32 0.5, %v2062
      %v2064 = vsub.f32 1.5, %v2063
      %v2065 = vmul.f32 %v2060, %v2064
      %vm2066 = vweird.f32 %v2059
      %vm2067 = vweird.f32 %v2060
      %vm2068 = vmor %vm2066, %vm2067
      %v2069 = vsel %vm2068, %v2060, %v2065
      %v2070 = vmul.f32 %v2057, %v2069
      %v2071 = vmul.f32 %v2058, %v2069
      %v2072 = vmax.f32 %v2070, 0.0
      %v2073 = vmax.f32 %v2071, 0.0
      %v2074 = vadd.f32 %v919, %v1178
      %v2075 = vadd.f32 %v920, %v1179
      %v2076 = vadd.f32 %v2074, %v1404
      %v2077 = vadd.f32 %v2075, %v1405
      %v2078 = vadd.f32 %v2076, %v1630
      %v2079 = vadd.f32 %v2077, %v1631
      %v2080 = vadd.f32 %v2078, %v1846
      %v2081 = vadd.f32 %v2079, %v1847
      %v2082 = vadd.f32 %v2080, %v2072
      %v2083 = vadd.f32 %v2081, %v2073
      %v2084 = vsel %vm991, %v2082, 0.0
      %v2085 = vsel %vm991, %v2083, 0.0
      %v2086 = vadd.f32 %v2084, %v2085
      %2087 = vadd.xlane.f32.xlu0 %v2086
      %v2088 = vpop.xlane.xlu0 %2087
      %v2089 = vmul.f32 %v2088, %v866
      %v2090 = vld [vmem:[%s13] sm:$0xff]
      %v2091 = vld [vmem:[%s13 + $0x8] sm:$0xf]
      %v2092 = vld [vmem:[%s14] sm:$0xff]
      %v2093 = vld [vmem:[%s14 + $0x8] sm:$0xf]
      %v2095 = vsel %vm987, %v2090, 0
      %v2098 = vsel %vm987, %v2091, 0
      %v2101 = vsel %vm991, %v2089, 0
      %2103 = vmatpush.msra.mxu0 0.0
      %2104 = vmatpush.msra.mxu0 0.0
      %2105 = vmatpush.msra.mxu0 0.0
      %2106 = vmatpush.msra.mxu0 0.0
      %2107 = vmatpush.msra.mxu0 0.0
      %2108 = vmatpush.msra.mxu0 0.0
      %2109 = vmatpush.msra.mxu0 0.0
      %2110 = vmatpush.msra.mxu0 0.0
      %2111 = vmatpush.msra.mxu0 0.0
      %2112 = vmatpush.msra.mxu0 0.0
      %2113 = vmatpush.msra.mxu0 0.0
      %2114 = vmatpush.msra.mxu0 0.0
      %2115 = vmatpush.msra.mxu0 0.0
      %2116 = vmatpush.msra.mxu0 0.0
      %2117 = vmatpush.msra.mxu0 0.0
      %2118 = vmatpush.msra.mxu0 %v2101
      %2119 = vmatmul.f32.gmra.mxu0 %v2095
      %v2120 = vpop.f32.mrf.mxu0
      %v2121 = vadd.f32 %v2092, %v2120
      %2122 = vmatmul.f32.gmra.mxu0 %v2098
      %v2123 = vpop.f32.mrf.mxu0
      %v2124 = vadd.f32 %v2093, %v2123
      %2125 = vdwg.mxu0
      %v2126 = vld [vmem:[%s15] sm:$0x3]
      %v2127 = vld [vmem:[%s16] sm:$0x3]
      %v2129 = vsel %vm692, %v2126, 0
      %v2132 = vsel %vm702, %v2124, 0
      %2134 = vmatpush.msra.mxu0 0.0
      %2135 = vmatpush.msra.mxu0 0.0
      %2136 = vmatpush.msra.mxu0 0.0
      %2137 = vmatpush.msra.mxu0 0.0
      %2138 = vmatpush.msra.mxu0 0.0
      %2139 = vmatpush.msra.mxu0 0.0
      %2140 = vmatpush.msra.mxu0 0.0
      %2141 = vmatpush.msra.mxu0 0.0
      %2142 = vmatpush.msra.mxu0 0.0
      %2143 = vmatpush.msra.mxu0 0.0
      %2144 = vmatpush.msra.mxu0 0.0
      %2145 = vmatpush.msra.mxu0 0.0
      %2146 = vmatpush.msra.mxu0 0.0
      %2147 = vmatpush.msra.mxu0 0.0
      %2148 = vmatpush.msra.mxu0 %v2132
      %2149 = vmatpush.msra.mxu0 %v2121
      %2150 = vmatmul.f32.gmra.mxu0 %v2129
      %v2151 = vpop.f32.mrf.mxu0
      %v2152 = vadd.f32 %v2127, %v2151
      %2153 = vdwg.mxu0
      %s2154 = scalar_lea.vmem %s15, 2
      %v2155 = vld [vmem:[%s2154] sm:$0x3]
      %s2156 = scalar_lea.vmem %s16, 2
      %v2157 = vld [vmem:[%s2156] sm:$0x3]
      %v2159 = vsel %vm692, %v2155, 0
      %2161 = vmatpush.msra.mxu0 0.0
      %2162 = vmatpush.msra.mxu0 0.0
      %2163 = vmatpush.msra.mxu0 0.0
      %2164 = vmatpush.msra.mxu0 0.0
      %2165 = vmatpush.msra.mxu0 0.0
      %2166 = vmatpush.msra.mxu0 0.0
      %2167 = vmatpush.msra.mxu0 0.0
      %2168 = vmatpush.msra.mxu0 0.0
      %2169 = vmatpush.msra.mxu0 0.0
      %2170 = vmatpush.msra.mxu0 0.0
      %2171 = vmatpush.msra.mxu0 0.0
      %2172 = vmatpush.msra.mxu0 0.0
      %2173 = vmatpush.msra.mxu0 0.0
      %2174 = vmatpush.msra.mxu0 0.0
      %2175 = vmatpush.msra.mxu0 %v2132
      %2176 = vmatpush.msra.mxu0 %v2121
      %2177 = vmatmul.f32.gmra.mxu0 %v2159
      %v2178 = vpop.f32.mrf.mxu0
      %v2179 = vadd.f32 %v2157, %v2178
      %2180 = vdwg.mxu0
      %s2181 = scalar_lea.vmem %s15, 4
      %v2182 = vld [vmem:[%s2181] sm:$0x3]
      %s2183 = scalar_lea.vmem %s16, 4
      %v2184 = vld [vmem:[%s2183] sm:$0x3]
      %v2186 = vsel %vm692, %v2182, 0
      %2188 = vmatpush.msra.mxu0 0.0
      %2189 = vmatpush.msra.mxu0 0.0
      %2190 = vmatpush.msra.mxu0 0.0
      %2191 = vmatpush.msra.mxu0 0.0
      %2192 = vmatpush.msra.mxu0 0.0
      %2193 = vmatpush.msra.mxu0 0.0
      %2194 = vmatpush.msra.mxu0 0.0
      %2195 = vmatpush.msra.mxu0 0.0
      %2196 = vmatpush.msra.mxu0 0.0
      %2197 = vmatpush.msra.mxu0 0.0
      %2198 = vmatpush.msra.mxu0 0.0
      %2199 = vmatpush.msra.mxu0 0.0
      %2200 = vmatpush.msra.mxu0 0.0
      %2201 = vmatpush.msra.mxu0 0.0
      %2202 = vmatpush.msra.mxu0 %v2132
      %2203 = vmatpush.msra.mxu0 %v2121
      %2204 = vmatmul.f32.gmra.mxu0 %v2186
      %v2205 = vpop.f32.mrf.mxu0
      %v2206 = vadd.f32 %v2184, %v2205
      %2207 = vdwg.mxu0
      %s2208 = scalar_lea.vmem %s15, 6
      %v2209 = vld [vmem:[%s2208] sm:$0x3]
      %s2210 = scalar_lea.vmem %s16, 6
      %v2211 = vld [vmem:[%s2210] sm:$0x3]
      %v2213 = vsel %vm692, %v2209, 0
      %2215 = vmatpush.msra.mxu0 0.0
      %2216 = vmatpush.msra.mxu0 0.0
      %2217 = vmatpush.msra.mxu0 0.0
      %2218 = vmatpush.msra.mxu0 0.0
      %2219 = vmatpush.msra.mxu0 0.0
      %2220 = vmatpush.msra.mxu0 0.0
      %2221 = vmatpush.msra.mxu0 0.0
      %2222 = vmatpush.msra.mxu0 0.0
      %2223 = vmatpush.msra.mxu0 0.0
      %2224 = vmatpush.msra.mxu0 0.0
      %2225 = vmatpush.msra.mxu0 0.0
      %2226 = vmatpush.msra.mxu0 0.0
      %2227 = vmatpush.msra.mxu0 0.0
      %2228 = vmatpush.msra.mxu0 0.0
      %2229 = vmatpush.msra.mxu0 %v2132
      %2230 = vmatpush.msra.mxu0 %v2121
      %2231 = vmatmul.f32.gmra.mxu0 %v2213
      %v2232 = vpop.f32.mrf.mxu0
      %v2233 = vadd.f32 %v2211, %v2232
      %2234 = vdwg.mxu0
      %s2235 = scalar_lea.vmem %s15, 8
      %v2236 = vld [vmem:[%s2235] sm:$0x3]
      %s2237 = scalar_lea.vmem %s16, 8
      %v2238 = vld [vmem:[%s2237] sm:$0x3]
      %v2240 = vsel %vm692, %v2236, 0
      %2242 = vmatpush.msra.mxu0 0.0
      %2243 = vmatpush.msra.mxu0 0.0
      %2244 = vmatpush.msra.mxu0 0.0
      %2245 = vmatpush.msra.mxu0 0.0
      %2246 = vmatpush.msra.mxu0 0.0
      %2247 = vmatpush.msra.mxu0 0.0
      %2248 = vmatpush.msra.mxu0 0.0
      %2249 = vmatpush.msra.mxu0 0.0
      %2250 = vmatpush.msra.mxu0 0.0
      %2251 = vmatpush.msra.mxu0 0.0
      %2252 = vmatpush.msra.mxu0 0.0
      %2253 = vmatpush.msra.mxu0 0.0
      %2254 = vmatpush.msra.mxu0 0.0
      %2255 = vmatpush.msra.mxu0 0.0
      %2256 = vmatpush.msra.mxu0 %v2132
      %2257 = vmatpush.msra.mxu0 %v2121
      %2258 = vmatmul.f32.gmra.mxu0 %v2240
      %v2259 = vpop.f32.mrf.mxu0
      %v2260 = vadd.f32 %v2238, %v2259
      %2261 = vdwg.mxu0
      %s2262 = scalar_lea.vmem %s15, 10
      %v2263 = vld [vmem:[%s2262] sm:$0x3]
      %s2264 = scalar_lea.vmem %s16, 10
      %v2265 = vld [vmem:[%s2264] sm:$0x3]
      %v2267 = vsel %vm692, %v2263, 0
      %2269 = vmatpush.msra.mxu0 0.0
      %2270 = vmatpush.msra.mxu0 0.0
      %2271 = vmatpush.msra.mxu0 0.0
      %2272 = vmatpush.msra.mxu0 0.0
      %2273 = vmatpush.msra.mxu0 0.0
      %2274 = vmatpush.msra.mxu0 0.0
      %2275 = vmatpush.msra.mxu0 0.0
      %2276 = vmatpush.msra.mxu0 0.0
      %2277 = vmatpush.msra.mxu0 0.0
      %2278 = vmatpush.msra.mxu0 0.0
      %2279 = vmatpush.msra.mxu0 0.0
      %2280 = vmatpush.msra.mxu0 0.0
      %2281 = vmatpush.msra.mxu0 0.0
      %2282 = vmatpush.msra.mxu0 0.0
      %2283 = vmatpush.msra.mxu0 %v2132
      %2284 = vmatpush.msra.mxu0 %v2121
      %2285 = vmatmul.f32.gmra.mxu0 %v2267
      %v2286 = vpop.f32.mrf.mxu0
      %v2287 = vadd.f32 %v2265, %v2286
      %2288 = vdwg.mxu0
      %v2289 = vmax.f32 %v2152, %v2179
      %v2290 = vmax.f32 %v2289, %v2206
      %v2291 = vmax.f32 %v2290, %v2233
      %v2292 = vmax.f32 %v2291, %v2260
      %v2293 = vmax.f32 %v2292, %v2287
      %v2294 = vsub.f32 %v2152, %v2293
      %v2295 = vmul.f32 %v2294, 1.442695
      %v2296 = vpow.pop %v2295
      %v2297 = vsub.f32 %v2179, %v2293
      %v2298 = vmul.f32 %v2297, 1.442695
      %v2299 = vpow.pop %v2298
      %v2300 = vsub.f32 %v2206, %v2293
      %v2301 = vmul.f32 %v2300, 1.442695
      %v2302 = vpow.pop %v2301
      %v2303 = vsub.f32 %v2233, %v2293
      %v2304 = vmul.f32 %v2303, 1.442695
      %v2305 = vpow.pop %v2304
      %v2306 = vsub.f32 %v2260, %v2293
      %v2307 = vmul.f32 %v2306, 1.442695
      %v2308 = vpow.pop %v2307
      %v2309 = vsub.f32 %v2287, %v2293
      %v2310 = vmul.f32 %v2309, 1.442695
      %v2311 = vpow.pop %v2310
      %v2312 = vadd.f32 %v2296, %v2299
      %v2313 = vadd.f32 %v2312, %v2302
      %v2314 = vadd.f32 %v2313, %v2305
      %v2315 = vadd.f32 %v2314, %v2308
      %v2316 = vadd.f32 %v2315, %v2311
      %v2317 = vrcp.pop %v2316
      %v2318 = vmul.f32 %v2316, %v2317
      %v2319 = vsub.f32 1.0, %v2318
      %v2320 = vmul.f32 %v2317, %v2319
      %v2321 = vadd.f32 %v2317, %v2320
      %vm2322 = vweird.f32 %v2316
      %vm2323 = vweird.f32 %v2317
      %vm2324 = vmor %vm2322, %vm2323
      %v2325 = vsel %vm2324, %v2317, %v2321
      %v2326 = vand.u32 2147483647, %v2316
      %vm2327 = vcmp.eq.f32.partialorder %v2326, 8.507059e+37
      %v2328 = vand.u32 %v2316, 2147483648
      %v2329 = vor.u32 1.1754944e-38, %v2328
      %v2330 = vsel %vm2327, %v2329, %v2325
      %v2331 = vmul.f32 %v2296, %v2330
      %v2332 = vmul.f32 %v2299, %v2330
      %v2333 = vmul.f32 %v2302, %v2330
      %v2334 = vmul.f32 %v2305, %v2330
      %v2335 = vmul.f32 %v2308, %v2330
      %v2336 = vmul.f32 %v2311, %v2330
      %v2337 = vld [vmem:[%s9] sm:$0xff]
      %v2338 = vld [vmem:[%s9 + $0x8] sm:$0xf]
      %2340 = vset.pattern.permute.xlu0 0
      %2341 = vperm.xlu0 %2340, %v2331
      %v2342 = vpop.permute.xlu0 %2341
      %v2344 = vmul.f32 %v919, %v2342
      %v2345 = vmul.f32 %v920, %v2342
      %s2346 = scalar_lea.vmem %s9, 16
      %v2347 = vld [vmem:[%s2346] sm:$0xff]
      %v2348 = vld [vmem:[%s2346 + $0x8] sm:$0xf]
      %2350 = vset.pattern.permute.xlu0 0
      %2351 = vperm.xlu0 %2350, %v2332
      %v2352 = vpop.permute.xlu0 %2351
      %v2354 = vmul.f32 %v1178, %v2352
      %v2355 = vmul.f32 %v1179, %v2352
      %v2357 = vsel %vm987, %v2347, 0
      %v2360 = vsel %vm987, %v2348, 0
      %v2363 = vsel %vm991, %v2354, 0
      %v2366 = vsel %vm991, %v2355, 0
      %2368 = vmatpush.msra.mxu0 0.0
      %2369 = vmatpush.msra.mxu0 0.0
      %2370 = vmatpush.msra.mxu0 0.0
      %2371 = vmatpush.msra.mxu0 0.0
      %2372 = vmatpush.msra.mxu0 0.0
      %2373 = vmatpush.msra.mxu0 0.0
      %2374 = vmatpush.msra.mxu0 0.0
      %2375 = vmatpush.msra.mxu0 0.0
      %2376 = vmatpush.msra.mxu0 0.0
      %2377 = vmatpush.msra.mxu0 0.0
      %2378 = vmatpush.msra.mxu0 0.0
      %2379 = vmatpush.msra.mxu0 0.0
      %2380 = vmatpush.msra.mxu0 0.0
      %2381 = vmatpush.msra.mxu0 0.0
      %2382 = vmatpush.msra.mxu0 0.0
      %2383 = vmatpush.msra.mxu0 %v2363
      %2384 = vmatmul.f32.gmra.mxu0 %v2357
      %v2385 = vpop.f32.mrf.mxu0
      %v2386 = vadd.f32 0.0, %v2385
      %2387 = vmatmul.f32.gmra.mxu0 %v2360
      %v2388 = vpop.f32.mrf.mxu0
      %v2389 = vadd.f32 0.0, %v2388
      %2390 = vdwg.mxu0
      %2391 = vmatpush.msra.mxu0 0.0
      %2392 = vmatpush.msra.mxu0 0.0
      %2393 = vmatpush.msra.mxu0 0.0
      %2394 = vmatpush.msra.mxu0 0.0
      %2395 = vmatpush.msra.mxu0 0.0
      %2396 = vmatpush.msra.mxu0 0.0
      %2397 = vmatpush.msra.mxu0 0.0
      %2398 = vmatpush.msra.mxu0 0.0
      %2399 = vmatpush.msra.mxu0 0.0
      %2400 = vmatpush.msra.mxu0 0.0
      %2401 = vmatpush.msra.mxu0 0.0
      %2402 = vmatpush.msra.mxu0 0.0
      %2403 = vmatpush.msra.mxu0 0.0
      %2404 = vmatpush.msra.mxu0 0.0
      %2405 = vmatpush.msra.mxu0 0.0
      %2406 = vmatpush.msra.mxu0 %v2366
      %2407 = vmatmul.f32.gmra.mxu0 %v2357
      %v2408 = vpop.f32.mrf.mxu0
      %v2409 = vadd.f32 0.0, %v2408
      %2410 = vmatmul.f32.gmra.mxu0 %v2360
      %v2411 = vpop.f32.mrf.mxu0
      %v2412 = vadd.f32 0.0, %v2411
      %2413 = vdwg.mxu0
      %v2415 = vsel %vm987, %v2337, 0
      %v2418 = vsel %vm987, %v2338, 0
      %v2421 = vsel %vm991, %v2344, 0
      %v2424 = vsel %vm991, %v2345, 0
      %2426 = vmatpush.msra.mxu0 0.0
      %2427 = vmatpush.msra.mxu0 0.0
      %2428 = vmatpush.msra.mxu0 0.0
      %2429 = vmatpush.msra.mxu0 0.0
      %2430 = vmatpush.msra.mxu0 0.0
      %2431 = vmatpush.msra.mxu0 0.0
      %2432 = vmatpush.msra.mxu0 0.0
      %2433 = vmatpush.msra.mxu0 0.0
      %2434 = vmatpush.msra.mxu0 0.0
      %2435 = vmatpush.msra.mxu0 0.0
      %2436 = vmatpush.msra.mxu0 0.0
      %2437 = vmatpush.msra.mxu0 0.0
      %2438 = vmatpush.msra.mxu0 0.0
      %2439 = vmatpush.msra.mxu0 0.0
      %2440 = vmatpush.msra.mxu0 0.0
      %2441 = vmatpush.msra.mxu0 %v2421
      %2442 = vmatmul.f32.gmra.mxu0 %v2415
      %v2443 = vpop.f32.mrf.mxu0
      %v2444 = vadd.f32 %v2386, %v2443
      %2445 = vmatmul.f32.gmra.mxu0 %v2418
      %v2446 = vpop.f32.mrf.mxu0
      %v2447 = vadd.f32 %v2389, %v2446
      %2448 = vdwg.mxu0
      %2449 = vmatpush.msra.mxu0 0.0
      %2450 = vmatpush.msra.mxu0 0.0
      %2451 = vmatpush.msra.mxu0 0.0
      %2452 = vmatpush.msra.mxu0 0.0
      %2453 = vmatpush.msra.mxu0 0.0
      %2454 = vmatpush.msra.mxu0 0.0
      %2455 = vmatpush.msra.mxu0 0.0
      %2456 = vmatpush.msra.mxu0 0.0
      %2457 = vmatpush.msra.mxu0 0.0
      %2458 = vmatpush.msra.mxu0 0.0
      %2459 = vmatpush.msra.mxu0 0.0
      %2460 = vmatpush.msra.mxu0 0.0
      %2461 = vmatpush.msra.mxu0 0.0
      %2462 = vmatpush.msra.mxu0 0.0
      %2463 = vmatpush.msra.mxu0 0.0
      %2464 = vmatpush.msra.mxu0 %v2424
      %2465 = vmatmul.f32.gmra.mxu0 %v2415
      %v2466 = vpop.f32.mrf.mxu0
      %v2467 = vadd.f32 %v2409, %v2466
      %2468 = vmatmul.f32.gmra.mxu0 %v2418
      %v2469 = vpop.f32.mrf.mxu0
      %v2470 = vadd.f32 %v2412, %v2469
      %2471 = vdwg.mxu0
      %s2472 = scalar_lea.vmem %s9, 32
      %v2473 = vld [vmem:[%s2472] sm:$0xff]
      %v2474 = vld [vmem:[%s2472 + $0x8] sm:$0xf]
      %2476 = vset.pattern.permute.xlu0 0
      %2477 = vperm.xlu0 %2476, %v2333
      %v2478 = vpop.permute.xlu0 %2477
      %v2480 = vmul.f32 %v1404, %v2478
      %v2481 = vmul.f32 %v1405, %v2478
      %v2483 = vsel %vm987, %v2473, 0
      %v2486 = vsel %vm987, %v2474, 0
      %v2489 = vsel %vm991, %v2480, 0
      %v2492 = vsel %vm991, %v2481, 0
      %2494 = vmatpush.msra.mxu0 0.0
      %2495 = vmatpush.msra.mxu0 0.0
      %2496 = vmatpush.msra.mxu0 0.0
      %2497 = vmatpush.msra.mxu0 0.0
      %2498 = vmatpush.msra.mxu0 0.0
      %2499 = vmatpush.msra.mxu0 0.0
      %2500 = vmatpush.msra.mxu0 0.0
      %2501 = vmatpush.msra.mxu0 0.0
      %2502 = vmatpush.msra.mxu0 0.0
      %2503 = vmatpush.msra.mxu0 0.0
      %2504 = vmatpush.msra.mxu0 0.0
      %2505 = vmatpush.msra.mxu0 0.0
      %2506 = vmatpush.msra.mxu0 0.0
      %2507 = vmatpush.msra.mxu0 0.0
      %2508 = vmatpush.msra.mxu0 0.0
      %2509 = vmatpush.msra.mxu0 %v2489
      %2510 = vmatmul.f32.gmra.mxu0 %v2483
      %v2511 = vpop.f32.mrf.mxu0
      %v2512 = vadd.f32 0.0, %v2511
      %2513 = vmatmul.f32.gmra.mxu0 %v2486
      %v2514 = vpop.f32.mrf.mxu0
      %v2515 = vadd.f32 0.0, %v2514
      %2516 = vdwg.mxu0
      %2517 = vmatpush.msra.mxu0 0.0
      %2518 = vmatpush.msra.mxu0 0.0
      %2519 = vmatpush.msra.mxu0 0.0
      %2520 = vmatpush.msra.mxu0 0.0
      %2521 = vmatpush.msra.mxu0 0.0
      %2522 = vmatpush.msra.mxu0 0.0
      %2523 = vmatpush.msra.mxu0 0.0
      %2524 = vmatpush.msra.mxu0 0.0
      %2525 = vmatpush.msra.mxu0 0.0
      %2526 = vmatpush.msra.mxu0 0.0
      %2527 = vmatpush.msra.mxu0 0.0
      %2528 = vmatpush.msra.mxu0 0.0
      %2529 = vmatpush.msra.mxu0 0.0
      %2530 = vmatpush.msra.mxu0 0.0
      %2531 = vmatpush.msra.mxu0 0.0
      %2532 = vmatpush.msra.mxu0 %v2492
      %2533 = vmatmul.f32.gmra.mxu0 %v2483
      %v2534 = vpop.f32.mrf.mxu0
      %v2535 = vadd.f32 0.0, %v2534
      %2536 = vmatmul.f32.gmra.mxu0 %v2486
      %v2537 = vpop.f32.mrf.mxu0
      %v2538 = vadd.f32 0.0, %v2537
      %2539 = vdwg.mxu0
      %v2540 = vadd.f32 %v2444, %v2512
      %v2541 = vadd.f32 %v2467, %v2535
      %v2542 = vadd.f32 %v2447, %v2515
      %v2543 = vadd.f32 %v2470, %v2538
      %s2544 = scalar_lea.vmem %s9, 48
      %v2545 = vld [vmem:[%s2544] sm:$0xff]
      %v2546 = vld [vmem:[%s2544 + $0x8] sm:$0xf]
      %2548 = vset.pattern.permute.xlu0 0
      %2549 = vperm.xlu0 %2548, %v2334
      %v2550 = vpop.permute.xlu0 %2549
      %v2552 = vmul.f32 %v1630, %v2550
      %v2553 = vmul.f32 %v1631, %v2550
      %v2555 = vsel %vm987, %v2545, 0
      %v2558 = vsel %vm987, %v2546, 0
      %v2561 = vsel %vm991, %v2552, 0
      %v2564 = vsel %vm991, %v2553, 0
      %2566 = vmatpush.msra.mxu0 0.0
      %2567 = vmatpush.msra.mxu0 0.0
      %2568 = vmatpush.msra.mxu0 0.0
      %2569 = vmatpush.msra.mxu0 0.0
      %2570 = vmatpush.msra.mxu0 0.0
      %2571 = vmatpush.msra.mxu0 0.0
      %2572 = vmatpush.msra.mxu0 0.0
      %2573 = vmatpush.msra.mxu0 0.0
      %2574 = vmatpush.msra.mxu0 0.0
      %2575 = vmatpush.msra.mxu0 0.0
      %2576 = vmatpush.msra.mxu0 0.0
      %2577 = vmatpush.msra.mxu0 0.0
      %2578 = vmatpush.msra.mxu0 0.0
      %2579 = vmatpush.msra.mxu0 0.0
      %2580 = vmatpush.msra.mxu0 0.0
      %2581 = vmatpush.msra.mxu0 %v2561
      %2582 = vmatmul.f32.gmra.mxu0 %v2555
      %v2583 = vpop.f32.mrf.mxu0
      %v2584 = vadd.f32 0.0, %v2583
      %2585 = vmatmul.f32.gmra.mxu0 %v2558
      %v2586 = vpop.f32.mrf.mxu0
      %v2587 = vadd.f32 0.0, %v2586
      %2588 = vdwg.mxu0
      %2589 = vmatpush.msra.mxu0 0.0
      %2590 = vmatpush.msra.mxu0 0.0
      %2591 = vmatpush.msra.mxu0 0.0
      %2592 = vmatpush.msra.mxu0 0.0
      %2593 = vmatpush.msra.mxu0 0.0
      %2594 = vmatpush.msra.mxu0 0.0
      %2595 = vmatpush.msra.mxu0 0.0
      %2596 = vmatpush.msra.mxu0 0.0
      %2597 = vmatpush.msra.mxu0 0.0
      %2598 = vmatpush.msra.mxu0 0.0
      %2599 = vmatpush.msra.mxu0 0.0
      %2600 = vmatpush.msra.mxu0 0.0
      %2601 = vmatpush.msra.mxu0 0.0
      %2602 = vmatpush.msra.mxu0 0.0
      %2603 = vmatpush.msra.mxu0 0.0
      %2604 = vmatpush.msra.mxu0 %v2564
      %2605 = vmatmul.f32.gmra.mxu0 %v2555
      %v2606 = vpop.f32.mrf.mxu0
      %v2607 = vadd.f32 0.0, %v2606
      %2608 = vmatmul.f32.gmra.mxu0 %v2558
      %v2609 = vpop.f32.mrf.mxu0
      %v2610 = vadd.f32 0.0, %v2609
      %2611 = vdwg.mxu0
      %v2612 = vadd.f32 %v2540, %v2584
      %v2613 = vadd.f32 %v2541, %v2607
      %v2614 = vadd.f32 %v2542, %v2587
      %v2615 = vadd.f32 %v2543, %v2610
      %s2616 = scalar_lea.vmem %s9, 64
      %v2617 = vld [vmem:[%s2616] sm:$0xff]
      %v2618 = vld [vmem:[%s2616 + $0x8] sm:$0xf]
      %2620 = vset.pattern.permute.xlu0 0
      %2621 = vperm.xlu0 %2620, %v2335
      %v2622 = vpop.permute.xlu0 %2621
      %v2624 = vmul.f32 %v1846, %v2622
      %v2625 = vmul.f32 %v1847, %v2622
      %v2627 = vsel %vm987, %v2617, 0
      %v2630 = vsel %vm987, %v2618, 0
      %v2633 = vsel %vm991, %v2624, 0
      %v2636 = vsel %vm991, %v2625, 0
      %2638 = vmatpush.msra.mxu0 0.0
      %2639 = vmatpush.msra.mxu0 0.0
      %2640 = vmatpush.msra.mxu0 0.0
      %2641 = vmatpush.msra.mxu0 0.0
      %2642 = vmatpush.msra.mxu0 0.0
      %2643 = vmatpush.msra.mxu0 0.0
      %2644 = vmatpush.msra.mxu0 0.0
      %2645 = vmatpush.msra.mxu0 0.0
      %2646 = vmatpush.msra.mxu0 0.0
      %2647 = vmatpush.msra.mxu0 0.0
      %2648 = vmatpush.msra.mxu0 0.0
      %2649 = vmatpush.msra.mxu0 0.0
      %2650 = vmatpush.msra.mxu0 0.0
      %2651 = vmatpush.msra.mxu0 0.0
      %2652 = vmatpush.msra.mxu0 0.0
      %2653 = vmatpush.msra.mxu0 %v2633
      %2654 = vmatmul.f32.gmra.mxu0 %v2627
      %v2655 = vpop.f32.mrf.mxu0
      %v2656 = vadd.f32 0.0, %v2655
      %2657 = vmatmul.f32.gmra.mxu0 %v2630
      %v2658 = vpop.f32.mrf.mxu0
      %v2659 = vadd.f32 0.0, %v2658
      %2660 = vdwg.mxu0
      %2661 = vmatpush.msra.mxu0 0.0
      %2662 = vmatpush.msra.mxu0 0.0
      %2663 = vmatpush.msra.mxu0 0.0
      %2664 = vmatpush.msra.mxu0 0.0
      %2665 = vmatpush.msra.mxu0 0.0
      %2666 = vmatpush.msra.mxu0 0.0
      %2667 = vmatpush.msra.mxu0 0.0
      %2668 = vmatpush.msra.mxu0 0.0
      %2669 = vmatpush.msra.mxu0 0.0
      %2670 = vmatpush.msra.mxu0 0.0
      %2671 = vmatpush.msra.mxu0 0.0
      %2672 = vmatpush.msra.mxu0 0.0
      %2673 = vmatpush.msra.mxu0 0.0
      %2674 = vmatpush.msra.mxu0 0.0
      %2675 = vmatpush.msra.mxu0 0.0
      %2676 = vmatpush.msra.mxu0 %v2636
      %2677 = vmatmul.f32.gmra.mxu0 %v2627
      %v2678 = vpop.f32.mrf.mxu0
      %v2679 = vadd.f32 0.0, %v2678
      %2680 = vmatmul.f32.gmra.mxu0 %v2630
      %v2681 = vpop.f32.mrf.mxu0
      %v2682 = vadd.f32 0.0, %v2681
      %2683 = vdwg.mxu0
      %v2684 = vadd.f32 %v2612, %v2656
      %v2685 = vadd.f32 %v2613, %v2679
      %v2686 = vadd.f32 %v2614, %v2659
      %v2687 = vadd.f32 %v2615, %v2682
      %s2688 = scalar_lea.vmem %s9, 80
      %v2689 = vld [vmem:[%s2688] sm:$0xff]
      %v2690 = vld [vmem:[%s2688 + $0x8] sm:$0xf]
      %2692 = vset.pattern.permute.xlu0 0
      %2693 = vperm.xlu0 %2692, %v2336
      %v2694 = vpop.permute.xlu0 %2693
      %v2696 = vmul.f32 %v2072, %v2694
      %v2697 = vmul.f32 %v2073, %v2694
      %v2699 = vsel %vm987, %v2689, 0
      %v2702 = vsel %vm987, %v2690, 0
      %v2705 = vsel %vm991, %v2696, 0
      %v2708 = vsel %vm991, %v2697, 0
      %2710 = vmatpush.msra.mxu0 0.0
      %2711 = vmatpush.msra.mxu0 0.0
      %2712 = vmatpush.msra.mxu0 0.0
      %2713 = vmatpush.msra.mxu0 0.0
      %2714 = vmatpush.msra.mxu0 0.0
      %2715 = vmatpush.msra.mxu0 0.0
      %2716 = vmatpush.msra.mxu0 0.0
      %2717 = vmatpush.msra.mxu0 0.0
      %2718 = vmatpush.msra.mxu0 0.0
      %2719 = vmatpush.msra.mxu0 0.0
      %2720 = vmatpush.msra.mxu0 0.0
      %2721 = vmatpush.msra.mxu0 0.0
      %2722 = vmatpush.msra.mxu0 0.0
      %2723 = vmatpush.msra.mxu0 0.0
      %2724 = vmatpush.msra.mxu0 0.0
      %2725 = vmatpush.msra.mxu0 %v2705
      %2726 = vmatmul.f32.gmra.mxu0 %v2699
      %v2727 = vpop.f32.mrf.mxu0
      %v2728 = vadd.f32 0.0, %v2727
      %2729 = vmatmul.f32.gmra.mxu0 %v2702
      %v2730 = vpop.f32.mrf.mxu0
      %v2731 = vadd.f32 0.0, %v2730
      %2732 = vdwg.mxu0
      %2733 = vmatpush.msra.mxu0 0.0
      %2734 = vmatpush.msra.mxu0 0.0
      %2735 = vmatpush.msra.mxu0 0.0
      %2736 = vmatpush.msra.mxu0 0.0
      %2737 = vmatpush.msra.mxu0 0.0
      %2738 = vmatpush.msra.mxu0 0.0
      %2739 = vmatpush.msra.mxu0 0.0
      %2740 = vmatpush.msra.mxu0 0.0
      %2741 = vmatpush.msra.mxu0 0.0
      %2742 = vmatpush.msra.mxu0 0.0
      %2743 = vmatpush.msra.mxu0 0.0
      %2744 = vmatpush.msra.mxu0 0.0
      %2745 = vmatpush.msra.mxu0 0.0
      %2746 = vmatpush.msra.mxu0 0.0
      %2747 = vmatpush.msra.mxu0 0.0
      %2748 = vmatpush.msra.mxu0 %v2708
      %2749 = vmatmul.f32.gmra.mxu0 %v2699
      %v2750 = vpop.f32.mrf.mxu0
      %v2751 = vadd.f32 0.0, %v2750
      %2752 = vmatmul.f32.gmra.mxu0 %v2702
      %v2753 = vpop.f32.mrf.mxu0
      %v2754 = vadd.f32 0.0, %v2753
      %2755 = vdwg.mxu0
      %v2756 = vadd.f32 %v2684, %v2728
      %v2757 = vadd.f32 %v2685, %v2751
      %v2758 = vadd.f32 %v2686, %v2731
      %v2759 = vadd.f32 %v2687, %v2754
      %v2760 = vld [vmem:[%s10] sm:$0xff]
      %v2761 = vld [vmem:[%s10 + $0x8] sm:$0xf]
      %2763 = vset.pattern.permute.xlu0 0
      %2764 = vperm.xlu0 %2763, %v2760
      %v2765 = vpop.permute.xlu0 %2764
      %2768 = vset.pattern.permute.xlu0 0
      %2769 = vperm.xlu0 %2768, %v2761
      %v2770 = vpop.permute.xlu0 %2769
      %v2772 = vadd.f32 %v2756, %v2765
      %v2773 = vadd.f32 %v2757, %v2765
      %v2774 = vadd.f32 %v2758, %v2770
      %v2775 = vadd.f32 %v2759, %v2770
      %v2778 = vrot.slane %v2772, 6
      %v2779 = vrot.slane %v2773, 6
      %v2782 = vadd.f32 %v2772, %v2778
      %v2783 = vadd.f32 %v2773, %v2779
      %v2786 = vrot.slane %v2782, 2
      %v2787 = vrot.slane %v2783, 2
      %2790 = vrot.lane.b32.xlu0 %v2786, 16
      %v2791 = vpop.permute.xlu0 %2790
      %2792 = vrot.lane.b32.xlu0 %v2787, 16
      %v2793 = vpop.permute.xlu0 %2792
      %v2794 = vsel %vm648, %v2791, %v2793
      %v2795 = vsel %vm648, %v2793, %v2791
      %v2796 = vperm.slane %v577, 2
      %v2797 = vperm.slane %v577, 6
      %v2800 = vperm.slane %v2796, 2
      %v2801 = vperm.slane %v2797, 2
      %v2802 = vmul.f32 %v2795, %v2800
      %v2803 = vmul.f32 %v2794, %v2801
      %2804 = vrot.lane.b32.xlu0 %v2786, 112
      %v2805 = vpop.permute.xlu0 %2804
      %2806 = vrot.lane.b32.xlu0 %v2787, 112
      %v2807 = vpop.permute.xlu0 %2806
      %v2808 = vsel %vm671, %v2805, %v2807
      %v2809 = vsel %vm671, %v2807, %v2805
      %v2810 = vperm.slane %v577, 3
      %v2811 = vperm.slane %v577, 7
      %v2814 = vperm.slane %v2810, 3
      %v2815 = vperm.slane %v2811, 3
      %v2816 = vmul.f32 %v2808, %v2814
      %v2817 = vmul.f32 %v2809, %v2815
      %s2818 = scalar_lea.vmem %s7, 30
      %v2819 = vld [vmem:[%s2818] sm:$0x3]
      %s2820 = scalar_lea.vmem %s7, 32
      %v2821 = vld [vmem:[%s2820] sm:$0x3]
      %v2823 = vsel %vm987, %v2821, 0
      %v2825 = vsel %vm991, %v2786, 0
      %v2827 = vsel %vm991, %v2787, 0
      %2829 = vmatpush.msra.mxu0 0.0
      %2830 = vmatpush.msra.mxu0 0.0
      %2831 = vmatpush.msra.mxu0 0.0
      %2832 = vmatpush.msra.mxu0 0.0
      %2833 = vmatpush.msra.mxu0 0.0
      %2834 = vmatpush.msra.mxu0 0.0
      %2835 = vmatpush.msra.mxu0 0.0
      %2836 = vmatpush.msra.mxu0 0.0
      %2837 = vmatpush.msra.mxu0 0.0
      %2838 = vmatpush.msra.mxu0 0.0
      %2839 = vmatpush.msra.mxu0 0.0
      %2840 = vmatpush.msra.mxu0 0.0
      %2841 = vmatpush.msra.mxu0 0.0
      %2842 = vmatpush.msra.mxu0 0.0
      %2843 = vmatpush.msra.mxu0 0.0
      %2844 = vmatpush.msra.mxu0 %v2825
      %2845 = vmatmul.f32.gmra.mxu0 %v2823
      %v2846 = vpop.f32.mrf.mxu0
      %v2847 = vadd.f32 0.0, %v2846
      %2848 = vdwg.mxu0
      %2849 = vmatpush.msra.mxu0 0.0
      %2850 = vmatpush.msra.mxu0 0.0
      %2851 = vmatpush.msra.mxu0 0.0
      %2852 = vmatpush.msra.mxu0 0.0
      %2853 = vmatpush.msra.mxu0 0.0
      %2854 = vmatpush.msra.mxu0 0.0
      %2855 = vmatpush.msra.mxu0 0.0
      %2856 = vmatpush.msra.mxu0 0.0
      %2857 = vmatpush.msra.mxu0 0.0
      %2858 = vmatpush.msra.mxu0 0.0
      %2859 = vmatpush.msra.mxu0 0.0
      %2860 = vmatpush.msra.mxu0 0.0
      %2861 = vmatpush.msra.mxu0 0.0
      %2862 = vmatpush.msra.mxu0 0.0
      %2863 = vmatpush.msra.mxu0 0.0
      %2864 = vmatpush.msra.mxu0 %v2827
      %2865 = vmatmul.f32.gmra.mxu0 %v2823
      %v2866 = vpop.f32.mrf.mxu0
      %v2867 = vadd.f32 0.0, %v2866
      %2868 = vdwg.mxu0
      %v2870 = vsel %vm987, %v2819, 0
      %v2873 = vsel %vm991, %v2802, 0
      %v2876 = vsel %vm991, %v2803, 0
      %2878 = vmatpush.msra.mxu0 0.0
      %2879 = vmatpush.msra.mxu0 0.0
      %2880 = vmatpush.msra.mxu0 0.0
      %2881 = vmatpush.msra.mxu0 0.0
      %2882 = vmatpush.msra.mxu0 0.0
      %2883 = vmatpush.msra.mxu0 0.0
      %2884 = vmatpush.msra.mxu0 0.0
      %2885 = vmatpush.msra.mxu0 0.0
      %2886 = vmatpush.msra.mxu0 0.0
      %2887 = vmatpush.msra.mxu0 0.0
      %2888 = vmatpush.msra.mxu0 0.0
      %2889 = vmatpush.msra.mxu0 0.0
      %2890 = vmatpush.msra.mxu0 0.0
      %2891 = vmatpush.msra.mxu0 0.0
      %2892 = vmatpush.msra.mxu0 0.0
      %2893 = vmatpush.msra.mxu0 %v2873
      %2894 = vmatmul.f32.gmra.mxu0 %v2870
      %v2895 = vpop.f32.mrf.mxu0
      %v2896 = vadd.f32 %v2847, %v2895
      %2897 = vdwg.mxu0
      %2898 = vmatpush.msra.mxu0 0.0
      %2899 = vmatpush.msra.mxu0 0.0
      %2900 = vmatpush.msra.mxu0 0.0
      %2901 = vmatpush.msra.mxu0 0.0
      %2902 = vmatpush.msra.mxu0 0.0
      %2903 = vmatpush.msra.mxu0 0.0
      %2904 = vmatpush.msra.mxu0 0.0
      %2905 = vmatpush.msra.mxu0 0.0
      %2906 = vmatpush.msra.mxu0 0.0
      %2907 = vmatpush.msra.mxu0 0.0
      %2908 = vmatpush.msra.mxu0 0.0
      %2909 = vmatpush.msra.mxu0 0.0
      %2910 = vmatpush.msra.mxu0 0.0
      %2911 = vmatpush.msra.mxu0 0.0
      %2912 = vmatpush.msra.mxu0 0.0
      %2913 = vmatpush.msra.mxu0 %v2876
      %2914 = vmatmul.f32.gmra.mxu0 %v2870
      %v2915 = vpop.f32.mrf.mxu0
      %v2916 = vadd.f32 %v2867, %v2915
      %2917 = vdwg.mxu0
      %s2918 = scalar_lea.vmem %s7, 34
      %v2919 = vld [vmem:[%s2918] sm:$0x3]
      %v2921 = vsel %vm987, %v2919, 0
      %v2924 = vsel %vm991, %v2816, 0
      %v2927 = vsel %vm991, %v2817, 0
      %2929 = vmatpush.msra.mxu0 0.0
      %2930 = vmatpush.msra.mxu0 0.0
      %2931 = vmatpush.msra.mxu0 0.0
      %2932 = vmatpush.msra.mxu0 0.0
      %2933 = vmatpush.msra.mxu0 0.0
      %2934 = vmatpush.msra.mxu0 0.0
      %2935 = vmatpush.msra.mxu0 0.0
      %2936 = vmatpush.msra.mxu0 0.0
      %2937 = vmatpush.msra.mxu0 0.0
      %2938 = vmatpush.msra.mxu0 0.0
      %2939 = vmatpush.msra.mxu0 0.0
      %2940 = vmatpush.msra.mxu0 0.0
      %2941 = vmatpush.msra.mxu0 0.0
      %2942 = vmatpush.msra.mxu0 0.0
      %2943 = vmatpush.msra.mxu0 0.0
      %2944 = vmatpush.msra.mxu0 %v2924
      %2945 = vmatmul.f32.gmra.mxu0 %v2921
      %v2946 = vpop.f32.mrf.mxu0
      %v2947 = vadd.f32 0.0, %v2946
      %2948 = vdwg.mxu0
      %2949 = vmatpush.msra.mxu0 0.0
      %2950 = vmatpush.msra.mxu0 0.0
      %2951 = vmatpush.msra.mxu0 0.0
      %2952 = vmatpush.msra.mxu0 0.0
      %2953 = vmatpush.msra.mxu0 0.0
      %2954 = vmatpush.msra.mxu0 0.0
      %2955 = vmatpush.msra.mxu0 0.0
      %2956 = vmatpush.msra.mxu0 0.0
      %2957 = vmatpush.msra.mxu0 0.0
      %2958 = vmatpush.msra.mxu0 0.0
      %2959 = vmatpush.msra.mxu0 0.0
      %2960 = vmatpush.msra.mxu0 0.0
      %2961 = vmatpush.msra.mxu0 0.0
      %2962 = vmatpush.msra.mxu0 0.0
      %2963 = vmatpush.msra.mxu0 0.0
      %2964 = vmatpush.msra.mxu0 %v2927
      %2965 = vmatmul.f32.gmra.mxu0 %v2921
      %v2966 = vpop.f32.mrf.mxu0
      %v2967 = vadd.f32 0.0, %v2966
      %2968 = vdwg.mxu0
      %v2969 = vadd.f32 %v2896, %v2947
      %v2970 = vadd.f32 %v2916, %v2967
      %s2971 = scalar_lea.vmem %s8, 10
      %v2972 = vld [vmem:[%s2971] sm:$0x3]
      %2974 = vset.pattern.permute.xlu0 0
      %2975 = vperm.xlu0 %2974, %v2972
      %v2976 = vpop.permute.xlu0 %2975
      %v2978 = vadd.f32 %v2969, %v2976
      %v2979 = vadd.f32 %v2970, %v2976
      %v2980 = vsel %vm991, %v2978, 0.0
      %v2981 = vsel %vm991, %v2979, 0.0
      %v2982 = vadd.f32 %v2980, %v2981
      %2983 = vadd.xlane.f32.xlu0 %v2982
      %v2984 = vpop.xlane.xlu0 %2983
      %v2985 = vmul.f32 %v2984, %v866
      %v2986 = vmul.f32 %v2978, %v2978
      %v2987 = vmul.f32 %v2979, %v2979
      %v2988 = vsel %vm991, %v2986, 0.0
      %v2989 = vsel %vm991, %v2987, 0.0
      %v2990 = vadd.f32 %v2988, %v2989
      %2991 = vadd.xlane.f32.xlu0 %v2990
      %v2992 = vpop.xlane.xlu0 %2991
      %v2993 = vmul.f32 %v2992, %v866
      %v2994 = vmul.f32 %v2985, %v2985
      %v2995 = vsub.f32 %v2993, %v2994
      %v2996 = vmax.f32 %v2995, 0.0
      %v2997 = vsub.f32 %v2978, %v2985
      %v2998 = vsub.f32 %v2979, %v2985
      %v2999 = vadd.f32 %v2996, 1e-05
      %v3000 = vrsqrt.pop %v2999
      %v3001 = vmul.f32 %v3000, %v2999
      %v3002 = vmul.f32 %v3001, %v3000
      %v3003 = vmul.f32 0.5, %v3002
      %v3004 = vsub.f32 1.5, %v3003
      %v3005 = vmul.f32 %v3000, %v3004
      %vm3006 = vweird.f32 %v2999
      %vm3007 = vweird.f32 %v3000
      %vm3008 = vmor %vm3006, %vm3007
      %v3009 = vsel %vm3008, %v3000, %v3005
      %v3010 = vmul.f32 %v2997, %v3009
      %v3011 = vmul.f32 %v2998, %v3009
      %v3012 = vmax.f32 %v3010, 0.0
      %v3013 = vmax.f32 %v3011, 0.0
      %v3014 = vrot.slane %v2772, 4
      %v3015 = vrot.slane %v2773, 4
      %v3018 = vadd.f32 %v3012, %v3014
      %v3019 = vadd.f32 %v3013, %v3015
      %3020 = vrot.lane.b32.xlu0 %v3018, 16
      %v3021 = vpop.permute.xlu0 %3020
      %3022 = vrot.lane.b32.xlu0 %v3019, 16
      %v3023 = vpop.permute.xlu0 %3022
      %v3024 = vsel %vm648, %v3021, %v3023
      %v3025 = vsel %vm648, %v3023, %v3021
      %v3026 = vmul.f32 %v3025, %v2800
      %v3027 = vmul.f32 %v3024, %v2801
      %3028 = vrot.lane.b32.xlu0 %v3018, 112
      %v3029 = vpop.permute.xlu0 %3028
      %3030 = vrot.lane.b32.xlu0 %v3019, 112
      %v3031 = vpop.permute.xlu0 %3030
      %v3032 = vsel %vm671, %v3029, %v3031
      %v3033 = vsel %vm671, %v3031, %v3029
      %v3034 = vmul.f32 %v3032, %v2814
      %v3035 = vmul.f32 %v3033, %v2815
      %s3036 = scalar_lea.vmem %s7, 36
      %v3037 = vld [vmem:[%s3036] sm:$0x3]
      %s3038 = scalar_lea.vmem %s7, 38
      %v3039 = vld [vmem:[%s3038] sm:$0x3]
      %v3041 = vsel %vm987, %v3039, 0
      %v3044 = vsel %vm991, %v3018, 0
      %v3047 = vsel %vm991, %v3019, 0
      %3049 = vmatpush.msra.mxu0 0.0
      %3050 = vmatpush.msra.mxu0 0.0
      %3051 = vmatpush.msra.mxu0 0.0
      %3052 = vmatpush.msra.mxu0 0.0
      %3053 = vmatpush.msra.mxu0 0.0
      %3054 = vmatpush.msra.mxu0 0.0
      %3055 = vmatpush.msra.mxu0 0.0
      %3056 = vmatpush.msra.mxu0 0.0
      %3057 = vmatpush.msra.mxu0 0.0
      %3058 = vmatpush.msra.mxu0 0.0
      %3059 = vmatpush.msra.mxu0 0.0
      %3060 = vmatpush.msra.mxu0 0.0
      %3061 = vmatpush.msra.mxu0 0.0
      %3062 = vmatpush.msra.mxu0 0.0
      %3063 = vmatpush.msra.mxu0 0.0
      %3064 = vmatpush.msra.mxu0 %v3044
      %3065 = vmatmul.f32.gmra.mxu0 %v3041
      %v3066 = vpop.f32.mrf.mxu0
      %v3067 = vadd.f32 0.0, %v3066
      %3068 = vdwg.mxu0
      %3069 = vmatpush.msra.mxu0 0.0
      %3070 = vmatpush.msra.mxu0 0.0
      %3071 = vmatpush.msra.mxu0 0.0
      %3072 = vmatpush.msra.mxu0 0.0
      %3073 = vmatpush.msra.mxu0 0.0
      %3074 = vmatpush.msra.mxu0 0.0
      %3075 = vmatpush.msra.mxu0 0.0
      %3076 = vmatpush.msra.mxu0 0.0
      %3077 = vmatpush.msra.mxu0 0.0
      %3078 = vmatpush.msra.mxu0 0.0
      %3079 = vmatpush.msra.mxu0 0.0
      %3080 = vmatpush.msra.mxu0 0.0
      %3081 = vmatpush.msra.mxu0 0.0
      %3082 = vmatpush.msra.mxu0 0.0
      %3083 = vmatpush.msra.mxu0 0.0
      %3084 = vmatpush.msra.mxu0 %v3047
      %3085 = vmatmul.f32.gmra.mxu0 %v3041
      %v3086 = vpop.f32.mrf.mxu0
      %v3087 = vadd.f32 0.0, %v3086
      %3088 = vdwg.mxu0
      %v3090 = vsel %vm987, %v3037, 0
      %v3093 = vsel %vm991, %v3026, 0
      %v3096 = vsel %vm991, %v3027, 0
      %3098 = vmatpush.msra.mxu0 0.0
      %3099 = vmatpush.msra.mxu0 0.0
      %3100 = vmatpush.msra.mxu0 0.0
      %3101 = vmatpush.msra.mxu0 0.0
      %3102 = vmatpush.msra.mxu0 0.0
      %3103 = vmatpush.msra.mxu0 0.0
      %3104 = vmatpush.msra.mxu0 0.0
      %3105 = vmatpush.msra.mxu0 0.0
      %3106 = vmatpush.msra.mxu0 0.0
      %3107 = vmatpush.msra.mxu0 0.0
      %3108 = vmatpush.msra.mxu0 0.0
      %3109 = vmatpush.msra.mxu0 0.0
      %3110 = vmatpush.msra.mxu0 0.0
      %3111 = vmatpush.msra.mxu0 0.0
      %3112 = vmatpush.msra.mxu0 0.0
      %3113 = vmatpush.msra.mxu0 %v3093
      %3114 = vmatmul.f32.gmra.mxu0 %v3090
      %v3115 = vpop.f32.mrf.mxu0
      %v3116 = vadd.f32 %v3067, %v3115
      %3117 = vdwg.mxu0
      %3118 = vmatpush.msra.mxu0 0.0
      %3119 = vmatpush.msra.mxu0 0.0
      %3120 = vmatpush.msra.mxu0 0.0
      %3121 = vmatpush.msra.mxu0 0.0
      %3122 = vmatpush.msra.mxu0 0.0
      %3123 = vmatpush.msra.mxu0 0.0
      %3124 = vmatpush.msra.mxu0 0.0
      %3125 = vmatpush.msra.mxu0 0.0
      %3126 = vmatpush.msra.mxu0 0.0
      %3127 = vmatpush.msra.mxu0 0.0
      %3128 = vmatpush.msra.mxu0 0.0
      %3129 = vmatpush.msra.mxu0 0.0
      %3130 = vmatpush.msra.mxu0 0.0
      %3131 = vmatpush.msra.mxu0 0.0
      %3132 = vmatpush.msra.mxu0 0.0
      %3133 = vmatpush.msra.mxu0 %v3096
      %3134 = vmatmul.f32.gmra.mxu0 %v3090
      %v3135 = vpop.f32.mrf.mxu0
      %v3136 = vadd.f32 %v3087, %v3135
      %3137 = vdwg.mxu0
      %s3138 = scalar_lea.vmem %s7, 40
      %v3139 = vld [vmem:[%s3138] sm:$0x3]
      %v3141 = vsel %vm987, %v3139, 0
      %v3144 = vsel %vm991, %v3034, 0
      %v3147 = vsel %vm991, %v3035, 0
      %3149 = vmatpush.msra.mxu0 0.0
      %3150 = vmatpush.msra.mxu0 0.0
      %3151 = vmatpush.msra.mxu0 0.0
      %3152 = vmatpush.msra.mxu0 0.0
      %3153 = vmatpush.msra.mxu0 0.0
      %3154 = vmatpush.msra.mxu0 0.0
      %3155 = vmatpush.msra.mxu0 0.0
      %3156 = vmatpush.msra.mxu0 0.0
      %3157 = vmatpush.msra.mxu0 0.0
      %3158 = vmatpush.msra.mxu0 0.0
      %3159 = vmatpush.msra.mxu0 0.0
      %3160 = vmatpush.msra.mxu0 0.0
      %3161 = vmatpush.msra.mxu0 0.0
      %3162 = vmatpush.msra.mxu0 0.0
      %3163 = vmatpush.msra.mxu0 0.0
      %3164 = vmatpush.msra.mxu0 %v3144
      %3165 = vmatmul.f32.gmra.mxu0 %v3141
      %v3166 = vpop.f32.mrf.mxu0
      %v3167 = vadd.f32 0.0, %v3166
      %3168 = vdwg.mxu0
      %3169 = vmatpush.msra.mxu0 0.0
      %3170 = vmatpush.msra.mxu0 0.0
      %3171 = vmatpush.msra.mxu0 0.0
      %3172 = vmatpush.msra.mxu0 0.0
      %3173 = vmatpush.msra.mxu0 0.0
      %3174 = vmatpush.msra.mxu0 0.0
      %3175 = vmatpush.msra.mxu0 0.0
      %3176 = vmatpush.msra.mxu0 0.0
      %3177 = vmatpush.msra.mxu0 0.0
      %3178 = vmatpush.msra.mxu0 0.0
      %3179 = vmatpush.msra.mxu0 0.0
      %3180 = vmatpush.msra.mxu0 0.0
      %3181 = vmatpush.msra.mxu0 0.0
      %3182 = vmatpush.msra.mxu0 0.0
      %3183 = vmatpush.msra.mxu0 0.0
      %3184 = vmatpush.msra.mxu0 %v3147
      %3185 = vmatmul.f32.gmra.mxu0 %v3141
      %v3186 = vpop.f32.mrf.mxu0
      %v3187 = vadd.f32 0.0, %v3186
      %3188 = vdwg.mxu0
      %v3189 = vadd.f32 %v3116, %v3167
      %v3190 = vadd.f32 %v3136, %v3187
      %s3191 = scalar_lea.vmem %s8, 12
      %v3192 = vld [vmem:[%s3191] sm:$0x3]
      %3194 = vset.pattern.permute.xlu0 0
      %3195 = vperm.xlu0 %3194, %v3192
      %v3196 = vpop.permute.xlu0 %3195
      %v3198 = vadd.f32 %v3189, %v3196
      %v3199 = vadd.f32 %v3190, %v3196
      %v3200 = vsel %vm991, %v3198, 0.0
      %v3201 = vsel %vm991, %v3199, 0.0
      %v3202 = vadd.f32 %v3200, %v3201
      %3203 = vadd.xlane.f32.xlu0 %v3202
      %v3204 = vpop.xlane.xlu0 %3203
      %v3205 = vmul.f32 %v3204, %v866
      %v3206 = vmul.f32 %v3198, %v3198
      %v3207 = vmul.f32 %v3199, %v3199
      %v3208 = vsel %vm991, %v3206, 0.0
      %v3209 = vsel %vm991, %v3207, 0.0
      %v3210 = vadd.f32 %v3208, %v3209
      %3211 = vadd.xlane.f32.xlu0 %v3210
      %v3212 = vpop.xlane.xlu0 %3211
      %v3213 = vmul.f32 %v3212, %v866
      %v3214 = vmul.f32 %v3205, %v3205
      %v3215 = vsub.f32 %v3213, %v3214
      %v3216 = vmax.f32 %v3215, 0.0
      %v3217 = vsub.f32 %v3198, %v3205
      %v3218 = vsub.f32 %v3199, %v3205
      %v3219 = vadd.f32 %v3216, 1e-05
      %v3220 = vrsqrt.pop %v3219
      %v3221 = vmul.f32 %v3220, %v3219
      %v3222 = vmul.f32 %v3221, %v3220
      %v3223 = vmul.f32 0.5, %v3222
      %v3224 = vsub.f32 1.5, %v3223
      %v3225 = vmul.f32 %v3220, %v3224
      %vm3226 = vweird.f32 %v3219
      %vm3227 = vweird.f32 %v3220
      %vm3228 = vmor %vm3226, %vm3227
      %v3229 = vsel %vm3228, %v3220, %v3225
      %v3230 = vmul.f32 %v3217, %v3229
      %v3231 = vmul.f32 %v3218, %v3229
      %v3232 = vmax.f32 %v3230, 0.0
      %v3233 = vmax.f32 %v3231, 0.0
      %v3234 = vadd.f32 %v3232, %v2778
      %v3235 = vadd.f32 %v3233, %v2779
      %3236 = vrot.lane.b32.xlu0 %v3234, 16
      %v3237 = vpop.permute.xlu0 %3236
      %3238 = vrot.lane.b32.xlu0 %v3235, 16
      %v3239 = vpop.permute.xlu0 %3238
      %v3240 = vsel %vm648, %v3237, %v3239
      %v3241 = vsel %vm648, %v3239, %v3237
      %v3242 = vmul.f32 %v3241, %v2800
      %v3243 = vmul.f32 %v3240, %v2801
      %3244 = vrot.lane.b32.xlu0 %v3234, 112
      %v3245 = vpop.permute.xlu0 %3244
      %3246 = vrot.lane.b32.xlu0 %v3235, 112
      %v3247 = vpop.permute.xlu0 %3246
      %v3248 = vsel %vm671, %v3245, %v3247
      %v3249 = vsel %vm671, %v3247, %v3245
      %v3250 = vmul.f32 %v3248, %v2814
      %v3251 = vmul.f32 %v3249, %v2815
      %s3252 = scalar_lea.vmem %s7, 42
      %v3253 = vld [vmem:[%s3252] sm:$0x3]
      %s3254 = scalar_lea.vmem %s7, 44
      %v3255 = vld [vmem:[%s3254] sm:$0x3]
      %v3257 = vsel %vm987, %v3255, 0
      %v3260 = vsel %vm991, %v3234, 0
      %v3263 = vsel %vm991, %v3235, 0
      %3265 = vmatpush.msra.mxu0 0.0
      %3266 = vmatpush.msra.mxu0 0.0
      %3267 = vmatpush.msra.mxu0 0.0
      %3268 = vmatpush.msra.mxu0 0.0
      %3269 = vmatpush.msra.mxu0 0.0
      %3270 = vmatpush.msra.mxu0 0.0
      %3271 = vmatpush.msra.mxu0 0.0
      %3272 = vmatpush.msra.mxu0 0.0
      %3273 = vmatpush.msra.mxu0 0.0
      %3274 = vmatpush.msra.mxu0 0.0
      %3275 = vmatpush.msra.mxu0 0.0
      %3276 = vmatpush.msra.mxu0 0.0
      %3277 = vmatpush.msra.mxu0 0.0
      %3278 = vmatpush.msra.mxu0 0.0
      %3279 = vmatpush.msra.mxu0 0.0
      %3280 = vmatpush.msra.mxu0 %v3260
      %3281 = vmatmul.f32.gmra.mxu0 %v3257
      %v3282 = vpop.f32.mrf.mxu0
      %v3283 = vadd.f32 0.0, %v3282
      %3284 = vdwg.mxu0
      %3285 = vmatpush.msra.mxu0 0.0
      %3286 = vmatpush.msra.mxu0 0.0
      %3287 = vmatpush.msra.mxu0 0.0
      %3288 = vmatpush.msra.mxu0 0.0
      %3289 = vmatpush.msra.mxu0 0.0
      %3290 = vmatpush.msra.mxu0 0.0
      %3291 = vmatpush.msra.mxu0 0.0
      %3292 = vmatpush.msra.mxu0 0.0
      %3293 = vmatpush.msra.mxu0 0.0
      %3294 = vmatpush.msra.mxu0 0.0
      %3295 = vmatpush.msra.mxu0 0.0
      %3296 = vmatpush.msra.mxu0 0.0
      %3297 = vmatpush.msra.mxu0 0.0
      %3298 = vmatpush.msra.mxu0 0.0
      %3299 = vmatpush.msra.mxu0 0.0
      %3300 = vmatpush.msra.mxu0 %v3263
      %3301 = vmatmul.f32.gmra.mxu0 %v3257
      %v3302 = vpop.f32.mrf.mxu0
      %v3303 = vadd.f32 0.0, %v3302
      %3304 = vdwg.mxu0
      %v3306 = vsel %vm987, %v3253, 0
      %v3309 = vsel %vm991, %v3242, 0
      %v3312 = vsel %vm991, %v3243, 0
      %3314 = vmatpush.msra.mxu0 0.0
      %3315 = vmatpush.msra.mxu0 0.0
      %3316 = vmatpush.msra.mxu0 0.0
      %3317 = vmatpush.msra.mxu0 0.0
      %3318 = vmatpush.msra.mxu0 0.0
      %3319 = vmatpush.msra.mxu0 0.0
      %3320 = vmatpush.msra.mxu0 0.0
      %3321 = vmatpush.msra.mxu0 0.0
      %3322 = vmatpush.msra.mxu0 0.0
      %3323 = vmatpush.msra.mxu0 0.0
      %3324 = vmatpush.msra.mxu0 0.0
      %3325 = vmatpush.msra.mxu0 0.0
      %3326 = vmatpush.msra.mxu0 0.0
      %3327 = vmatpush.msra.mxu0 0.0
      %3328 = vmatpush.msra.mxu0 0.0
      %3329 = vmatpush.msra.mxu0 %v3309
      %3330 = vmatmul.f32.gmra.mxu0 %v3306
      %v3331 = vpop.f32.mrf.mxu0
      %v3332 = vadd.f32 %v3283, %v3331
      %3333 = vdwg.mxu0
      %3334 = vmatpush.msra.mxu0 0.0
      %3335 = vmatpush.msra.mxu0 0.0
      %3336 = vmatpush.msra.mxu0 0.0
      %3337 = vmatpush.msra.mxu0 0.0
      %3338 = vmatpush.msra.mxu0 0.0
      %3339 = vmatpush.msra.mxu0 0.0
      %3340 = vmatpush.msra.mxu0 0.0
      %3341 = vmatpush.msra.mxu0 0.0
      %3342 = vmatpush.msra.mxu0 0.0
      %3343 = vmatpush.msra.mxu0 0.0
      %3344 = vmatpush.msra.mxu0 0.0
      %3345 = vmatpush.msra.mxu0 0.0
      %3346 = vmatpush.msra.mxu0 0.0
      %3347 = vmatpush.msra.mxu0 0.0
      %3348 = vmatpush.msra.mxu0 0.0
      %3349 = vmatpush.msra.mxu0 %v3312
      %3350 = vmatmul.f32.gmra.mxu0 %v3306
      %v3351 = vpop.f32.mrf.mxu0
      %v3352 = vadd.f32 %v3303, %v3351
      %3353 = vdwg.mxu0
      %s3354 = scalar_lea.vmem %s7, 46
      %v3355 = vld [vmem:[%s3354] sm:$0x3]
      %v3357 = vsel %vm987, %v3355, 0
      %v3360 = vsel %vm991, %v3250, 0
      %v3363 = vsel %vm991, %v3251, 0
      %3365 = vmatpush.msra.mxu0 0.0
      %3366 = vmatpush.msra.mxu0 0.0
      %3367 = vmatpush.msra.mxu0 0.0
      %3368 = vmatpush.msra.mxu0 0.0
      %3369 = vmatpush.msra.mxu0 0.0
      %3370 = vmatpush.msra.mxu0 0.0
      %3371 = vmatpush.msra.mxu0 0.0
      %3372 = vmatpush.msra.mxu0 0.0
      %3373 = vmatpush.msra.mxu0 0.0
      %3374 = vmatpush.msra.mxu0 0.0
      %3375 = vmatpush.msra.mxu0 0.0
      %3376 = vmatpush.msra.mxu0 0.0
      %3377 = vmatpush.msra.mxu0 0.0
      %3378 = vmatpush.msra.mxu0 0.0
      %3379 = vmatpush.msra.mxu0 0.0
      %3380 = vmatpush.msra.mxu0 %v3360
      %3381 = vmatmul.f32.gmra.mxu0 %v3357
      %v3382 = vpop.f32.mrf.mxu0
      %v3383 = vadd.f32 0.0, %v3382
      %3384 = vdwg.mxu0
      %3385 = vmatpush.msra.mxu0 0.0
      %3386 = vmatpush.msra.mxu0 0.0
      %3387 = vmatpush.msra.mxu0 0.0
      %3388 = vmatpush.msra.mxu0 0.0
      %3389 = vmatpush.msra.mxu0 0.0
      %3390 = vmatpush.msra.mxu0 0.0
      %3391 = vmatpush.msra.mxu0 0.0
      %3392 = vmatpush.msra.mxu0 0.0
      %3393 = vmatpush.msra.mxu0 0.0
      %3394 = vmatpush.msra.mxu0 0.0
      %3395 = vmatpush.msra.mxu0 0.0
      %3396 = vmatpush.msra.mxu0 0.0
      %3397 = vmatpush.msra.mxu0 0.0
      %3398 = vmatpush.msra.mxu0 0.0
      %3399 = vmatpush.msra.mxu0 0.0
      %3400 = vmatpush.msra.mxu0 %v3363
      %3401 = vmatmul.f32.gmra.mxu0 %v3357
      %v3402 = vpop.f32.mrf.mxu0
      %v3403 = vadd.f32 0.0, %v3402
      %3404 = vdwg.mxu0
      %v3405 = vadd.f32 %v3332, %v3383
      %v3406 = vadd.f32 %v3352, %v3403
      %s3407 = scalar_lea.vmem %s8, 14
      %v3408 = vld [vmem:[%s3407] sm:$0x3]
      %3410 = vset.pattern.permute.xlu0 0
      %3411 = vperm.xlu0 %3410, %v3408
      %v3412 = vpop.permute.xlu0 %3411
      %v3414 = vadd.f32 %v3405, %v3412
      %v3415 = vadd.f32 %v3406, %v3412
      %v3416 = vsel %vm991, %v3414, 0.0
      %v3417 = vsel %vm991, %v3415, 0.0
      %v3418 = vadd.f32 %v3416, %v3417
      %3419 = vadd.xlane.f32.xlu0 %v3418
      %v3420 = vpop.xlane.xlu0 %3419
      %v3421 = vmul.f32 %v3420, %v866
      %v3422 = vmul.f32 %v3414, %v3414
      %v3423 = vmul.f32 %v3415, %v3415
      %v3424 = vsel %vm991, %v3422, 0.0
      %v3425 = vsel %vm991, %v3423, 0.0
      %v3426 = vadd.f32 %v3424, %v3425
      %3427 = vadd.xlane.f32.xlu0 %v3426
      %v3428 = vpop.xlane.xlu0 %3427
      %v3429 = vmul.f32 %v3428, %v866
      %v3430 = vmul.f32 %v3421, %v3421
      %v3431 = vsub.f32 %v3429, %v3430
      %v3432 = vmax.f32 %v3431, 0.0
      %v3433 = vsub.f32 %v3414, %v3421
      %v3434 = vsub.f32 %v3415, %v3421
      %v3435 = vadd.f32 %v3432, 1e-05
      %v3436 = vrsqrt.pop %v3435
      %v3437 = vmul.f32 %v3436, %v3435
      %v3438 = vmul.f32 %v3437, %v3436
      %v3439 = vmul.f32 0.5, %v3438
      %v3440 = vsub.f32 1.5, %v3439
      %v3441 = vmul.f32 %v3436, %v3440
      %vm3442 = vweird.f32 %v3435
      %vm3443 = vweird.f32 %v3436
      %vm3444 = vmor %vm3442, %vm3443
      %v3445 = vsel %vm3444, %v3436, %v3441
      %v3446 = vmul.f32 %v3433, %v3445
      %v3447 = vmul.f32 %v3434, %v3445
      %v3448 = vmax.f32 %v3446, 0.0
      %v3449 = vmax.f32 %v3447, 0.0
      %v3450 = vadd.f32 %v3448, %v2774
      %v3451 = vadd.f32 %v3449, %v2775
      %3452 = vrot.lane.b32.xlu0 %v3450, 16
      %v3453 = vpop.permute.xlu0 %3452
      %3454 = vrot.lane.b32.xlu0 %v3451, 16
      %v3455 = vpop.permute.xlu0 %3454
      %v3456 = vsel %vm648, %v3453, %v3455
      %v3457 = vsel %vm648, %v3455, %v3453
      %v3458 = vmul.f32 %v3457, %v2800
      %v3459 = vmul.f32 %v3456, %v2801
      %3460 = vrot.lane.b32.xlu0 %v3450, 112
      %v3461 = vpop.permute.xlu0 %3460
      %3462 = vrot.lane.b32.xlu0 %v3451, 112
      %v3463 = vpop.permute.xlu0 %3462
      %v3464 = vsel %vm671, %v3461, %v3463
      %v3465 = vsel %vm671, %v3463, %v3461
      %v3466 = vmul.f32 %v3464, %v2814
      %v3467 = vmul.f32 %v3465, %v2815
      %s3468 = scalar_lea.vmem %s7, 48
      %v3469 = vld [vmem:[%s3468] sm:$0x3]
      %s3470 = scalar_lea.vmem %s7, 50
      %v3471 = vld [vmem:[%s3470] sm:$0x3]
      %v3473 = vsel %vm987, %v3471, 0
      %v3476 = vsel %vm991, %v3450, 0
      %v3479 = vsel %vm991, %v3451, 0
      %3481 = vmatpush.msra.mxu0 0.0
      %3482 = vmatpush.msra.mxu0 0.0
      %3483 = vmatpush.msra.mxu0 0.0
      %3484 = vmatpush.msra.mxu0 0.0
      %3485 = vmatpush.msra.mxu0 0.0
      %3486 = vmatpush.msra.mxu0 0.0
      %3487 = vmatpush.msra.mxu0 0.0
      %3488 = vmatpush.msra.mxu0 0.0
      %3489 = vmatpush.msra.mxu0 0.0
      %3490 = vmatpush.msra.mxu0 0.0
      %3491 = vmatpush.msra.mxu0 0.0
      %3492 = vmatpush.msra.mxu0 0.0
      %3493 = vmatpush.msra.mxu0 0.0
      %3494 = vmatpush.msra.mxu0 0.0
      %3495 = vmatpush.msra.mxu0 0.0
      %3496 = vmatpush.msra.mxu0 %v3476
      %3497 = vmatmul.f32.gmra.mxu0 %v3473
      %v3498 = vpop.f32.mrf.mxu0
      %v3499 = vadd.f32 0.0, %v3498
      %3500 = vdwg.mxu0
      %3501 = vmatpush.msra.mxu0 0.0
      %3502 = vmatpush.msra.mxu0 0.0
      %3503 = vmatpush.msra.mxu0 0.0
      %3504 = vmatpush.msra.mxu0 0.0
      %3505 = vmatpush.msra.mxu0 0.0
      %3506 = vmatpush.msra.mxu0 0.0
      %3507 = vmatpush.msra.mxu0 0.0
      %3508 = vmatpush.msra.mxu0 0.0
      %3509 = vmatpush.msra.mxu0 0.0
      %3510 = vmatpush.msra.mxu0 0.0
      %3511 = vmatpush.msra.mxu0 0.0
      %3512 = vmatpush.msra.mxu0 0.0
      %3513 = vmatpush.msra.mxu0 0.0
      %3514 = vmatpush.msra.mxu0 0.0
      %3515 = vmatpush.msra.mxu0 0.0
      %3516 = vmatpush.msra.mxu0 %v3479
      %3517 = vmatmul.f32.gmra.mxu0 %v3473
      %v3518 = vpop.f32.mrf.mxu0
      %v3519 = vadd.f32 0.0, %v3518
      %3520 = vdwg.mxu0
      %v3522 = vsel %vm987, %v3469, 0
      %v3525 = vsel %vm991, %v3458, 0
      %v3528 = vsel %vm991, %v3459, 0
      %3530 = vmatpush.msra.mxu0 0.0
      %3531 = vmatpush.msra.mxu0 0.0
      %3532 = vmatpush.msra.mxu0 0.0
      %3533 = vmatpush.msra.mxu0 0.0
      %3534 = vmatpush.msra.mxu0 0.0
      %3535 = vmatpush.msra.mxu0 0.0
      %3536 = vmatpush.msra.mxu0 0.0
      %3537 = vmatpush.msra.mxu0 0.0
      %3538 = vmatpush.msra.mxu0 0.0
      %3539 = vmatpush.msra.mxu0 0.0
      %3540 = vmatpush.msra.mxu0 0.0
      %3541 = vmatpush.msra.mxu0 0.0
      %3542 = vmatpush.msra.mxu0 0.0
      %3543 = vmatpush.msra.mxu0 0.0
      %3544 = vmatpush.msra.mxu0 0.0
      %3545 = vmatpush.msra.mxu0 %v3525
      %3546 = vmatmul.f32.gmra.mxu0 %v3522
      %v3547 = vpop.f32.mrf.mxu0
      %v3548 = vadd.f32 %v3499, %v3547
      %3549 = vdwg.mxu0
      %3550 = vmatpush.msra.mxu0 0.0
      %3551 = vmatpush.msra.mxu0 0.0
      %3552 = vmatpush.msra.mxu0 0.0
      %3553 = vmatpush.msra.mxu0 0.0
      %3554 = vmatpush.msra.mxu0 0.0
      %3555 = vmatpush.msra.mxu0 0.0
      %3556 = vmatpush.msra.mxu0 0.0
      %3557 = vmatpush.msra.mxu0 0.0
      %3558 = vmatpush.msra.mxu0 0.0
      %3559 = vmatpush.msra.mxu0 0.0
      %3560 = vmatpush.msra.mxu0 0.0
      %3561 = vmatpush.msra.mxu0 0.0
      %3562 = vmatpush.msra.mxu0 0.0
      %3563 = vmatpush.msra.mxu0 0.0
      %3564 = vmatpush.msra.mxu0 0.0
      %3565 = vmatpush.msra.mxu0 %v3528
      %3566 = vmatmul.f32.gmra.mxu0 %v3522
      %v3567 = vpop.f32.mrf.mxu0
      %v3568 = vadd.f32 %v3519, %v3567
      %3569 = vdwg.mxu0
      %s3570 = scalar_lea.vmem %s7, 52
      %v3571 = vld [vmem:[%s3570] sm:$0x3]
      %v3573 = vsel %vm987, %v3571, 0
      %v3576 = vsel %vm991, %v3466, 0
      %v3579 = vsel %vm991, %v3467, 0
      %3581 = vmatpush.msra.mxu0 0.0
      %3582 = vmatpush.msra.mxu0 0.0
      %3583 = vmatpush.msra.mxu0 0.0
      %3584 = vmatpush.msra.mxu0 0.0
      %3585 = vmatpush.msra.mxu0 0.0
      %3586 = vmatpush.msra.mxu0 0.0
      %3587 = vmatpush.msra.mxu0 0.0
      %3588 = vmatpush.msra.mxu0 0.0
      %3589 = vmatpush.msra.mxu0 0.0
      %3590 = vmatpush.msra.mxu0 0.0
      %3591 = vmatpush.msra.mxu0 0.0
      %3592 = vmatpush.msra.mxu0 0.0
      %3593 = vmatpush.msra.mxu0 0.0
      %3594 = vmatpush.msra.mxu0 0.0
      %3595 = vmatpush.msra.mxu0 0.0
      %3596 = vmatpush.msra.mxu0 %v3576
      %3597 = vmatmul.f32.gmra.mxu0 %v3573
      %v3598 = vpop.f32.mrf.mxu0
      %v3599 = vadd.f32 0.0, %v3598
      %3600 = vdwg.mxu0
      %3601 = vmatpush.msra.mxu0 0.0
      %3602 = vmatpush.msra.mxu0 0.0
      %3603 = vmatpush.msra.mxu0 0.0
      %3604 = vmatpush.msra.mxu0 0.0
      %3605 = vmatpush.msra.mxu0 0.0
      %3606 = vmatpush.msra.mxu0 0.0
      %3607 = vmatpush.msra.mxu0 0.0
      %3608 = vmatpush.msra.mxu0 0.0
      %3609 = vmatpush.msra.mxu0 0.0
      %3610 = vmatpush.msra.mxu0 0.0
      %3611 = vmatpush.msra.mxu0 0.0
      %3612 = vmatpush.msra.mxu0 0.0
      %3613 = vmatpush.msra.mxu0 0.0
      %3614 = vmatpush.msra.mxu0 0.0
      %3615 = vmatpush.msra.mxu0 0.0
      %3616 = vmatpush.msra.mxu0 %v3579
      %3617 = vmatmul.f32.gmra.mxu0 %v3573
      %v3618 = vpop.f32.mrf.mxu0
      %v3619 = vadd.f32 0.0, %v3618
      %3620 = vdwg.mxu0
      %v3621 = vadd.f32 %v3548, %v3599
      %v3622 = vadd.f32 %v3568, %v3619
      %s3623 = scalar_lea.vmem %s8, 16
      %v3624 = vld [vmem:[%s3623] sm:$0x3]
      %3626 = vset.pattern.permute.xlu0 0
      %3627 = vperm.xlu0 %3626, %v3624
      %v3628 = vpop.permute.xlu0 %3627
      %v3630 = vadd.f32 %v3621, %v3628
      %v3631 = vadd.f32 %v3622, %v3628
      %v3632 = vsel %vm991, %v3630, 0.0
      %v3633 = vsel %vm991, %v3631, 0.0
      %v3634 = vadd.f32 %v3632, %v3633
      %3635 = vadd.xlane.f32.xlu0 %v3634
      %v3636 = vpop.xlane.xlu0 %3635
      %v3637 = vmul.f32 %v3636, %v866
      %v3638 = vmul.f32 %v3630, %v3630
      %v3639 = vmul.f32 %v3631, %v3631
      %v3640 = vsel %vm991, %v3638, 0.0
      %v3641 = vsel %vm991, %v3639, 0.0
      %v3642 = vadd.f32 %v3640, %v3641
      %3643 = vadd.xlane.f32.xlu0 %v3642
      %v3644 = vpop.xlane.xlu0 %3643
      %v3645 = vmul.f32 %v3644, %v866
      %v3646 = vmul.f32 %v3637, %v3637
      %v3647 = vsub.f32 %v3645, %v3646
      %v3648 = vmax.f32 %v3647, 0.0
      %v3649 = vsub.f32 %v3630, %v3637
      %v3650 = vsub.f32 %v3631, %v3637
      %v3651 = vadd.f32 %v3648, 1e-05
      %v3652 = vrsqrt.pop %v3651
      %v3653 = vmul.f32 %v3652, %v3651
      %v3654 = vmul.f32 %v3653, %v3652
      %v3655 = vmul.f32 0.5, %v3654
      %v3656 = vsub.f32 1.5, %v3655
      %v3657 = vmul.f32 %v3652, %v3656
      %vm3658 = vweird.f32 %v3651
      %vm3659 = vweird.f32 %v3652
      %vm3660 = vmor %vm3658, %vm3659
      %v3661 = vsel %vm3660, %v3652, %v3657
      %v3662 = vmul.f32 %v3649, %v3661
      %v3663 = vmul.f32 %v3650, %v3661
      %v3664 = vmax.f32 %v3662, 0.0
      %v3665 = vmax.f32 %v3663, 0.0
      %v3668 = vrot.slane %v2774, 2
      %v3669 = vrot.slane %v2775, 2
      %v3672 = vadd.f32 %v3664, %v3668
      %v3673 = vadd.f32 %v3665, %v3669
      %3674 = vrot.lane.b32.xlu0 %v3672, 16
      %v3675 = vpop.permute.xlu0 %3674
      %3676 = vrot.lane.b32.xlu0 %v3673, 16
      %v3677 = vpop.permute.xlu0 %3676
      %v3678 = vsel %vm648, %v3675, %v3677
      %v3679 = vsel %vm648, %v3677, %v3675
      %v3680 = vmul.f32 %v3679, %v2800
      %v3681 = vmul.f32 %v3678, %v2801
      %3682 = vrot.lane.b32.xlu0 %v3672, 112
      %v3683 = vpop.permute.xlu0 %3682
      %3684 = vrot.lane.b32.xlu0 %v3673, 112
      %v3685 = vpop.permute.xlu0 %3684
      %v3686 = vsel %vm671, %v3683, %v3685
      %v3687 = vsel %vm671, %v3685, %v3683
      %v3688 = vmul.f32 %v3686, %v2814
      %v3689 = vmul.f32 %v3687, %v2815
      %s3690 = scalar_lea.vmem %s7, 54
      %v3691 = vld [vmem:[%s3690] sm:$0x3]
      %s3692 = scalar_lea.vmem %s7, 56
      %v3693 = vld [vmem:[%s3692] sm:$0x3]
      %v3695 = vsel %vm987, %v3693, 0
      %v3698 = vsel %vm991, %v3672, 0
      %v3701 = vsel %vm991, %v3673, 0
      %3703 = vmatpush.msra.mxu0 0.0
      %3704 = vmatpush.msra.mxu0 0.0
      %3705 = vmatpush.msra.mxu0 0.0
      %3706 = vmatpush.msra.mxu0 0.0
      %3707 = vmatpush.msra.mxu0 0.0
      %3708 = vmatpush.msra.mxu0 0.0
      %3709 = vmatpush.msra.mxu0 0.0
      %3710 = vmatpush.msra.mxu0 0.0
      %3711 = vmatpush.msra.mxu0 0.0
      %3712 = vmatpush.msra.mxu0 0.0
      %3713 = vmatpush.msra.mxu0 0.0
      %3714 = vmatpush.msra.mxu0 0.0
      %3715 = vmatpush.msra.mxu0 0.0
      %3716 = vmatpush.msra.mxu0 0.0
      %3717 = vmatpush.msra.mxu0 0.0
      %3718 = vmatpush.msra.mxu0 %v3698
      %3719 = vmatmul.f32.gmra.mxu0 %v3695
      %v3720 = vpop.f32.mrf.mxu0
      %v3721 = vadd.f32 0.0, %v3720
      %3722 = vdwg.mxu0
      %3723 = vmatpush.msra.mxu0 0.0
      %3724 = vmatpush.msra.mxu0 0.0
      %3725 = vmatpush.msra.mxu0 0.0
      %3726 = vmatpush.msra.mxu0 0.0
      %3727 = vmatpush.msra.mxu0 0.0
      %3728 = vmatpush.msra.mxu0 0.0
      %3729 = vmatpush.msra.mxu0 0.0
      %3730 = vmatpush.msra.mxu0 0.0
      %3731 = vmatpush.msra.mxu0 0.0
      %3732 = vmatpush.msra.mxu0 0.0
      %3733 = vmatpush.msra.mxu0 0.0
      %3734 = vmatpush.msra.mxu0 0.0
      %3735 = vmatpush.msra.mxu0 0.0
      %3736 = vmatpush.msra.mxu0 0.0
      %3737 = vmatpush.msra.mxu0 0.0
      %3738 = vmatpush.msra.mxu0 %v3701
      %3739 = vmatmul.f32.gmra.mxu0 %v3695
      %v3740 = vpop.f32.mrf.mxu0
      %v3741 = vadd.f32 0.0, %v3740
      %3742 = vdwg.mxu0
      %v3744 = vsel %vm987, %v3691, 0
      %v3747 = vsel %vm991, %v3680, 0
      %v3750 = vsel %vm991, %v3681, 0
      %3752 = vmatpush.msra.mxu0 0.0
      %3753 = vmatpush.msra.mxu0 0.0
      %3754 = vmatpush.msra.mxu0 0.0
      %3755 = vmatpush.msra.mxu0 0.0
      %3756 = vmatpush.msra.mxu0 0.0
      %3757 = vmatpush.msra.mxu0 0.0
      %3758 = vmatpush.msra.mxu0 0.0
      %3759 = vmatpush.msra.mxu0 0.0
      %3760 = vmatpush.msra.mxu0 0.0
      %3761 = vmatpush.msra.mxu0 0.0
      %3762 = vmatpush.msra.mxu0 0.0
      %3763 = vmatpush.msra.mxu0 0.0
      %3764 = vmatpush.msra.mxu0 0.0
      %3765 = vmatpush.msra.mxu0 0.0
      %3766 = vmatpush.msra.mxu0 0.0
      %3767 = vmatpush.msra.mxu0 %v3747
      %3768 = vmatmul.f32.gmra.mxu0 %v3744
      %v3769 = vpop.f32.mrf.mxu0
      %v3770 = vadd.f32 %v3721, %v3769
      %3771 = vdwg.mxu0
      %3772 = vmatpush.msra.mxu0 0.0
      %3773 = vmatpush.msra.mxu0 0.0
      %3774 = vmatpush.msra.mxu0 0.0
      %3775 = vmatpush.msra.mxu0 0.0
      %3776 = vmatpush.msra.mxu0 0.0
      %3777 = vmatpush.msra.mxu0 0.0
      %3778 = vmatpush.msra.mxu0 0.0
      %3779 = vmatpush.msra.mxu0 0.0
      %3780 = vmatpush.msra.mxu0 0.0
      %3781 = vmatpush.msra.mxu0 0.0
      %3782 = vmatpush.msra.mxu0 0.0
      %3783 = vmatpush.msra.mxu0 0.0
      %3784 = vmatpush.msra.mxu0 0.0
      %3785 = vmatpush.msra.mxu0 0.0
      %3786 = vmatpush.msra.mxu0 0.0
      %3787 = vmatpush.msra.mxu0 %v3750
      %3788 = vmatmul.f32.gmra.mxu0 %v3744
      %v3789 = vpop.f32.mrf.mxu0
      %v3790 = vadd.f32 %v3741, %v3789
      %3791 = vdwg.mxu0
      %s3792 = scalar_lea.vmem %s7, 58
      %v3793 = vld [vmem:[%s3792] sm:$0x3]
      %v3795 = vsel %vm987, %v3793, 0
      %v3798 = vsel %vm991, %v3688, 0
      %v3801 = vsel %vm991, %v3689, 0
      %3803 = vmatpush.msra.mxu0 0.0
      %3804 = vmatpush.msra.mxu0 0.0
      %3805 = vmatpush.msra.mxu0 0.0
      %3806 = vmatpush.msra.mxu0 0.0
      %3807 = vmatpush.msra.mxu0 0.0
      %3808 = vmatpush.msra.mxu0 0.0
      %3809 = vmatpush.msra.mxu0 0.0
      %3810 = vmatpush.msra.mxu0 0.0
      %3811 = vmatpush.msra.mxu0 0.0
      %3812 = vmatpush.msra.mxu0 0.0
      %3813 = vmatpush.msra.mxu0 0.0
      %3814 = vmatpush.msra.mxu0 0.0
      %3815 = vmatpush.msra.mxu0 0.0
      %3816 = vmatpush.msra.mxu0 0.0
      %3817 = vmatpush.msra.mxu0 0.0
      %3818 = vmatpush.msra.mxu0 %v3798
      %3819 = vmatmul.f32.gmra.mxu0 %v3795
      %v3820 = vpop.f32.mrf.mxu0
      %v3821 = vadd.f32 0.0, %v3820
      %3822 = vdwg.mxu0
      %3823 = vmatpush.msra.mxu0 0.0
      %3824 = vmatpush.msra.mxu0 0.0
      %3825 = vmatpush.msra.mxu0 0.0
      %3826 = vmatpush.msra.mxu0 0.0
      %3827 = vmatpush.msra.mxu0 0.0
      %3828 = vmatpush.msra.mxu0 0.0
      %3829 = vmatpush.msra.mxu0 0.0
      %3830 = vmatpush.msra.mxu0 0.0
      %3831 = vmatpush.msra.mxu0 0.0
      %3832 = vmatpush.msra.mxu0 0.0
      %3833 = vmatpush.msra.mxu0 0.0
      %3834 = vmatpush.msra.mxu0 0.0
      %3835 = vmatpush.msra.mxu0 0.0
      %3836 = vmatpush.msra.mxu0 0.0
      %3837 = vmatpush.msra.mxu0 0.0
      %3838 = vmatpush.msra.mxu0 %v3801
      %3839 = vmatmul.f32.gmra.mxu0 %v3795
      %v3840 = vpop.f32.mrf.mxu0
      %v3841 = vadd.f32 0.0, %v3840
      %3842 = vdwg.mxu0
      %v3843 = vadd.f32 %v3770, %v3821
      %v3844 = vadd.f32 %v3790, %v3841
      %s3845 = scalar_lea.vmem %s8, 18
      %v3846 = vld [vmem:[%s3845] sm:$0x3]
      %3848 = vset.pattern.permute.xlu0 0
      %3849 = vperm.xlu0 %3848, %v3846
      %v3850 = vpop.permute.xlu0 %3849
      %v3852 = vadd.f32 %v3843, %v3850
      %v3853 = vadd.f32 %v3844, %v3850
      %v3854 = vsel %vm991, %v3852, 0.0
      %v3855 = vsel %vm991, %v3853, 0.0
      %v3856 = vadd.f32 %v3854, %v3855
      %3857 = vadd.xlane.f32.xlu0 %v3856
      %v3858 = vpop.xlane.xlu0 %3857
      %v3859 = vmul.f32 %v3858, %v866
      %v3860 = vmul.f32 %v3852, %v3852
      %v3861 = vmul.f32 %v3853, %v3853
      %v3862 = vsel %vm991, %v3860, 0.0
      %v3863 = vsel %vm991, %v3861, 0.0
      %v3864 = vadd.f32 %v3862, %v3863
      %3865 = vadd.xlane.f32.xlu0 %v3864
      %v3866 = vpop.xlane.xlu0 %3865
      %v3867 = vmul.f32 %v3866, %v866
      %v3868 = vmul.f32 %v3859, %v3859
      %v3869 = vsub.f32 %v3867, %v3868
      %v3870 = vmax.f32 %v3869, 0.0
      %v3871 = vsub.f32 %v3852, %v3859
      %v3872 = vsub.f32 %v3853, %v3859
      %v3873 = vadd.f32 %v3870, 1e-05
      %v3874 = vrsqrt.pop %v3873
      %v3875 = vmul.f32 %v3874, %v3873
      %v3876 = vmul.f32 %v3875, %v3874
      %v3877 = vmul.f32 0.5, %v3876
      %v3878 = vsub.f32 1.5, %v3877
      %v3879 = vmul.f32 %v3874, %v3878
      %vm3880 = vweird.f32 %v3873
      %vm3881 = vweird.f32 %v3874
      %vm3882 = vmor %vm3880, %vm3881
      %v3883 = vsel %vm3882, %v3874, %v3879
      %v3884 = vmul.f32 %v3871, %v3883
      %v3885 = vmul.f32 %v3872, %v3883
      %v3886 = vmax.f32 %v3884, 0.0
      %v3887 = vmax.f32 %v3885, 0.0
      %v3888 = vld [vmem:[%s11] sm:$0xff]
      %v3889 = vld [vmem:[%s11 + $0x8] sm:$0xf]
      %s3890 = scalar_lea.vmem %s11, 16
      %v3891 = vld [vmem:[%s3890] sm:$0xff]
      %v3892 = vld [vmem:[%s3890 + $0x8] sm:$0xf]
      %v3894 = vsel %vm987, %v3891, 0
      %v3897 = vsel %vm987, %v3892, 0
      %v3900 = vsel %vm991, %v3012, 0
      %v3903 = vsel %vm991, %v3013, 0
      %3905 = vmatpush.msra.mxu0 0.0
      %3906 = vmatpush.msra.mxu0 0.0
      %3907 = vmatpush.msra.mxu0 0.0
      %3908 = vmatpush.msra.mxu0 0.0
      %3909 = vmatpush.msra.mxu0 0.0
      %3910 = vmatpush.msra.mxu0 0.0
      %3911 = vmatpush.msra.mxu0 0.0
      %3912 = vmatpush.msra.mxu0 0.0
      %3913 = vmatpush.msra.mxu0 0.0
      %3914 = vmatpush.msra.mxu0 0.0
      %3915 = vmatpush.msra.mxu0 0.0
      %3916 = vmatpush.msra.mxu0 0.0
      %3917 = vmatpush.msra.mxu0 0.0
      %3918 = vmatpush.msra.mxu0 0.0
      %3919 = vmatpush.msra.mxu0 0.0
      %3920 = vmatpush.msra.mxu0 %v3900
      %3921 = vmatmul.f32.gmra.mxu0 %v3894
      %v3922 = vpop.f32.mrf.mxu0
      %v3923 = vadd.f32 0.0, %v3922
      %3924 = vmatmul.f32.gmra.mxu0 %v3897
      %v3925 = vpop.f32.mrf.mxu0
      %v3926 = vadd.f32 0.0, %v3925
      %3927 = vdwg.mxu0
      %3928 = vmatpush.msra.mxu0 0.0
      %3929 = vmatpush.msra.mxu0 0.0
      %3930 = vmatpush.msra.mxu0 0.0
      %3931 = vmatpush.msra.mxu0 0.0
      %3932 = vmatpush.msra.mxu0 0.0
      %3933 = vmatpush.msra.mxu0 0.0
      %3934 = vmatpush.msra.mxu0 0.0
      %3935 = vmatpush.msra.mxu0 0.0
      %3936 = vmatpush.msra.mxu0 0.0
      %3937 = vmatpush.msra.mxu0 0.0
      %3938 = vmatpush.msra.mxu0 0.0
      %3939 = vmatpush.msra.mxu0 0.0
      %3940 = vmatpush.msra.mxu0 0.0
      %3941 = vmatpush.msra.mxu0 0.0
      %3942 = vmatpush.msra.mxu0 0.0
      %3943 = vmatpush.msra.mxu0 %v3903
      %3944 = vmatmul.f32.gmra.mxu0 %v3894
      %v3945 = vpop.f32.mrf.mxu0
      %v3946 = vadd.f32 0.0, %v3945
      %3947 = vmatmul.f32.gmra.mxu0 %v3897
      %v3948 = vpop.f32.mrf.mxu0
      %v3949 = vadd.f32 0.0, %v3948
      %3950 = vdwg.mxu0
      %v3952 = vsel %vm987, %v3888, 0
      %v3955 = vsel %vm987, %v3889, 0
      %v3957 = vsel %vm991, %v2772, 0
      %v3959 = vsel %vm991, %v2773, 0
      %3961 = vmatpush.msra.mxu0 0.0
      %3962 = vmatpush.msra.mxu0 0.0
      %3963 = vmatpush.msra.mxu0 0.0
      %3964 = vmatpush.msra.mxu0 0.0
      %3965 = vmatpush.msra.mxu0 0.0
      %3966 = vmatpush.msra.mxu0 0.0
      %3967 = vmatpush.msra.mxu0 0.0
      %3968 = vmatpush.msra.mxu0 0.0
      %3969 = vmatpush.msra.mxu0 0.0
      %3970 = vmatpush.msra.mxu0 0.0
      %3971 = vmatpush.msra.mxu0 0.0
      %3972 = vmatpush.msra.mxu0 0.0
      %3973 = vmatpush.msra.mxu0 0.0
      %3974 = vmatpush.msra.mxu0 0.0
      %3975 = vmatpush.msra.mxu0 0.0
      %3976 = vmatpush.msra.mxu0 %v3957
      %3977 = vmatmul.f32.gmra.mxu0 %v3952
      %v3978 = vpop.f32.mrf.mxu0
      %v3979 = vadd.f32 %v3923, %v3978
      %3980 = vmatmul.f32.gmra.mxu0 %v3955
      %v3981 = vpop.f32.mrf.mxu0
      %v3982 = vadd.f32 %v3926, %v3981
      %3983 = vdwg.mxu0
      %3984 = vmatpush.msra.mxu0 0.0
      %3985 = vmatpush.msra.mxu0 0.0
      %3986 = vmatpush.msra.mxu0 0.0
      %3987 = vmatpush.msra.mxu0 0.0
      %3988 = vmatpush.msra.mxu0 0.0
      %3989 = vmatpush.msra.mxu0 0.0
      %3990 = vmatpush.msra.mxu0 0.0
      %3991 = vmatpush.msra.mxu0 0.0
      %3992 = vmatpush.msra.mxu0 0.0
      %3993 = vmatpush.msra.mxu0 0.0
      %3994 = vmatpush.msra.mxu0 0.0
      %3995 = vmatpush.msra.mxu0 0.0
      %3996 = vmatpush.msra.mxu0 0.0
      %3997 = vmatpush.msra.mxu0 0.0
      %3998 = vmatpush.msra.mxu0 0.0
      %3999 = vmatpush.msra.mxu0 %v3959
      %4000 = vmatmul.f32.gmra.mxu0 %v3952
      %v4001 = vpop.f32.mrf.mxu0
      %v4002 = vadd.f32 %v3946, %v4001
      %4003 = vmatmul.f32.gmra.mxu0 %v3955
      %v4004 = vpop.f32.mrf.mxu0
      %v4005 = vadd.f32 %v3949, %v4004
      %4006 = vdwg.mxu0
      %s4007 = scalar_lea.vmem %s11, 32
      %v4008 = vld [vmem:[%s4007] sm:$0xff]
      %v4009 = vld [vmem:[%s4007 + $0x8] sm:$0xf]
      %v4011 = vsel %vm987, %v4008, 0
      %v4014 = vsel %vm987, %v4009, 0
      %v4017 = vsel %vm991, %v3232, 0
      %v4020 = vsel %vm991, %v3233, 0
      %4022 = vmatpush.msra.mxu0 0.0
      %4023 = vmatpush.msra.mxu0 0.0
      %4024 = vmatpush.msra.mxu0 0.0
      %4025 = vmatpush.msra.mxu0 0.0
      %4026 = vmatpush.msra.mxu0 0.0
      %4027 = vmatpush.msra.mxu0 0.0
      %4028 = vmatpush.msra.mxu0 0.0
      %4029 = vmatpush.msra.mxu0 0.0
      %4030 = vmatpush.msra.mxu0 0.0
      %4031 = vmatpush.msra.mxu0 0.0
      %4032 = vmatpush.msra.mxu0 0.0
      %4033 = vmatpush.msra.mxu0 0.0
      %4034 = vmatpush.msra.mxu0 0.0
      %4035 = vmatpush.msra.mxu0 0.0
      %4036 = vmatpush.msra.mxu0 0.0
      %4037 = vmatpush.msra.mxu0 %v4017
      %4038 = vmatmul.f32.gmra.mxu0 %v4011
      %v4039 = vpop.f32.mrf.mxu0
      %v4040 = vadd.f32 0.0, %v4039
      %4041 = vmatmul.f32.gmra.mxu0 %v4014
      %v4042 = vpop.f32.mrf.mxu0
      %v4043 = vadd.f32 0.0, %v4042
      %4044 = vdwg.mxu0
      %4045 = vmatpush.msra.mxu0 0.0
      %4046 = vmatpush.msra.mxu0 0.0
      %4047 = vmatpush.msra.mxu0 0.0
      %4048 = vmatpush.msra.mxu0 0.0
      %4049 = vmatpush.msra.mxu0 0.0
      %4050 = vmatpush.msra.mxu0 0.0
      %4051 = vmatpush.msra.mxu0 0.0
      %4052 = vmatpush.msra.mxu0 0.0
      %4053 = vmatpush.msra.mxu0 0.0
      %4054 = vmatpush.msra.mxu0 0.0
      %4055 = vmatpush.msra.mxu0 0.0
      %4056 = vmatpush.msra.mxu0 0.0
      %4057 = vmatpush.msra.mxu0 0.0
      %4058 = vmatpush.msra.mxu0 0.0
      %4059 = vmatpush.msra.mxu0 0.0
      %4060 = vmatpush.msra.mxu0 %v4020
      %4061 = vmatmul.f32.gmra.mxu0 %v4011
      %v4062 = vpop.f32.mrf.mxu0
      %v4063 = vadd.f32 0.0, %v4062
      %4064 = vmatmul.f32.gmra.mxu0 %v4014
      %v4065 = vpop.f32.mrf.mxu0
      %v4066 = vadd.f32 0.0, %v4065
      %4067 = vdwg.mxu0
      %v4068 = vadd.f32 %v3979, %v4040
      %v4069 = vadd.f32 %v4002, %v4063
      %v4070 = vadd.f32 %v3982, %v4043
      %v4071 = vadd.f32 %v4005, %v4066
      %s4072 = scalar_lea.vmem %s11, 48
      %v4073 = vld [vmem:[%s4072] sm:$0xff]
      %v4074 = vld [vmem:[%s4072 + $0x8] sm:$0xf]
      %v4076 = vsel %vm987, %v4073, 0
      %v4079 = vsel %vm987, %v4074, 0
      %v4082 = vsel %vm991, %v3448, 0
      %v4085 = vsel %vm991, %v3449, 0
      %4087 = vmatpush.msra.mxu0 0.0
      %4088 = vmatpush.msra.mxu0 0.0
      %4089 = vmatpush.msra.mxu0 0.0
      %4090 = vmatpush.msra.mxu0 0.0
      %4091 = vmatpush.msra.mxu0 0.0
      %4092 = vmatpush.msra.mxu0 0.0
      %4093 = vmatpush.msra.mxu0 0.0
      %4094 = vmatpush.msra.mxu0 0.0
      %4095 = vmatpush.msra.mxu0 0.0
      %4096 = vmatpush.msra.mxu0 0.0
      %4097 = vmatpush.msra.mxu0 0.0
      %4098 = vmatpush.msra.mxu0 0.0
      %4099 = vmatpush.msra.mxu0 0.0
      %4100 = vmatpush.msra.mxu0 0.0
      %4101 = vmatpush.msra.mxu0 0.0
      %4102 = vmatpush.msra.mxu0 %v4082
      %4103 = vmatmul.f32.gmra.mxu0 %v4076
      %v4104 = vpop.f32.mrf.mxu0
      %v4105 = vadd.f32 0.0, %v4104
      %4106 = vmatmul.f32.gmra.mxu0 %v4079
      %v4107 = vpop.f32.mrf.mxu0
      %v4108 = vadd.f32 0.0, %v4107
      %4109 = vdwg.mxu0
      %4110 = vmatpush.msra.mxu0 0.0
      %4111 = vmatpush.msra.mxu0 0.0
      %4112 = vmatpush.msra.mxu0 0.0
      %4113 = vmatpush.msra.mxu0 0.0
      %4114 = vmatpush.msra.mxu0 0.0
      %4115 = vmatpush.msra.mxu0 0.0
      %4116 = vmatpush.msra.mxu0 0.0
      %4117 = vmatpush.msra.mxu0 0.0
      %4118 = vmatpush.msra.mxu0 0.0
      %4119 = vmatpush.msra.mxu0 0.0
      %4120 = vmatpush.msra.mxu0 0.0
      %4121 = vmatpush.msra.mxu0 0.0
      %4122 = vmatpush.msra.mxu0 0.0
      %4123 = vmatpush.msra.mxu0 0.0
      %4124 = vmatpush.msra.mxu0 0.0
      %4125 = vmatpush.msra.mxu0 %v4085
      %4126 = vmatmul.f32.gmra.mxu0 %v4076
      %v4127 = vpop.f32.mrf.mxu0
      %v4128 = vadd.f32 0.0, %v4127
      %4129 = vmatmul.f32.gmra.mxu0 %v4079
      %v4130 = vpop.f32.mrf.mxu0
      %v4131 = vadd.f32 0.0, %v4130
      %4132 = vdwg.mxu0
      %v4133 = vadd.f32 %v4068, %v4105
      %v4134 = vadd.f32 %v4069, %v4128
      %v4135 = vadd.f32 %v4070, %v4108
      %v4136 = vadd.f32 %v4071, %v4131
      %s4137 = scalar_lea.vmem %s11, 64
      %v4138 = vld [vmem:[%s4137] sm:$0xff]
      %v4139 = vld [vmem:[%s4137 + $0x8] sm:$0xf]
      %v4141 = vsel %vm987, %v4138, 0
      %v4144 = vsel %vm987, %v4139, 0
      %v4147 = vsel %vm991, %v3664, 0
      %v4150 = vsel %vm991, %v3665, 0
      %4152 = vmatpush.msra.mxu0 0.0
      %4153 = vmatpush.msra.mxu0 0.0
      %4154 = vmatpush.msra.mxu0 0.0
      %4155 = vmatpush.msra.mxu0 0.0
      %4156 = vmatpush.msra.mxu0 0.0
      %4157 = vmatpush.msra.mxu0 0.0
      %4158 = vmatpush.msra.mxu0 0.0
      %4159 = vmatpush.msra.mxu0 0.0
      %4160 = vmatpush.msra.mxu0 0.0
      %4161 = vmatpush.msra.mxu0 0.0
      %4162 = vmatpush.msra.mxu0 0.0
      %4163 = vmatpush.msra.mxu0 0.0
      %4164 = vmatpush.msra.mxu0 0.0
      %4165 = vmatpush.msra.mxu0 0.0
      %4166 = vmatpush.msra.mxu0 0.0
      %4167 = vmatpush.msra.mxu0 %v4147
      %4168 = vmatmul.f32.gmra.mxu0 %v4141
      %v4169 = vpop.f32.mrf.mxu0
      %v4170 = vadd.f32 0.0, %v4169
      %4171 = vmatmul.f32.gmra.mxu0 %v4144
      %v4172 = vpop.f32.mrf.mxu0
      %v4173 = vadd.f32 0.0, %v4172
      %4174 = vdwg.mxu0
      %4175 = vmatpush.msra.mxu0 0.0
      %4176 = vmatpush.msra.mxu0 0.0
      %4177 = vmatpush.msra.mxu0 0.0
      %4178 = vmatpush.msra.mxu0 0.0
      %4179 = vmatpush.msra.mxu0 0.0
      %4180 = vmatpush.msra.mxu0 0.0
      %4181 = vmatpush.msra.mxu0 0.0
      %4182 = vmatpush.msra.mxu0 0.0
      %4183 = vmatpush.msra.mxu0 0.0
      %4184 = vmatpush.msra.mxu0 0.0
      %4185 = vmatpush.msra.mxu0 0.0
      %4186 = vmatpush.msra.mxu0 0.0
      %4187 = vmatpush.msra.mxu0 0.0
      %4188 = vmatpush.msra.mxu0 0.0
      %4189 = vmatpush.msra.mxu0 0.0
      %4190 = vmatpush.msra.mxu0 %v4150
      %4191 = vmatmul.f32.gmra.mxu0 %v4141
      %v4192 = vpop.f32.mrf.mxu0
      %v4193 = vadd.f32 0.0, %v4192
      %4194 = vmatmul.f32.gmra.mxu0 %v4144
      %v4195 = vpop.f32.mrf.mxu0
      %v4196 = vadd.f32 0.0, %v4195
      %4197 = vdwg.mxu0
      %v4198 = vadd.f32 %v4133, %v4170
      %v4199 = vadd.f32 %v4134, %v4193
      %v4200 = vadd.f32 %v4135, %v4173
      %v4201 = vadd.f32 %v4136, %v4196
      %s4202 = scalar_lea.vmem %s11, 80
      %v4203 = vld [vmem:[%s4202] sm:$0xff]
      %v4204 = vld [vmem:[%s4202 + $0x8] sm:$0xf]
      %v4206 = vsel %vm987, %v4203, 0
      %v4209 = vsel %vm987, %v4204, 0
      %v4212 = vsel %vm991, %v3886, 0
      %v4215 = vsel %vm991, %v3887, 0
      %4217 = vmatpush.msra.mxu0 0.0
      %4218 = vmatpush.msra.mxu0 0.0
      %4219 = vmatpush.msra.mxu0 0.0
      %4220 = vmatpush.msra.mxu0 0.0
      %4221 = vmatpush.msra.mxu0 0.0
      %4222 = vmatpush.msra.mxu0 0.0
      %4223 = vmatpush.msra.mxu0 0.0
      %4224 = vmatpush.msra.mxu0 0.0
      %4225 = vmatpush.msra.mxu0 0.0
      %4226 = vmatpush.msra.mxu0 0.0
      %4227 = vmatpush.msra.mxu0 0.0
      %4228 = vmatpush.msra.mxu0 0.0
      %4229 = vmatpush.msra.mxu0 0.0
      %4230 = vmatpush.msra.mxu0 0.0
      %4231 = vmatpush.msra.mxu0 0.0
      %4232 = vmatpush.msra.mxu0 %v4212
      %4233 = vmatmul.f32.gmra.mxu0 %v4206
      %v4234 = vpop.f32.mrf.mxu0
      %v4235 = vadd.f32 0.0, %v4234
      %4236 = vmatmul.f32.gmra.mxu0 %v4209
      %v4237 = vpop.f32.mrf.mxu0
      %v4238 = vadd.f32 0.0, %v4237
      %4239 = vdwg.mxu0
      %4240 = vmatpush.msra.mxu0 0.0
      %4241 = vmatpush.msra.mxu0 0.0
      %4242 = vmatpush.msra.mxu0 0.0
      %4243 = vmatpush.msra.mxu0 0.0
      %4244 = vmatpush.msra.mxu0 0.0
      %4245 = vmatpush.msra.mxu0 0.0
      %4246 = vmatpush.msra.mxu0 0.0
      %4247 = vmatpush.msra.mxu0 0.0
      %4248 = vmatpush.msra.mxu0 0.0
      %4249 = vmatpush.msra.mxu0 0.0
      %4250 = vmatpush.msra.mxu0 0.0
      %4251 = vmatpush.msra.mxu0 0.0
      %4252 = vmatpush.msra.mxu0 0.0
      %4253 = vmatpush.msra.mxu0 0.0
      %4254 = vmatpush.msra.mxu0 0.0
      %4255 = vmatpush.msra.mxu0 %v4215
      %4256 = vmatmul.f32.gmra.mxu0 %v4206
      %v4257 = vpop.f32.mrf.mxu0
      %v4258 = vadd.f32 0.0, %v4257
      %4259 = vmatmul.f32.gmra.mxu0 %v4209
      %v4260 = vpop.f32.mrf.mxu0
      %v4261 = vadd.f32 0.0, %v4260
      %4262 = vdwg.mxu0
      %v4263 = vadd.f32 %v4198, %v4235
      %v4264 = vadd.f32 %v4199, %v4258
      %v4265 = vadd.f32 %v4200, %v4238
      %v4266 = vadd.f32 %v4201, %v4261
      %v4267 = vld [vmem:[%s12] sm:$0xff]
      %v4268 = vld [vmem:[%s12 + $0x8] sm:$0xf]
      %4270 = vset.pattern.permute.xlu0 0
      %4271 = vperm.xlu0 %4270, %v4267
      %v4272 = vpop.permute.xlu0 %4271
      %4275 = vset.pattern.permute.xlu0 0
      %4276 = vperm.xlu0 %4275, %v4268
      %v4277 = vpop.permute.xlu0 %4276
      %v4279 = vadd.f32 %v4263, %v4272
      %v4280 = vadd.f32 %v4264, %v4272
      %v4281 = vadd.f32 %v4265, %v4277
      %v4282 = vadd.f32 %v4266, %v4277
      %v4283 = vld [vmem:[#allocation2] sm:$0xff]
      %v4284 = vld [vmem:[#allocation2 + $0x8] sm:$0xff]
      %v4285 = vld [vmem:[#allocation2 + $0x10] sm:$0xf]
      %v4286 = vld [vmem:[#allocation2 + $0x18] sm:$0xf]
      %v4287 = vadd.f32 %v4279, %v4283
      %v4288 = vadd.f32 %v4280, %v4284
      %v4289 = vadd.f32 %v4281, %v4285
      %v4290 = vadd.f32 %v4282, %v4286
      %v4291 = vmax.f32 %v4287, 0.0
      %v4292 = vmax.f32 %v4288, 0.0
      %v4293 = vmax.f32 %v4289, 0.0
      %v4294 = vmax.f32 %v4290, 0.0
      %4295 = vst [vmem:[%s568] sm:$0xff] %v4291
      %4296 = vst [vmem:[%s568 + $0x8] sm:$0xff] %v4292
      %4297 = vst [vmem:[%s568 + $0x10] sm:$0xf] %v4293
      %4298 = vst [vmem:[%s568 + $0x18] sm:$0xf] %v4294
      %p4299 = scmp.lt.s32.totalorder %s28, 1
      %s4300 = scalar_select %p4299, %s28, 1
      %s4301 = smul.addr %s4300, 4
      %s4302 = smul.addr %s4301, 8
      %s4303 = scalar_lea.vmem %s17, %s4302
      // Predicated region
      $region89: #{conv_up_forward.1} parent=87 // pred_check
        %p4304 = pneg %p413
      $region90: #{conv_up_forward.1} parent=87 // pred_check_branch
        %4306 = sbr.rel (%p4304) target = $region92
      $region91: #{conv_up_forward.1} parent=87 // pred_region
        _
      $region92: #{conv_up_forward.1} parent=87 // pred_fallthru
        _
    $region88: #{conv_up_forward.1} parent=5 // pred_fallthru
      _
    %p4307 = scmp.le.s32.totalorder 2, %s23
    // Predicated region
    $region93: #{conv_up_forward.1} parent=5 // pred_check
      %p4308 = pneg %p4307
    $region94: #{conv_up_forward.1} parent=5 // pred_check_branch
      %4310 = sbr.rel (%p4308) target = $region96
    $region95: #{conv_up_forward.1} parent=5 // pred_region
      %s4311 = ssub.s32 %s23, 2
      // Predicated region
      $region97: #{conv_up_forward.1} parent=95 // pred_check
        %p4312 = pneg %p419
      $region98: #{conv_up_forward.1} parent=95 // pred_check_branch
        %4314 = sbr.rel (%p4312) target = $region100
      $region99: #{conv_up_forward.1} parent=95 // pred_region
        %p4315 = scmp.lt.s32.totalorder %s29, 1
        %s4316 = scalar_select %p4315, %s29, 1
        %s4317 = smul.addr %s4316, 4
        %s4318 = smul.addr %s4317, 8
        %s4319 = scalar_lea.vmem %s17, %s4318
      $region100: #{conv_up_forward.1} parent=95 // pred_fallthru
        _
    $region96: #{conv_up_forward.1} parent=5 // pred_fallthru
      _
  $region6: #{conv_up_forward.1} parent=0 // loop_footer
    %s27 = sadd.s32 1, %s23
  $region7: #{conv_up_forward.1} parent=0 // loop_footer_branch
    %22 = sbr.rel target = $region3
  $region8: #{conv_up_forward.1} parent=0 // loop_exit
    _

</llo_original>
